<compile_context>
chip_gen: v5e
topology: v5e:2x2
jax: 0.10.0
libtpu: 0.0.40
codegen_flags: <defaults>
</compile_context>

<pallas_src>
import functools

import jax
import jax.numpy as jnp
from jax.experimental import pallas as pl
from jax.experimental.pallas import tpu as pltpu


def sha_kernel(x_ref, ah_ref, av_ref, sh_ref, sv_ref,
               w1_ref, b1_ref, w3h_ref, w3v_ref, b3_ref,
               out_ref, hmax_ref, *, H, W):
    # x_ref / out_ref: (R, H*W) with R = Bt*C rows (Bt batch elements folded
    # into the sublane dim); last dim is the lane-dense flattened H*W.
    f32 = jnp.float32
    HP = jax.lax.Precision.HIGHEST

    x = x_ref[...].astype(f32)                                   # (R, H*W), one dense load

    # ---- max pooling (VPU/XLU) ------------------------------------------------
    # Vertical max: single running (R, W) accumulator.  Horizontal max: each
    # column is written straight into VMEM scratch so live ranges stay bounded.
    # TODO(synk): for very large H, convert this static unroll to
    # lax.fori_loop(..., unroll=8) to bound code size as well.
    blk0 = x_ref[:, 0:W].astype(f32)                             # (R, W)
    v_max = blk0
    hmax_ref[:, 0:1] = jnp.max(blk0, axis=1, keepdims=True)
    for h in range(1, H):                                        # static unroll (small H)
        blk = x_ref[:, h * W:(h + 1) * W].astype(f32)            # (R, W)
        v_max = jnp.maximum(v_max, blk)
        hmax_ref[:, h:h + 1] = jnp.max(blk, axis=1, keepdims=True)
    h_max = hmax_ref[...]                                        # (R, H)

    # ---- mean pooling as two MXU dots against precomputed averaging matrices --
    h_mean = jnp.dot(x, ah_ref[...], precision=HP, preferred_element_type=f32)   # (R, H)
    v_mean = jnp.dot(x, av_ref[...], precision=HP, preferred_element_type=f32)   # (R, W)

    h_enc = h_mean + h_max                                       # (R, H)
    v_enc = v_mean + v_max                                       # (R, W)
    enc = jnp.concatenate([h_enc, v_enc], axis=1)                # (R, H+W)

    # ---- 1x1 conv (block-diagonal channel mix over the folded batch) + ReLU6 --
    enc1 = jnp.dot(w1_ref[...], enc, precision=HP, preferred_element_type=f32) + b1_ref[...]
    enc1 = jnp.clip(enc1, 0.0, 6.0)                              # (Rr, H+W)

    Rr = enc1.shape[0]
    hs = enc1[:, :H]                                             # (Rr, H)
    vs = enc1[:, H:]                                             # (Rr, W)

    # ---- 3x3 conv on (h,1)/(1,w) inputs == 3-tap 1-D conv ---------------------
    # Shifted copies built with tiny zero-pad slice+concat (fixes the illegal
    # negative pltpu.roll), stacked along the contracting dim so each direction
    # is a single matmul against the pre-packed block-diagonal (R, 3*Rr) weights.
    z = jnp.zeros((Rr, 1), f32)
    hs_m = jnp.concatenate([z, hs[:, :H - 1]], axis=1)           # x[i-1], 0 at i=0
    hs_p = jnp.concatenate([hs[:, 1:], z], axis=1)               # x[i+1], 0 at i=H-1
    vs_m = jnp.concatenate([z, vs[:, :W - 1]], axis=1)
    vs_p = jnp.concatenate([vs[:, 1:], z], axis=1)
    hs_stack = jnp.concatenate([hs_m, hs, hs_p], axis=0)         # (3*Rr, H)
    vs_stack = jnp.concatenate([vs_m, vs, vs_p], axis=0)         # (3*Rr, W)

    h_out = jnp.dot(w3h_ref[...], hs_stack, precision=HP,
                    preferred_element_type=f32) + b3_ref[...]    # (R, H)
    v_out = jnp.dot(w3v_ref[...], vs_stack, precision=HP,
                    preferred_element_type=f32) + b3_ref[...]    # (R, W)

    # ---- attention mask via 0/1 selection-matrix matmuls (MXU) ----------------
    # out[:, h*W + w] = sigmoid(h_out[:, h] * v_out[:, w]) * x[:, h*W + w]
    h_rep = jnp.dot(h_out, sh_ref[...], precision=HP, preferred_element_type=f32)  # (R, H*W)
    v_til = jnp.dot(v_out, sv_ref[...], precision=HP, preferred_element_type=f32)  # (R, H*W)

    out_ref[...] = (jax.nn.sigmoid(h_rep * v_til) * x).astype(out_ref.dtype)       # one dense store


def _choose_bt(B, C, HW, itemsize):
    """How many batch elements to fold into one grid step (into the sublane dim)."""
    per_elem = C * HW * itemsize
    # Keep R = Bt*C <= 128: single MXU pass on every generation and the
    # block-diagonal kron weights stay small (they grow as Bt^2).
    cap_rows = max(1, 128 // C)
    # Keep each block modest so double-buffering fits v7x's 64 MiB VMEM.
    # TODO(synk): per-generation retune — v5e/v6e (128 MiB VMEM, 1 TC) can take
    # 8-12 MiB blocks; v7x should also add a second parallel grid axis when B==1.
    cap_bytes = max(1, (6 << 20) // per_elem)
    bt = max(1, min(B, cap_rows, cap_bytes))
    while B % bt:                               # Bt must divide B
        bt -= 1
    return bt


@jax.jit
def sha_layer_pallas(fea, w1, b1, w3, b3):
    """fea: (B, C, H, W); w1: (Cr, C, 1, 1); b1: (Cr,); w3: (C, Cr, 3, 3); b3: (C,)."""
    B, C, H, W = fea.shape
    Cr = w1.shape[0]
    HW = H * W
    Bt = _choose_bt(B, C, HW, fea.dtype.itemsize)
    G = B // Bt
    R, Rr = Bt * C, Bt * Cr

    # ---- one-time parameter / constant-matrix packing (plain JAX, outside kernel)
    f32 = jnp.float32
    w1_2d = w1.reshape(Cr, C).astype(f32)
    # 3x3 kernel: only the middle column / middle row touches the (h,1)/(1,w)
    # inputs, so slice it down to the effective 3 taps.
    w3_col = w3[:, :, :, 1].astype(f32)     # (C, Cr, 3): taps along kh for the (h,1) branch
    w3_row = w3[:, :, 1, :].astype(f32)     # (C, Cr, 3): taps along kw for the (1,w) branch
    eye = jnp.eye(Bt, dtype=f32)
    # Block-diagonal expansion over the Bt folded batch elements, taps packed
    # into the contracting dim -> one dot per conv per grid step.
    w1_bd = jnp.kron(eye, w1_2d)                                                           # (Rr, R)
    w3h_bd = jnp.concatenate([jnp.kron(eye, w3_col[:, :, k]) for k in range(3)], axis=1)   # (R, 3*Rr)
    w3v_bd = jnp.concatenate([jnp.kron(eye, w3_row[:, :, k]) for k in range(3)], axis=1)   # (R, 3*Rr)
    b1_col = jnp.tile(b1.astype(f32).reshape(Cr, 1), (Bt, 1))                              # (Rr, 1)
    b3_col = jnp.tile(b3.astype(f32).reshape(C, 1), (Bt, 1))                               # (R, 1)

    # Selection / averaging matrices for the MXU-offloaded pooling and the
    # outer-product expansion of the attention mask.
    # TODO(synk): on v6e/v7x these (and the packed weights) could be pre-cast to
    # bf16 for fewer MXU passes; kept f32 to hold the tight reference tolerance.
    flat_h = jnp.arange(HW, dtype=jnp.int32) // W
    flat_w = jnp.arange(HW, dtype=jnp.int32) % W
    sel_h = (flat_h[None, :] == jnp.arange(H, dtype=jnp.int32)[:, None]).astype(f32)  # (H, HW)
    sel_v = (flat_w[None, :] == jnp.arange(W, dtype=jnp.int32)[:, None]).astype(f32)  # (W, HW)
    avg_h = sel_h.T * (1.0 / W)                                                        # (HW, H)
    avg_v = sel_v.T * (1.0 / H)                                                        # (HW, W)

    # ---- lane-dense layout: (B, C, H, W) -> (G, Bt*C, H*W); free XLA reshape --
    fea_r = fea.reshape(G, R, HW)

    const_spec = lambda shape: pl.BlockSpec(shape, lambda g: (0, 0))
    # TODO(synk): mark these constant inputs with pipeline_mode=pl.Buffered(1)
    # to drop the unused second pipeline buffer (matters once HW is large).

    kernel = functools.partial(sha_kernel, H=H, W=W)
    out_r = pl.pallas_call(
        kernel,
        out_shape=jax.ShapeDtypeStruct((G, R, HW), fea.dtype),
        grid_spec=pltpu.PrefetchScalarGridSpec(
            num_scalar_prefetch=0,
            grid=(G,),
            in_specs=[
                # Leading grid dim squeezed (block dim None == pl.Squeezed()),
                # so the kernel sees clean 2-D refs.
                pl.BlockSpec((None, R, HW), lambda g: (g, 0, 0)),
                const_spec((HW, H)),        # averaging matrix (horizontal mean)
                const_spec((HW, W)),        # averaging matrix (vertical mean)
                const_spec((H, HW)),        # selection matrix (replicate H along w)
                const_spec((W, HW)),        # selection matrix (tile V along h)
                const_spec((Rr, R)),        # block-diag 1x1 weights
                const_spec((Rr, 1)),        # b1 as a column (no in-kernel transpose)
                const_spec((R, 3 * Rr)),    # packed H-taps
                const_spec((R, 3 * Rr)),    # packed V-taps
                const_spec((R, 1)),         # b3 as a column
            ],
            out_specs=pl.BlockSpec((None, R, HW), lambda g: (g, 0, 0)),
            scratch_shapes=[pltpu.VMEM((R, H), jnp.float32)],   # horizontal-max columns
        ),
        compiler_params=pltpu.CompilerParams(
            dimension_semantics=("parallel",),
            vmem_limit_bytes=32 * 1024 * 1024,
        ),
    )(fea_r, avg_h, avg_v, sel_h, sel_v, w1_bd, b1_col, w3h_bd, w3v_bd, b3_col)
    return out_r.reshape(B, C, H, W)


def sha_layer_reference(fea, w1, b1, w3, b3):
    """Pure-JAX reference matching the PyTorch forward exactly."""
    b, c, h, w = fea.shape
    dn = ("NCHW", "OIHW", "NCHW")
    hp = jax.lax.Precision.HIGHEST
    H_enc = jnp.mean(fea, axis=3, keepdims=True) + jnp.max(fea, axis=3, keepdims=True)
    V_enc = jnp.mean(fea, axis=2, keepdims=True) + jnp.max(fea, axis=2, keepdims=True)
    V_enc = V_enc.reshape(b, c, w, 1)
    enc = jnp.concatenate([H_enc, V_enc], axis=2)                       # (b,c,h+w,1)
    enc = jax.lax.conv_general_dilated(enc, w1, (1, 1), ((0, 0), (0, 0)),
                                       dimension_numbers=dn,
                                       precision=hp) + b1.reshape(1, -1, 1, 1)
    enc = jnp.clip(enc, 0.0, 6.0)
    Hc = enc[:, :, :h, :]
    Vc = enc[:, :, h:, :].reshape(b, -1, 1, w)
    Hc = jax.lax.conv_general_dilated(Hc, w3, (1, 1), ((1, 1), (1, 1)),
                                      dimension_numbers=dn,
                                      precision=hp) + b3.reshape(1, -1, 1, 1)
    Vc = jax.lax.conv_general_dilated(Vc, w3, (1, 1), ((1, 1), (1, 1)),
                                      dimension_numbers=dn,
                                      precision=hp) + b3.reshape(1, -1, 1, 1)
    attn = jax.nn.sigmoid(Hc * Vc)
    return attn * fea


if __name__ == "__main__":
    def make_inputs(key, B, C, H, W, reduction):
        Cr = C // reduction
        k_fea, k_w1, k_b1, k_w3, k_b3 = jax.random.split(key, 5)
        fea = jax.random.normal(k_fea, (B, C, H, W), dtype=jnp.float32)
        w1 = jax.random.normal(k_w1, (Cr, C, 1, 1), dtype=jnp.float32) * 0.3
        b1 = jax.random.normal(k_b1, (Cr,), dtype=jnp.float32) * 0.1
        w3 = jax.random.normal(k_w3, (C, Cr, 3, 3), dtype=jnp.float32) * 0.3
        b3 = jax.random.normal(k_b3, (C,), dtype=jnp.float32) * 0.1
        return fea, w1, b1, w3, b3

    key = jax.random.PRNGKey(0)
    k1, k2 = jax.random.split(key)

    # Tolerance leaves headroom for MXU f32 multi-pass rounding differences.
    TOL = 1e-3

    # Case 1: canonical small shape (Bt=2, grid=(1,)).
    args = make_inputs(k1, 2, 8, 16, 16, 4)
    out = jax.block_until_ready(sha_layer_pallas(*args))
    ref = sha_layer_reference(*args)
    assert out.shape == args[0].shape
    assert jnp.allclose(out, ref, atol=TOL, rtol=TOL), "mismatch vs reference (case 1)"

    # Case 2: exercises a larger batched block-diagonal fold (Bt=4) and a
    # flattened spatial dim that is not a multiple of 128.
    args2 = make_inputs(k2, 4, 16, 24, 24, 4)
    out2 = jax.block_until_ready(sha_layer_pallas(*args2))
    ref2 = sha_layer_reference(*args2)
    assert jnp.allclose(out2, ref2, atol=TOL, rtol=TOL), "mismatch vs reference (case 2)"

    print("KERNEL_OK")
</pallas_src>

<mosaic_0001>
module attributes {stable_mosaic.version = 11 : i64} {
  func.func @sha_kernel(%arg0: i32, %arg1: memref<1x16x256xf32, #tpu.memory_space<vmem>>, %arg2: memref<256x16xf32, #tpu.memory_space<vmem>>, %arg3: memref<256x16xf32, #tpu.memory_space<vmem>>, %arg4: memref<16x256xf32, #tpu.memory_space<vmem>>, %arg5: memref<16x256xf32, #tpu.memory_space<vmem>>, %arg6: memref<4x16xf32, #tpu.memory_space<vmem>>, %arg7: memref<4x1xf32, #tpu.memory_space<vmem>>, %arg8: memref<16x12xf32, #tpu.memory_space<vmem>>, %arg9: memref<16x12xf32, #tpu.memory_space<vmem>>, %arg10: memref<16x1xf32, #tpu.memory_space<vmem>>, %arg11: memref<1x16x256xf32, #tpu.memory_space<vmem>>, %arg12: memref<16x16xf32, #tpu.memory_space<vmem>>) attributes {dimension_semantics = [#tpu.dimension_semantics<parallel>], iteration_bounds = array<i64: 1>, scalar_prefetch = 0 : i64, scratch_operands = 1 : i64, tpu.core_type = #tpu.core_type<tc>, window_params = [{transform_indices = @transform_0, window_bounds = array<i64: 1, 16, 256>}, {pipeline_mode = #tpu.pipeline_mode<synchronous>, transform_indices = @transform_1, window_bounds = array<i64: 256, 16>}, {pipeline_mode = #tpu.pipeline_mode<synchronous>, transform_indices = @transform_2, window_bounds = array<i64: 256, 16>}, {pipeline_mode = #tpu.pipeline_mode<synchronous>, transform_indices = @transform_3, window_bounds = array<i64: 16, 256>}, {pipeline_mode = #tpu.pipeline_mode<synchronous>, transform_indices = @transform_4, window_bounds = array<i64: 16, 256>}, {pipeline_mode = #tpu.pipeline_mode<synchronous>, transform_indices = @transform_5, window_bounds = array<i64: 4, 16>}, {pipeline_mode = #tpu.pipeline_mode<synchronous>, transform_indices = @transform_6, window_bounds = array<i64: 4, 1>}, {pipeline_mode = #tpu.pipeline_mode<synchronous>, transform_indices = @transform_7, window_bounds = array<i64: 16, 12>}, {pipeline_mode = #tpu.pipeline_mode<synchronous>, transform_indices = @transform_8, window_bounds = array<i64: 16, 12>}, {pipeline_mode = #tpu.pipeline_mode<synchronous>, transform_indices = @transform_9, window_bounds = array<i64: 16, 1>}, {transform_indices = @transform_10, window_bounds = array<i64: 1, 16, 256>}]} {
    %c0 = arith.constant 0 : index
    %c0_0 = arith.constant 0 : index
    %c0_1 = arith.constant 0 : index
    %0 = vector.load %arg1[%c0, %c0_0, %c0_1] : memref<1x16x256xf32, #tpu.memory_space<vmem>>, vector<1x16x256xf32>
    %1 = vector.shape_cast %0 : vector<1x16x256xf32> to vector<16x256xf32>
    %c0_2 = arith.constant 0 : index
    %c0_3 = arith.constant 0 : index
    %c0_4 = arith.constant 0 : index
    %2 = vector.load %arg1[%c0_2, %c0_3, %c0_4] : memref<1x16x256xf32, #tpu.memory_space<vmem>>, vector<1x16x16xf32>
    %3 = vector.shape_cast %2 : vector<1x16x16xf32> to vector<16x16xf32>
    %cst = arith.constant dense<0xFF800000> : vector<16xf32>
    %4 = vector.multi_reduction <maximumf>, %3, %cst [1] : vector<16x16xf32> to vector<16xf32>
    %5 = vector.shape_cast %4 : vector<16xf32> to vector<16x1xf32>
    %c0_5 = arith.constant 0 : index
    %c0_6 = arith.constant 0 : index
    %6 = vector.load %arg12[%c0_5, %c0_6] : memref<16x16xf32, #tpu.memory_space<vmem>>, vector<16x1xf32>
    tpu.vector_store %arg12[%c0_5, %c0_6], %5 {strides = array<i32>} : memref<16x16xf32, #tpu.memory_space<vmem>>, vector<16x1xf32>,
    %c0_7 = arith.constant 0 : index
    %c0_8 = arith.constant 0 : index
    %c16 = arith.constant 16 : index
    %7 = vector.load %arg1[%c0_7, %c0_8, %c16] : memref<1x16x256xf32, #tpu.memory_space<vmem>>, vector<1x16x16xf32>
    %8 = vector.shape_cast %7 : vector<1x16x16xf32> to vector<16x16xf32>
    %9 = arith.maximumf %3, %8 : vector<16x16xf32>
    %cst_9 = arith.constant dense<0xFF800000> : vector<16xf32>
    %10 = vector.multi_reduction <maximumf>, %8, %cst_9 [1] : vector<16x16xf32> to vector<16xf32>
    %11 = vector.shape_cast %10 : vector<16xf32> to vector<16x1xf32>
    %c0_10 = arith.constant 0 : index
    %c1 = arith.constant 1 : index
    %12 = vector.load %arg12[%c0_10, %c1] : memref<16x16xf32, #tpu.memory_space<vmem>>, vector<16x1xf32>
    tpu.vector_store %arg12[%c0_10, %c1], %11 {strides = array<i32>} : memref<16x16xf32, #tpu.memory_space<vmem>>, vector<16x1xf32>,
    %c0_11 = arith.constant 0 : index
    %c0_12 = arith.constant 0 : index
    %c32 = arith.constant 32 : index
    %13 = vector.load %arg1[%c0_11, %c0_12, %c32] : memref<1x16x256xf32, #tpu.memory_space<vmem>>, vector<1x16x16xf32>
    %14 = vector.shape_cast %13 : vector<1x16x16xf32> to vector<16x16xf32>
    %15 = arith.maximumf %9, %14 : vector<16x16xf32>
    %cst_13 = arith.constant dense<0xFF800000> : vector<16xf32>
    %16 = vector.multi_reduction <maximumf>, %14, %cst_13 [1] : vector<16x16xf32> to vector<16xf32>
    %17 = vector.shape_cast %16 : vector<16xf32> to vector<16x1xf32>
    %c0_14 = arith.constant 0 : index
    %c2 = arith.constant 2 : index
    %18 = vector.load %arg12[%c0_14, %c2] : memref<16x16xf32, #tpu.memory_space<vmem>>, vector<16x1xf32>
    tpu.vector_store %arg12[%c0_14, %c2], %17 {strides = array<i32>} : memref<16x16xf32, #tpu.memory_space<vmem>>, vector<16x1xf32>,
    %c0_15 = arith.constant 0 : index
    %c0_16 = arith.constant 0 : index
    %c48 = arith.constant 48 : index
    %19 = vector.load %arg1[%c0_15, %c0_16, %c48] : memref<1x16x256xf32, #tpu.memory_space<vmem>>, vector<1x16x16xf32>
    %20 = vector.shape_cast %19 : vector<1x16x16xf32> to vector<16x16xf32>
    %21 = arith.maximumf %15, %20 : vector<16x16xf32>
    %cst_17 = arith.constant dense<0xFF800000> : vector<16xf32>
    %22 = vector.multi_reduction <maximumf>, %20, %cst_17 [1] : vector<16x16xf32> to vector<16xf32>
    %23 = vector.shape_cast %22 : vector<16xf32> to vector<16x1xf32>
    %c0_18 = arith.constant 0 : index
    %c3 = arith.constant 3 : index
    %24 = vector.load %arg12[%c0_18, %c3] : memref<16x16xf32, #tpu.memory_space<vmem>>, vector<16x1xf32>
    tpu.vector_store %arg12[%c0_18, %c3], %23 {strides = array<i32>} : memref<16x16xf32, #tpu.memory_space<vmem>>, vector<16x1xf32>,
    %c0_19 = arith.constant 0 : index
    %c0_20 = arith.constant 0 : index
    %c64 = arith.constant 64 : index
    %25 = vector.load %arg1[%c0_19, %c0_20, %c64] : memref<1x16x256xf32, #tpu.memory_space<vmem>>, vector<1x16x16xf32>
    %26 = vector.shape_cast %25 : vector<1x16x16xf32> to vector<16x16xf32>
    %27 = arith.maximumf %21, %26 : vector<16x16xf32>
    %cst_21 = arith.constant dense<0xFF800000> : vector<16xf32>
    %28 = vector.multi_reduction <maximumf>, %26, %cst_21 [1] : vector<16x16xf32> to vector<16xf32>
    %29 = vector.shape_cast %28 : vector<16xf32> to vector<16x1xf32>
    %c0_22 = arith.constant 0 : index
    %c4 = arith.constant 4 : index
    %30 = vector.load %arg12[%c0_22, %c4] : memref<16x16xf32, #tpu.memory_space<vmem>>, vector<16x1xf32>
    tpu.vector_store %arg12[%c0_22, %c4], %29 {strides = array<i32>} : memref<16x16xf32, #tpu.memory_space<vmem>>, vector<16x1xf32>,
    %c0_23 = arith.constant 0 : index
    %c0_24 = arith.constant 0 : index
    %c80 = arith.constant 80 : index
    %31 = vector.load %arg1[%c0_23, %c0_24, %c80] : memref<1x16x256xf32, #tpu.memory_space<vmem>>, vector<1x16x16xf32>
    %32 = vector.shape_cast %31 : vector<1x16x16xf32> to vector<16x16xf32>
    %33 = arith.maximumf %27, %32 : vector<16x16xf32>
    %cst_25 = arith.constant dense<0xFF800000> : vector<16xf32>
    %34 = vector.multi_reduction <maximumf>, %32, %cst_25 [1] : vector<16x16xf32> to vector<16xf32>
    %35 = vector.shape_cast %34 : vector<16xf32> to vector<16x1xf32>
    %c0_26 = arith.constant 0 : index
    %c5 = arith.constant 5 : index
    %36 = vector.load %arg12[%c0_26, %c5] : memref<16x16xf32, #tpu.memory_space<vmem>>, vector<16x1xf32>
    tpu.vector_store %arg12[%c0_26, %c5], %35 {strides = array<i32>} : memref<16x16xf32, #tpu.memory_space<vmem>>, vector<16x1xf32>,
    %c0_27 = arith.constant 0 : index
    %c0_28 = arith.constant 0 : index
    %c96 = arith.constant 96 : index
    %37 = vector.load %arg1[%c0_27, %c0_28, %c96] : memref<1x16x256xf32, #tpu.memory_space<vmem>>, vector<1x16x16xf32>
    %38 = vector.shape_cast %37 : vector<1x16x16xf32> to vector<16x16xf32>
    %39 = arith.maximumf %33, %38 : vector<16x16xf32>
    %cst_29 = arith.constant dense<0xFF800000> : vector<16xf32>
    %40 = vector.multi_reduction <maximumf>, %38, %cst_29 [1] : vector<16x16xf32> to vector<16xf32>
    %41 = vector.shape_cast %40 : vector<16xf32> to vector<16x1xf32>
    %c0_30 = arith.constant 0 : index
    %c6 = arith.constant 6 : index
    %42 = vector.load %arg12[%c0_30, %c6] : memref<16x16xf32, #tpu.memory_space<vmem>>, vector<16x1xf32>
    tpu.vector_store %arg12[%c0_30, %c6], %41 {strides = array<i32>} : memref<16x16xf32, #tpu.memory_space<vmem>>, vector<16x1xf32>,
    %c0_31 = arith.constant 0 : index
    %c0_32 = arith.constant 0 : index
    %c112 = arith.constant 112 : index
    %43 = vector.load %arg1[%c0_31, %c0_32, %c112] : memref<1x16x256xf32, #tpu.memory_space<vmem>>, vector<1x16x16xf32>
    %44 = vector.shape_cast %43 : vector<1x16x16xf32> to vector<16x16xf32>
    %45 = arith.maximumf %39, %44 : vector<16x16xf32>
    %cst_33 = arith.constant dense<0xFF800000> : vector<16xf32>
    %46 = vector.multi_reduction <maximumf>, %44, %cst_33 [1] : vector<16x16xf32> to vector<16xf32>
    %47 = vector.shape_cast %46 : vector<16xf32> to vector<16x1xf32>
    %c0_34 = arith.constant 0 : index
    %c7 = arith.constant 7 : index
    %48 = vector.load %arg12[%c0_34, %c7] : memref<16x16xf32, #tpu.memory_space<vmem>>, vector<16x1xf32>
    tpu.vector_store %arg12[%c0_34, %c7], %47 {strides = array<i32>} : memref<16x16xf32, #tpu.memory_space<vmem>>, vector<16x1xf32>,
    %c0_35 = arith.constant 0 : index
    %c0_36 = arith.constant 0 : index
    %c128 = arith.constant 128 : index
    %49 = vector.load %arg1[%c0_35, %c0_36, %c128] : memref<1x16x256xf32, #tpu.memory_space<vmem>>, vector<1x16x16xf32>
    %50 = vector.shape_cast %49 : vector<1x16x16xf32> to vector<16x16xf32>
    %51 = arith.maximumf %45, %50 : vector<16x16xf32>
    %cst_37 = arith.constant dense<0xFF800000> : vector<16xf32>
    %52 = vector.multi_reduction <maximumf>, %50, %cst_37 [1] : vector<16x16xf32> to vector<16xf32>
    %53 = vector.shape_cast %52 : vector<16xf32> to vector<16x1xf32>
    %c0_38 = arith.constant 0 : index
    %c8 = arith.constant 8 : index
    %54 = vector.load %arg12[%c0_38, %c8] : memref<16x16xf32, #tpu.memory_space<vmem>>, vector<16x1xf32>
    tpu.vector_store %arg12[%c0_38, %c8], %53 {strides = array<i32>} : memref<16x16xf32, #tpu.memory_space<vmem>>, vector<16x1xf32>,
    %c0_39 = arith.constant 0 : index
    %c0_40 = arith.constant 0 : index
    %c144 = arith.constant 144 : index
    %55 = vector.load %arg1[%c0_39, %c0_40, %c144] : memref<1x16x256xf32, #tpu.memory_space<vmem>>, vector<1x16x16xf32>
    %56 = vector.shape_cast %55 : vector<1x16x16xf32> to vector<16x16xf32>
    %57 = arith.maximumf %51, %56 : vector<16x16xf32>
    %cst_41 = arith.constant dense<0xFF800000> : vector<16xf32>
    %58 = vector.multi_reduction <maximumf>, %56, %cst_41 [1] : vector<16x16xf32> to vector<16xf32>
    %59 = vector.shape_cast %58 : vector<16xf32> to vector<16x1xf32>
    %c0_42 = arith.constant 0 : index
    %c9 = arith.constant 9 : index
    %60 = vector.load %arg12[%c0_42, %c9] : memref<16x16xf32, #tpu.memory_space<vmem>>, vector<16x1xf32>
    tpu.vector_store %arg12[%c0_42, %c9], %59 {strides = array<i32>} : memref<16x16xf32, #tpu.memory_space<vmem>>, vector<16x1xf32>,
    %c0_43 = arith.constant 0 : index
    %c0_44 = arith.constant 0 : index
    %c160 = arith.constant 160 : index
    %61 = vector.load %arg1[%c0_43, %c0_44, %c160] : memref<1x16x256xf32, #tpu.memory_space<vmem>>, vector<1x16x16xf32>
    %62 = vector.shape_cast %61 : vector<1x16x16xf32> to vector<16x16xf32>
    %63 = arith.maximumf %57, %62 : vector<16x16xf32>
    %cst_45 = arith.constant dense<0xFF800000> : vector<16xf32>
    %64 = vector.multi_reduction <maximumf>, %62, %cst_45 [1] : vector<16x16xf32> to vector<16xf32>
    %65 = vector.shape_cast %64 : vector<16xf32> to vector<16x1xf32>
    %c0_46 = arith.constant 0 : index
    %c10 = arith.constant 10 : index
    %66 = vector.load %arg12[%c0_46, %c10] : memref<16x16xf32, #tpu.memory_space<vmem>>, vector<16x1xf32>
    tpu.vector_store %arg12[%c0_46, %c10], %65 {strides = array<i32>} : memref<16x16xf32, #tpu.memory_space<vmem>>, vector<16x1xf32>,
    %c0_47 = arith.constant 0 : index
    %c0_48 = arith.constant 0 : index
    %c176 = arith.constant 176 : index
    %67 = vector.load %arg1[%c0_47, %c0_48, %c176] : memref<1x16x256xf32, #tpu.memory_space<vmem>>, vector<1x16x16xf32>
    %68 = vector.shape_cast %67 : vector<1x16x16xf32> to vector<16x16xf32>
    %69 = arith.maximumf %63, %68 : vector<16x16xf32>
    %cst_49 = arith.constant dense<0xFF800000> : vector<16xf32>
    %70 = vector.multi_reduction <maximumf>, %68, %cst_49 [1] : vector<16x16xf32> to vector<16xf32>
    %71 = vector.shape_cast %70 : vector<16xf32> to vector<16x1xf32>
    %c0_50 = arith.constant 0 : index
    %c11 = arith.constant 11 : index
    %72 = vector.load %arg12[%c0_50, %c11] : memref<16x16xf32, #tpu.memory_space<vmem>>, vector<16x1xf32>
    tpu.vector_store %arg12[%c0_50, %c11], %71 {strides = array<i32>} : memref<16x16xf32, #tpu.memory_space<vmem>>, vector<16x1xf32>,
    %c0_51 = arith.constant 0 : index
    %c0_52 = arith.constant 0 : index
    %c192 = arith.constant 192 : index
    %73 = vector.load %arg1[%c0_51, %c0_52, %c192] : memref<1x16x256xf32, #tpu.memory_space<vmem>>, vector<1x16x16xf32>
    %74 = vector.shape_cast %73 : vector<1x16x16xf32> to vector<16x16xf32>
    %75 = arith.maximumf %69, %74 : vector<16x16xf32>
    %cst_53 = arith.constant dense<0xFF800000> : vector<16xf32>
    %76 = vector.multi_reduction <maximumf>, %74, %cst_53 [1] : vector<16x16xf32> to vector<16xf32>
    %77 = vector.shape_cast %76 : vector<16xf32> to vector<16x1xf32>
    %c0_54 = arith.constant 0 : index
    %c12 = arith.constant 12 : index
    %78 = vector.load %arg12[%c0_54, %c12] : memref<16x16xf32, #tpu.memory_space<vmem>>, vector<16x1xf32>
    tpu.vector_store %arg12[%c0_54, %c12], %77 {strides = array<i32>} : memref<16x16xf32, #tpu.memory_space<vmem>>, vector<16x1xf32>,
    %c0_55 = arith.constant 0 : index
    %c0_56 = arith.constant 0 : index
    %c208 = arith.constant 208 : index
    %79 = vector.load %arg1[%c0_55, %c0_56, %c208] : memref<1x16x256xf32, #tpu.memory_space<vmem>>, vector<1x16x16xf32>
    %80 = vector.shape_cast %79 : vector<1x16x16xf32> to vector<16x16xf32>
    %81 = arith.maximumf %75, %80 : vector<16x16xf32>
    %cst_57 = arith.constant dense<0xFF800000> : vector<16xf32>
    %82 = vector.multi_reduction <maximumf>, %80, %cst_57 [1] : vector<16x16xf32> to vector<16xf32>
    %83 = vector.shape_cast %82 : vector<16xf32> to vector<16x1xf32>
    %c0_58 = arith.constant 0 : index
    %c13 = arith.constant 13 : index
    %84 = vector.load %arg12[%c0_58, %c13] : memref<16x16xf32, #tpu.memory_space<vmem>>, vector<16x1xf32>
    tpu.vector_store %arg12[%c0_58, %c13], %83 {strides = array<i32>} : memref<16x16xf32, #tpu.memory_space<vmem>>, vector<16x1xf32>,
    %c0_59 = arith.constant 0 : index
    %c0_60 = arith.constant 0 : index
    %c224 = arith.constant 224 : index
    %85 = vector.load %arg1[%c0_59, %c0_60, %c224] : memref<1x16x256xf32, #tpu.memory_space<vmem>>, vector<1x16x16xf32>
    %86 = vector.shape_cast %85 : vector<1x16x16xf32> to vector<16x16xf32>
    %87 = arith.maximumf %81, %86 : vector<16x16xf32>
    %cst_61 = arith.constant dense<0xFF800000> : vector<16xf32>
    %88 = vector.multi_reduction <maximumf>, %86, %cst_61 [1] : vector<16x16xf32> to vector<16xf32>
    %89 = vector.shape_cast %88 : vector<16xf32> to vector<16x1xf32>
    %c0_62 = arith.constant 0 : index
    %c14 = arith.constant 14 : index
    %90 = vector.load %arg12[%c0_62, %c14] : memref<16x16xf32, #tpu.memory_space<vmem>>, vector<16x1xf32>
    tpu.vector_store %arg12[%c0_62, %c14], %89 {strides = array<i32>} : memref<16x16xf32, #tpu.memory_space<vmem>>, vector<16x1xf32>,
    %c0_63 = arith.constant 0 : index
    %c0_64 = arith.constant 0 : index
    %c240 = arith.constant 240 : index
    %91 = vector.load %arg1[%c0_63, %c0_64, %c240] : memref<1x16x256xf32, #tpu.memory_space<vmem>>, vector<1x16x16xf32>
    %92 = vector.shape_cast %91 : vector<1x16x16xf32> to vector<16x16xf32>
    %93 = arith.maximumf %87, %92 : vector<16x16xf32>
    %cst_65 = arith.constant dense<0xFF800000> : vector<16xf32>
    %94 = vector.multi_reduction <maximumf>, %92, %cst_65 [1] : vector<16x16xf32> to vector<16xf32>
    %95 = vector.shape_cast %94 : vector<16xf32> to vector<16x1xf32>
    %c0_66 = arith.constant 0 : index
    %c15 = arith.constant 15 : index
    %96 = vector.load %arg12[%c0_66, %c15] : memref<16x16xf32, #tpu.memory_space<vmem>>, vector<16x1xf32>
    tpu.vector_store %arg12[%c0_66, %c15], %95 {strides = array<i32>} : memref<16x16xf32, #tpu.memory_space<vmem>>, vector<16x1xf32>,
    %c0_67 = arith.constant 0 : index
    %c0_68 = arith.constant 0 : index
    %97 = vector.load %arg12[%c0_67, %c0_68] : memref<16x16xf32, #tpu.memory_space<vmem>>, vector<16x16xf32>
    %c0_69 = arith.constant 0 : index
    %c0_70 = arith.constant 0 : index
    %98 = vector.load %arg2[%c0_69, %c0_70] : memref<256x16xf32, #tpu.memory_space<vmem>>, vector<256x16xf32>
    %cst_71 = arith.constant dense<0.000000e+00> : vector<16x16xf32>
    %99 = tpu.matmul %1, %98, %cst_71 {dimension_numbers = #tpu.dot_dimension_numbers<[1], [0], [0], [1], [0, 0, 1, 1], [], []>, precision = #tpu.contract_precision<fp32>} : vector<16x256xf32>, vector<256x16xf32>, vector<16x16xf32> -> vector<16x16xf32>
    %c0_72 = arith.constant 0 : index
    %c0_73 = arith.constant 0 : index
    %100 = vector.load %arg3[%c0_72, %c0_73] : memref<256x16xf32, #tpu.memory_space<vmem>>, vector<256x16xf32>
    %cst_74 = arith.constant dense<0.000000e+00> : vector<16x16xf32>
    %101 = tpu.matmul %1, %100, %cst_74 {dimension_numbers = #tpu.dot_dimension_numbers<[1], [0], [0], [1], [0, 0, 1, 1], [], []>, precision = #tpu.contract_precision<fp32>} : vector<16x256xf32>, vector<256x16xf32>, vector<16x16xf32> -> vector<16x16xf32>
    %102 = arith.addf %99, %97 : vector<16x16xf32>
    %103 = arith.addf %101, %93 : vector<16x16xf32>
    %104 = tpu.concatenate %102, %103 in 1 : vector<16x16xf32>, vector<16x16xf32> -> vector<16x32xf32>
    %c0_75 = arith.constant 0 : index
    %c0_76 = arith.constant 0 : index
    %105 = vector.load %arg6[%c0_75, %c0_76] : memref<4x16xf32, #tpu.memory_space<vmem>>, vector<4x16xf32>
    %cst_77 = arith.constant dense<0.000000e+00> : vector<4x32xf32>
    %106 = tpu.matmul %105, %104, %cst_77 {dimension_numbers = #tpu.dot_dimension_numbers<[1], [0], [0], [1], [0, 0, 1, 1], [], []>, precision = #tpu.contract_precision<fp32>} : vector<4x16xf32>, vector<16x32xf32>, vector<4x32xf32> -> vector<4x32xf32>
    %c0_78 = arith.constant 0 : index
    %c0_79 = arith.constant 0 : index
    %107 = vector.load %arg7[%c0_78, %c0_79] : memref<4x1xf32, #tpu.memory_space<vmem>>, vector<4x1xf32>
    %108 = vector.broadcast %107 : vector<4x1xf32> to vector<4x32xf32>
    %109 = arith.addf %106, %108 : vector<4x32xf32>
    %cst_80 = arith.constant 0.000000e+00 : f32
    %cst_81 = arith.constant 6.000000e+00 : f32
    %110 = vector.broadcast %cst_80 : f32 to vector<4x32xf32>
    %111 = arith.maximumf %110, %109 : vector<4x32xf32>
    %112 = vector.broadcast %cst_81 : f32 to vector<4x32xf32>
    %113 = arith.minimumf %112, %111 : vector<4x32xf32>
    %114 = vector.extract_strided_slice %113 {offsets = [0, 0], sizes = [4, 16], strides = [1, 1]} : vector<4x32xf32> to vector<4x16xf32>
    %115 = vector.extract_strided_slice %113 {offsets = [0, 16], sizes = [4, 16], strides = [1, 1]} : vector<4x32xf32> to vector<4x16xf32>
    %cst_82 = arith.constant 0.000000e+00 : f32
    %116 = vector.broadcast %cst_82 : f32 to vector<4x1xf32>
    %117 = vector.extract_strided_slice %114 {offsets = [0, 0], sizes = [4, 15], strides = [1, 1]} : vector<4x16xf32> to vector<4x15xf32>
    %118 = tpu.concatenate %116, %117 in 1 : vector<4x1xf32>, vector<4x15xf32> -> vector<4x16xf32>
    %119 = vector.extract_strided_slice %114 {offsets = [0, 1], sizes = [4, 15], strides = [1, 1]} : vector<4x16xf32> to vector<4x15xf32>
    %120 = tpu.concatenate %119, %116 in 1 : vector<4x15xf32>, vector<4x1xf32> -> vector<4x16xf32>
    %121 = vector.extract_strided_slice %115 {offsets = [0, 0], sizes = [4, 15], strides = [1, 1]} : vector<4x16xf32> to vector<4x15xf32>
    %122 = tpu.concatenate %116, %121 in 1 : vector<4x1xf32>, vector<4x15xf32> -> vector<4x16xf32>
    %123 = vector.extract_strided_slice %115 {offsets = [0, 1], sizes = [4, 15], strides = [1, 1]} : vector<4x16xf32> to vector<4x15xf32>
    %124 = tpu.concatenate %123, %116 in 1 : vector<4x15xf32>, vector<4x1xf32> -> vector<4x16xf32>
    %125 = tpu.concatenate %118, %114, %120 in 0 : vector<4x16xf32>, vector<4x16xf32>, vector<4x16xf32> -> vector<12x16xf32>
    %126 = tpu.concatenate %122, %115, %124 in 0 : vector<4x16xf32>, vector<4x16xf32>, vector<4x16xf32> -> vector<12x16xf32>
    %c0_83 = arith.constant 0 : index
    %c0_84 = arith.constant 0 : index
    %127 = vector.load %arg8[%c0_83, %c0_84] : memref<16x12xf32, #tpu.memory_space<vmem>>, vector<16x12xf32>
    %cst_85 = arith.constant dense<0.000000e+00> : vector<16x16xf32>
    %128 = tpu.matmul %127, %125, %cst_85 {dimension_numbers = #tpu.dot_dimension_numbers<[1], [0], [0], [1], [0, 0, 1, 1], [], []>, precision = #tpu.contract_precision<fp32>} : vector<16x12xf32>, vector<12x16xf32>, vector<16x16xf32> -> vector<16x16xf32>
    %c0_86 = arith.constant 0 : index
    %c0_87 = arith.constant 0 : index
    %129 = vector.load %arg10[%c0_86, %c0_87] : memref<16x1xf32, #tpu.memory_space<vmem>>, vector<16x1xf32>
    %130 = vector.broadcast %129 : vector<16x1xf32> to vector<16x16xf32>
    %131 = arith.addf %128, %130 : vector<16x16xf32>
    %c0_88 = arith.constant 0 : index
    %c0_89 = arith.constant 0 : index
    %132 = vector.load %arg9[%c0_88, %c0_89] : memref<16x12xf32, #tpu.memory_space<vmem>>, vector<16x12xf32>
    %cst_90 = arith.constant dense<0.000000e+00> : vector<16x16xf32>
    %133 = tpu.matmul %132, %126, %cst_90 {dimension_numbers = #tpu.dot_dimension_numbers<[1], [0], [0], [1], [0, 0, 1, 1], [], []>, precision = #tpu.contract_precision<fp32>} : vector<16x12xf32>, vector<12x16xf32>, vector<16x16xf32> -> vector<16x16xf32>
    %c0_91 = arith.constant 0 : index
    %c0_92 = arith.constant 0 : index
    %134 = vector.load %arg10[%c0_91, %c0_92] : memref<16x1xf32, #tpu.memory_space<vmem>>, vector<16x1xf32>
    %135 = vector.broadcast %134 : vector<16x1xf32> to vector<16x16xf32>
    %136 = arith.addf %133, %135 : vector<16x16xf32>
    %c0_93 = arith.constant 0 : index
    %c0_94 = arith.constant 0 : index
    %137 = vector.load %arg4[%c0_93, %c0_94] : memref<16x256xf32, #tpu.memory_space<vmem>>, vector<16x256xf32>
    %cst_95 = arith.constant dense<0.000000e+00> : vector<16x256xf32>
    %138 = tpu.matmul %131, %137, %cst_95 {dimension_numbers = #tpu.dot_dimension_numbers<[1], [0], [0], [1], [0, 0, 1, 1], [], []>, precision = #tpu.contract_precision<fp32>} : vector<16x16xf32>, vector<16x256xf32>, vector<16x256xf32> -> vector<16x256xf32>
    %c0_96 = arith.constant 0 : index
    %c0_97 = arith.constant 0 : index
    %139 = vector.load %arg5[%c0_96, %c0_97] : memref<16x256xf32, #tpu.memory_space<vmem>>, vector<16x256xf32>
    %cst_98 = arith.constant dense<0.000000e+00> : vector<16x256xf32>
    %140 = tpu.matmul %136, %139, %cst_98 {dimension_numbers = #tpu.dot_dimension_numbers<[1], [0], [0], [1], [0, 0, 1, 1], [], []>, precision = #tpu.contract_precision<fp32>} : vector<16x16xf32>, vector<16x256xf32>, vector<16x256xf32> -> vector<16x256xf32>
    %141 = arith.mulf %138, %140 : vector<16x256xf32>
    %142 = arith.negf %141 : vector<16x256xf32>
    %143 = math.exp %142 : vector<16x256xf32>
    %cst_99 = arith.constant 1.000000e+00 : f32
    %144 = vector.broadcast %cst_99 : f32 to vector<16x256xf32>
    %145 = arith.addf %144, %143 : vector<16x256xf32>
    %146 = arith.divf %144, %145 : vector<16x256xf32>
    %147 = arith.mulf %146, %1 : vector<16x256xf32>
    %c0_100 = arith.constant 0 : index
    %c0_101 = arith.constant 0 : index
    %c0_102 = arith.constant 0 : index
    %148 = vector.load %arg11[%c0_100, %c0_101, %c0_102] : memref<1x16x256xf32, #tpu.memory_space<vmem>>, vector<1x16x256xf32>
    %149 = vector.shape_cast %148 : vector<1x16x256xf32> to vector<16x256xf32>
    %150 = vector.shape_cast %147 : vector<16x256xf32> to vector<1x16x256xf32>
    tpu.vector_store %arg11[%c0_100, %c0_101, %c0_102], %150 {strides = array<i32>} : memref<1x16x256xf32, #tpu.memory_space<vmem>>, vector<1x16x256xf32>,
    return
  }
  func.func @transform_0(%arg0: i32) -> (i32, i32, i32) {
    %c0_i32 = arith.constant 0 : i32
    %c0_i32_0 = arith.constant 0 : i32
    %c0_i32_1 = arith.constant 0 : i32
    return %arg0, %c0_i32, %c0_i32_0 : i32, i32, i32
  }
  func.func @transform_1(%arg0: i32) -> (i32, i32) {
    %c0_i32 = arith.constant 0 : i32
    %c0_i32_0 = arith.constant 0 : i32
    %c0_i32_1 = arith.constant 0 : i32
    return %c0_i32, %c0_i32_0 : i32, i32
  }
  func.func @transform_2(%arg0: i32) -> (i32, i32) {
    %c0_i32 = arith.constant 0 : i32
    %c0_i32_0 = arith.constant 0 : i32
    %c0_i32_1 = arith.constant 0 : i32
    return %c0_i32, %c0_i32_0 : i32, i32
  }
  func.func @transform_3(%arg0: i32) -> (i32, i32) {
    %c0_i32 = arith.constant 0 : i32
    %c0_i32_0 = arith.constant 0 : i32
    %c0_i32_1 = arith.constant 0 : i32
    return %c0_i32, %c0_i32_0 : i32, i32
  }
  func.func @transform_4(%arg0: i32) -> (i32, i32) {
    %c0_i32 = arith.constant 0 : i32
    %c0_i32_0 = arith.constant 0 : i32
    %c0_i32_1 = arith.constant 0 : i32
    return %c0_i32, %c0_i32_0 : i32, i32
  }
  func.func @transform_5(%arg0: i32) -> (i32, i32) {
    %c0_i32 = arith.constant 0 : i32
    %c0_i32_0 = arith.constant 0 : i32
    %c0_i32_1 = arith.constant 0 : i32
    return %c0_i32, %c0_i32_0 : i32, i32
  }
  func.func @transform_6(%arg0: i32) -> (i32, i32) {
    %c0_i32 = arith.constant 0 : i32
    %c0_i32_0 = arith.constant 0 : i32
    %c0_i32_1 = arith.constant 0 : i32
    return %c0_i32, %c0_i32_0 : i32, i32
  }
  func.func @transform_7(%arg0: i32) -> (i32, i32) {
    %c0_i32 = arith.constant 0 : i32
    %c0_i32_0 = arith.constant 0 : i32
    %c0_i32_1 = arith.constant 0 : i32
    return %c0_i32, %c0_i32_0 : i32, i32
  }
  func.func @transform_8(%arg0: i32) -> (i32, i32) {
    %c0_i32 = arith.constant 0 : i32
    %c0_i32_0 = arith.constant 0 : i32
    %c0_i32_1 = arith.constant 0 : i32
    return %c0_i32, %c0_i32_0 : i32, i32
  }
  func.func @transform_9(%arg0: i32) -> (i32, i32) {
    %c0_i32 = arith.constant 0 : i32
    %c0_i32_0 = arith.constant 0 : i32
    %c0_i32_1 = arith.constant 0 : i32
    return %c0_i32, %c0_i32_0 : i32, i32
  }
  func.func @transform_10(%arg0: i32) -> (i32, i32, i32) {
    %c0_i32 = arith.constant 0 : i32
    %c0_i32_0 = arith.constant 0 : i32
    %c0_i32_1 = arith.constant 0 : i32
    return %arg0, %c0_i32, %c0_i32_0 : i32, i32, i32
  }
}

</mosaic_0001>

<llo_original>
// kernel: sha_layer_pallas.1
$region0: #{sha_layer_pallas.1}
  #allocation0 [shape = 'u32[]', space=smem, size = 0x4, offset = 0x4, fixed_abs, tag = 'smem constant byte address 0x4 - core index']
  #allocation1 [shape = 'u32[72,128]{1,0:T(1,128)}', space=vmem, size = 0x9000, scoped, tag = 'internal scratch']
  #allocation2 [shape = 'f32[16,16]{1,0:T(8,128)}', space=vmem, size = 0x2000, scoped, tag = 'scratch operand']
  %s0 = inlined_call_operand.vmem [shape: f32[1,16,256], index: 0, kind: input, shape index: {}]
  %s1 = inlined_call_operand.vmem [shape: f32[256,16], index: 1, kind: input, shape index: {}]
  %s2 = inlined_call_operand.vmem [shape: f32[256,16], index: 2, kind: input, shape index: {}]
  %s3 = inlined_call_operand.vmem [shape: f32[16,256], index: 3, kind: input, shape index: {}]
  %s4 = inlined_call_operand.vmem [shape: f32[16,256], index: 4, kind: input, shape index: {}]
  %s5 = inlined_call_operand.vmem [shape: f32[4,16], index: 5, kind: input, shape index: {}]
  %s6 = inlined_call_operand.vmem [shape: f32[4,1], index: 6, kind: input, shape index: {}]
  %s7 = inlined_call_operand.vmem [shape: f32[16,12], index: 7, kind: input, shape index: {}]
  %s8 = inlined_call_operand.vmem [shape: f32[16,12], index: 8, kind: input, shape index: {}]
  %s9 = inlined_call_operand.vmem [shape: f32[16,1], index: 9, kind: input, shape index: {}]
  %s10 = inlined_call_operand.vmem [shape: f32[1,16,256], index: 10, kind: output, shape index: {}]
  %s11 = sld [smem:[#allocation0]]
  $region50: #{sha_layer_pallas.1} parent=0
    _
  %s13 = ssub.s32 1, %s11
  %s14 = scalar_select 0, %s13, %s11
  // Predicated region
  $region2: #{sha_layer_pallas.1} parent=0 // pred_check
    _
  $region3: #{sha_layer_pallas.1} parent=0 // pred_check_branch
    %16 = sbr.rel (0) target = $region5
  $region4: #{sha_layer_pallas.1} parent=0 // pred_region
    _
  $region5: #{sha_layer_pallas.1} parent=0 // pred_fallthru
    _
  // Predicated region
  $region6: #{sha_layer_pallas.1} parent=0 // pred_check
    _
  $region7: #{sha_layer_pallas.1} parent=0 // pred_check_branch
    %18 = sbr.rel (0) target = $region9
  $region8: #{sha_layer_pallas.1} parent=0 // pred_region
    _
  $region9: #{sha_layer_pallas.1} parent=0 // pred_fallthru
    _
  // Predicated region
  $region10: #{sha_layer_pallas.1} parent=0 // pred_check
    _
  $region11: #{sha_layer_pallas.1} parent=0 // pred_check_branch
    %20 = sbr.rel (0) target = $region13
  $region12: #{sha_layer_pallas.1} parent=0 // pred_region
    _
  $region13: #{sha_layer_pallas.1} parent=0 // pred_fallthru
    _
  // Predicated region
  $region14: #{sha_layer_pallas.1} parent=0 // pred_check
    _
  $region15: #{sha_layer_pallas.1} parent=0 // pred_check_branch
    %22 = sbr.rel (0) target = $region17
  $region16: #{sha_layer_pallas.1} parent=0 // pred_region
    _
  $region17: #{sha_layer_pallas.1} parent=0 // pred_fallthru
    _
  // Predicated region
  $region18: #{sha_layer_pallas.1} parent=0 // pred_check
    _
  $region19: #{sha_layer_pallas.1} parent=0 // pred_check_branch
    %24 = sbr.rel (0) target = $region21
  $region20: #{sha_layer_pallas.1} parent=0 // pred_region
    _
  $region21: #{sha_layer_pallas.1} parent=0 // pred_fallthru
    _
  // Predicated region
  $region22: #{sha_layer_pallas.1} parent=0 // pred_check
    _
  $region23: #{sha_layer_pallas.1} parent=0 // pred_check_branch
    %26 = sbr.rel (0) target = $region25
  $region24: #{sha_layer_pallas.1} parent=0 // pred_region
    _
  $region25: #{sha_layer_pallas.1} parent=0 // pred_fallthru
    _
  // Predicated region
  $region26: #{sha_layer_pallas.1} parent=0 // pred_check
    _
  $region27: #{sha_layer_pallas.1} parent=0 // pred_check_branch
    %28 = sbr.rel (0) target = $region29
  $region28: #{sha_layer_pallas.1} parent=0 // pred_region
    _
  $region29: #{sha_layer_pallas.1} parent=0 // pred_fallthru
    _
  // Predicated region
  $region30: #{sha_layer_pallas.1} parent=0 // pred_check
    _
  $region31: #{sha_layer_pallas.1} parent=0 // pred_check_branch
    %30 = sbr.rel (0) target = $region33
  $region32: #{sha_layer_pallas.1} parent=0 // pred_region
    _
  $region33: #{sha_layer_pallas.1} parent=0 // pred_fallthru
    _
  // Predicated region
  $region34: #{sha_layer_pallas.1} parent=0 // pred_check
    _
  $region35: #{sha_layer_pallas.1} parent=0 // pred_check_branch
    %32 = sbr.rel (0) target = $region37
  $region36: #{sha_layer_pallas.1} parent=0 // pred_region
    _
  $region37: #{sha_layer_pallas.1} parent=0 // pred_fallthru
    _
  // Predicated region
  $region38: #{sha_layer_pallas.1} parent=0 // pred_check
    _
  $region39: #{sha_layer_pallas.1} parent=0 // pred_check_branch
    %34 = sbr.rel (0) target = $region41
  $region40: #{sha_layer_pallas.1} parent=0 // pred_region
    _
  $region41: #{sha_layer_pallas.1} parent=0 // pred_fallthru
    _
  %v35 = vld [vmem:[%s0] sm:$0xff]
  %v36 = vld [vmem:[%s0 + $0x8] sm:$0xff]
  %v37 = vld [vmem:[%s0 + $0x10] sm:$0xff]
  %v38 = vld [vmem:[%s0 + $0x18] sm:$0xff]
  %v39 = vld [vmem:[%s0] sm:$0xff]
  %v40 = vld [vmem:[%s0 + $0x10] sm:$0xff]
  %vm41 = vcmask 130048
  %v42 = vsel %vm41, %v39, -inf
  %43 = vmax.xlane.f32.xlu0 %v42
  %v44 = vpop.xlane.xlu0 %43
  %v45 = vsel %vm41, %v40, -inf
  %46 = vmax.xlane.f32.xlu0 %v45
  %v47 = vpop.xlane.xlu0 %46
  %vm48 = vcmask 7168
  %49 = vst.msk [vmem:[#allocation2] sm:$0xff] %vm48, %v44
  %50 = vst.msk [vmem:[#allocation2 + $0x8] sm:$0xff] %vm48, %v47
  %v51 = vld [vmem:[%s0] sm:$0xff]
  %v52 = vld [vmem:[%s0 + $0x10] sm:$0xff]
  %55 = vrot.lane.b32.xlu0 %v51, 112
  %v56 = vpop.permute.xlu0 %55
  %57 = vrot.lane.b32.xlu0 %v52, 112
  %v58 = vpop.permute.xlu0 %57
  %v61 = vmax.f32 %v39, %v56
  %v62 = vmax.f32 %v40, %v58
  %vm63 = vcmask 261248
  %v64 = vsel %vm63, %v51, -inf
  %65 = vmax.xlane.f32.xlu0 %v64
  %v66 = vpop.xlane.xlu0 %65
  %v67 = vsel %vm63, %v52, -inf
  %68 = vmax.xlane.f32.xlu0 %v67
  %v69 = vpop.xlane.xlu0 %68
  %vm70 = vcmask 15368
  %71 = vst.msk [vmem:[#allocation2] sm:$0xff] %vm70, %v66
  %72 = vst.msk [vmem:[#allocation2 + $0x8] sm:$0xff] %vm70, %v69
  %v73 = vld [vmem:[%s0] sm:$0xff]
  %v74 = vld [vmem:[%s0 + $0x10] sm:$0xff]
  %77 = vrot.lane.b32.xlu0 %v73, 96
  %v78 = vpop.permute.xlu0 %77
  %79 = vrot.lane.b32.xlu0 %v74, 96
  %v80 = vpop.permute.xlu0 %79
  %v83 = vmax.f32 %v61, %v78
  %v84 = vmax.f32 %v62, %v80
  %vm85 = vcmask 392448
  %v86 = vsel %vm85, %v73, -inf
  %87 = vmax.xlane.f32.xlu0 %v86
  %v88 = vpop.xlane.xlu0 %87
  %v89 = vsel %vm85, %v74, -inf
  %90 = vmax.xlane.f32.xlu0 %v89
  %v91 = vpop.xlane.xlu0 %90
  %vm92 = vcmask 23568
  %93 = vst.msk [vmem:[#allocation2] sm:$0xff] %vm92, %v88
  %94 = vst.msk [vmem:[#allocation2 + $0x8] sm:$0xff] %vm92, %v91
  %v95 = vld [vmem:[%s0] sm:$0xff]
  %v96 = vld [vmem:[%s0 + $0x10] sm:$0xff]
  %99 = vrot.lane.b32.xlu0 %v95, 80
  %v100 = vpop.permute.xlu0 %99
  %101 = vrot.lane.b32.xlu0 %v96, 80
  %v102 = vpop.permute.xlu0 %101
  %v105 = vmax.f32 %v83, %v100
  %v106 = vmax.f32 %v84, %v102
  %vm107 = vcmask 523648
  %v108 = vsel %vm107, %v95, -inf
  %109 = vmax.xlane.f32.xlu0 %v108
  %v110 = vpop.xlane.xlu0 %109
  %v111 = vsel %vm107, %v96, -inf
  %112 = vmax.xlane.f32.xlu0 %v111
  %v113 = vpop.xlane.xlu0 %112
  %vm114 = vcmask 31768
  %115 = vst.msk [vmem:[#allocation2] sm:$0xff] %vm114, %v110
  %116 = vst.msk [vmem:[#allocation2 + $0x8] sm:$0xff] %vm114, %v113
  %v117 = vld [vmem:[%s0] sm:$0xff]
  %v118 = vld [vmem:[%s0 + $0x10] sm:$0xff]
  %121 = vrot.lane.b32.xlu0 %v117, 64
  %v122 = vpop.permute.xlu0 %121
  %123 = vrot.lane.b32.xlu0 %v118, 64
  %v124 = vpop.permute.xlu0 %123
  %v127 = vmax.f32 %v105, %v122
  %v128 = vmax.f32 %v106, %v124
  %vm129 = vcmask 654848
  %v130 = vsel %vm129, %v117, -inf
  %131 = vmax.xlane.f32.xlu0 %v130
  %v132 = vpop.xlane.xlu0 %131
  %v133 = vsel %vm129, %v118, -inf
  %134 = vmax.xlane.f32.xlu0 %v133
  %v135 = vpop.xlane.xlu0 %134
  %vm136 = vcmask 39968
  %137 = vst.msk [vmem:[#allocation2] sm:$0xff] %vm136, %v132
  %138 = vst.msk [vmem:[#allocation2 + $0x8] sm:$0xff] %vm136, %v135
  %v139 = vld [vmem:[%s0] sm:$0xff]
  %v140 = vld [vmem:[%s0 + $0x10] sm:$0xff]
  %143 = vrot.lane.b32.xlu0 %v139, 48
  %v144 = vpop.permute.xlu0 %143
  %145 = vrot.lane.b32.xlu0 %v140, 48
  %v146 = vpop.permute.xlu0 %145
  %v149 = vmax.f32 %v127, %v144
  %v150 = vmax.f32 %v128, %v146
  %vm151 = vcmask 786048
  %v152 = vsel %vm151, %v139, -inf
  %153 = vmax.xlane.f32.xlu0 %v152
  %v154 = vpop.xlane.xlu0 %153
  %v155 = vsel %vm151, %v140, -inf
  %156 = vmax.xlane.f32.xlu0 %v155
  %v157 = vpop.xlane.xlu0 %156
  %vm158 = vcmask 48168
  %159 = vst.msk [vmem:[#allocation2] sm:$0xff] %vm158, %v154
  %160 = vst.msk [vmem:[#allocation2 + $0x8] sm:$0xff] %vm158, %v157
  %v161 = vld [vmem:[%s0] sm:$0xff]
  %v162 = vld [vmem:[%s0 + $0x10] sm:$0xff]
  %165 = vrot.lane.b32.xlu0 %v161, 32
  %v166 = vpop.permute.xlu0 %165
  %167 = vrot.lane.b32.xlu0 %v162, 32
  %v168 = vpop.permute.xlu0 %167
  %v171 = vmax.f32 %v149, %v166
  %v172 = vmax.f32 %v150, %v168
  %vm173 = vcmask 917248
  %v174 = vsel %vm173, %v161, -inf
  %175 = vmax.xlane.f32.xlu0 %v174
  %v176 = vpop.xlane.xlu0 %175
  %v177 = vsel %vm173, %v162, -inf
  %178 = vmax.xlane.f32.xlu0 %v177
  %v179 = vpop.xlane.xlu0 %178
  %vm180 = vcmask 56368
  %181 = vst.msk [vmem:[#allocation2] sm:$0xff] %vm180, %v176
  %182 = vst.msk [vmem:[#allocation2 + $0x8] sm:$0xff] %vm180, %v179
  %v183 = vld [vmem:[%s0] sm:$0xff]
  %v184 = vld [vmem:[%s0 + $0x10] sm:$0xff]
  %187 = vrot.lane.b32.xlu0 %v183, 16
  %v188 = vpop.permute.xlu0 %187
  %189 = vrot.lane.b32.xlu0 %v184, 16
  %v190 = vpop.permute.xlu0 %189
  %v193 = vmax.f32 %v171, %v188
  %v194 = vmax.f32 %v172, %v190
  %vm195 = vcmask 1048448
  %v196 = vsel %vm195, %v183, -inf
  %197 = vmax.xlane.f32.xlu0 %v196
  %v198 = vpop.xlane.xlu0 %197
  %v199 = vsel %vm195, %v184, -inf
  %200 = vmax.xlane.f32.xlu0 %v199
  %v201 = vpop.xlane.xlu0 %200
  %vm202 = vcmask 64568
  %203 = vst.msk [vmem:[#allocation2] sm:$0xff] %vm202, %v198
  %204 = vst.msk [vmem:[#allocation2 + $0x8] sm:$0xff] %vm202, %v201
  %v205 = vld [vmem:[%s0 + $0x8] sm:$0xff]
  %v206 = vld [vmem:[%s0 + $0x18] sm:$0xff]
  %v207 = vmax.f32 %v193, %v205
  %v208 = vmax.f32 %v194, %v206
  %v209 = vsel %vm41, %v205, -inf
  %210 = vmax.xlane.f32.xlu0 %v209
  %v211 = vpop.xlane.xlu0 %210
  %v212 = vsel %vm41, %v206, -inf
  %213 = vmax.xlane.f32.xlu0 %v212
  %v214 = vpop.xlane.xlu0 %213
  %vm215 = vcmask 72768
  %216 = vst.msk [vmem:[#allocation2] sm:$0xff] %vm215, %v211
  %217 = vst.msk [vmem:[#allocation2 + $0x8] sm:$0xff] %vm215, %v214
  %v218 = vld [vmem:[%s0 + $0x8] sm:$0xff]
  %v219 = vld [vmem:[%s0 + $0x18] sm:$0xff]
  %222 = vrot.lane.b32.xlu0 %v218, 112
  %v223 = vpop.permute.xlu0 %222
  %224 = vrot.lane.b32.xlu0 %v219, 112
  %v225 = vpop.permute.xlu0 %224
  %v228 = vmax.f32 %v207, %v223
  %v229 = vmax.f32 %v208, %v225
  %v230 = vsel %vm63, %v218, -inf
  %231 = vmax.xlane.f32.xlu0 %v230
  %v232 = vpop.xlane.xlu0 %231
  %v233 = vsel %vm63, %v219, -inf
  %234 = vmax.xlane.f32.xlu0 %v233
  %v235 = vpop.xlane.xlu0 %234
  %vm236 = vcmask 80968
  %237 = vst.msk [vmem:[#allocation2] sm:$0xff] %vm236, %v232
  %238 = vst.msk [vmem:[#allocation2 + $0x8] sm:$0xff] %vm236, %v235
  %v239 = vld [vmem:[%s0 + $0x8] sm:$0xff]
  %v240 = vld [vmem:[%s0 + $0x18] sm:$0xff]
  %243 = vrot.lane.b32.xlu0 %v239, 96
  %v244 = vpop.permute.xlu0 %243
  %245 = vrot.lane.b32.xlu0 %v240, 96
  %v246 = vpop.permute.xlu0 %245
  %v249 = vmax.f32 %v228, %v244
  %v250 = vmax.f32 %v229, %v246
  %v251 = vsel %vm85, %v239, -inf
  %252 = vmax.xlane.f32.xlu0 %v251
  %v253 = vpop.xlane.xlu0 %252
  %v254 = vsel %vm85, %v240, -inf
  %255 = vmax.xlane.f32.xlu0 %v254
  %v256 = vpop.xlane.xlu0 %255
  %vm257 = vcmask 89168
  %258 = vst.msk [vmem:[#allocation2] sm:$0xff] %vm257, %v253
  %259 = vst.msk [vmem:[#allocation2 + $0x8] sm:$0xff] %vm257, %v256
  %v260 = vld [vmem:[%s0 + $0x8] sm:$0xff]
  %v261 = vld [vmem:[%s0 + $0x18] sm:$0xff]
  %264 = vrot.lane.b32.xlu0 %v260, 80
  %v265 = vpop.permute.xlu0 %264
  %266 = vrot.lane.b32.xlu0 %v261, 80
  %v267 = vpop.permute.xlu0 %266
  %v270 = vmax.f32 %v249, %v265
  %v271 = vmax.f32 %v250, %v267
  %v272 = vsel %vm107, %v260, -inf
  %273 = vmax.xlane.f32.xlu0 %v272
  %v274 = vpop.xlane.xlu0 %273
  %v275 = vsel %vm107, %v261, -inf
  %276 = vmax.xlane.f32.xlu0 %v275
  %v277 = vpop.xlane.xlu0 %276
  %vm278 = vcmask 97368
  %279 = vst.msk [vmem:[#allocation2] sm:$0xff] %vm278, %v274
  %280 = vst.msk [vmem:[#allocation2 + $0x8] sm:$0xff] %vm278, %v277
  %v281 = vld [vmem:[%s0 + $0x8] sm:$0xff]
  %v282 = vld [vmem:[%s0 + $0x18] sm:$0xff]
  %285 = vrot.lane.b32.xlu0 %v281, 64
  %v286 = vpop.permute.xlu0 %285
  %287 = vrot.lane.b32.xlu0 %v282, 64
  %v288 = vpop.permute.xlu0 %287
  %v291 = vmax.f32 %v270, %v286
  %v292 = vmax.f32 %v271, %v288
  %v293 = vsel %vm129, %v281, -inf
  %294 = vmax.xlane.f32.xlu0 %v293
  %v295 = vpop.xlane.xlu0 %294
  %v296 = vsel %vm129, %v282, -inf
  %297 = vmax.xlane.f32.xlu0 %v296
  %v298 = vpop.xlane.xlu0 %297
  %vm299 = vcmask 105568
  %300 = vst.msk [vmem:[#allocation2] sm:$0xff] %vm299, %v295
  %301 = vst.msk [vmem:[#allocation2 + $0x8] sm:$0xff] %vm299, %v298
  %v302 = vld [vmem:[%s0 + $0x8] sm:$0xff]
  %v303 = vld [vmem:[%s0 + $0x18] sm:$0xff]
  %306 = vrot.lane.b32.xlu0 %v302, 48
  %v307 = vpop.permute.xlu0 %306
  %308 = vrot.lane.b32.xlu0 %v303, 48
  %v309 = vpop.permute.xlu0 %308
  %v312 = vmax.f32 %v291, %v307
  %v313 = vmax.f32 %v292, %v309
  %v314 = vsel %vm151, %v302, -inf
  %315 = vmax.xlane.f32.xlu0 %v314
  %v316 = vpop.xlane.xlu0 %315
  %v317 = vsel %vm151, %v303, -inf
  %318 = vmax.xlane.f32.xlu0 %v317
  %v319 = vpop.xlane.xlu0 %318
  %vm320 = vcmask 113768
  %321 = vst.msk [vmem:[#allocation2] sm:$0xff] %vm320, %v316
  %322 = vst.msk [vmem:[#allocation2 + $0x8] sm:$0xff] %vm320, %v319
  %v323 = vld [vmem:[%s0 + $0x8] sm:$0xff]
  %v324 = vld [vmem:[%s0 + $0x18] sm:$0xff]
  %327 = vrot.lane.b32.xlu0 %v323, 32
  %v328 = vpop.permute.xlu0 %327
  %329 = vrot.lane.b32.xlu0 %v324, 32
  %v330 = vpop.permute.xlu0 %329
  %v333 = vmax.f32 %v312, %v328
  %v334 = vmax.f32 %v313, %v330
  %v335 = vsel %vm173, %v323, -inf
  %336 = vmax.xlane.f32.xlu0 %v335
  %v337 = vpop.xlane.xlu0 %336
  %v338 = vsel %vm173, %v324, -inf
  %339 = vmax.xlane.f32.xlu0 %v338
  %v340 = vpop.xlane.xlu0 %339
  %vm341 = vcmask 121968
  %342 = vst.msk [vmem:[#allocation2] sm:$0xff] %vm341, %v337
  %343 = vst.msk [vmem:[#allocation2 + $0x8] sm:$0xff] %vm341, %v340
  %v344 = vld [vmem:[%s0 + $0x8] sm:$0xff]
  %v345 = vld [vmem:[%s0 + $0x18] sm:$0xff]
  %348 = vrot.lane.b32.xlu0 %v344, 16
  %v349 = vpop.permute.xlu0 %348
  %350 = vrot.lane.b32.xlu0 %v345, 16
  %v351 = vpop.permute.xlu0 %350
  %v354 = vmax.f32 %v333, %v349
  %v355 = vmax.f32 %v334, %v351
  %v356 = vsel %vm195, %v344, -inf
  %357 = vmax.xlane.f32.xlu0 %v356
  %v358 = vpop.xlane.xlu0 %357
  %v359 = vsel %vm195, %v345, -inf
  %360 = vmax.xlane.f32.xlu0 %v359
  %v361 = vpop.xlane.xlu0 %360
  %vm362 = vcmask 130168
  %363 = vst.msk [vmem:[#allocation2] sm:$0xff] %vm362, %v358
  %364 = vst.msk [vmem:[#allocation2 + $0x8] sm:$0xff] %vm362, %v361
  %v365 = vld [vmem:[#allocation2] sm:$0xff]
  %v366 = vld [vmem:[#allocation2 + $0x8] sm:$0xff]
  %v367 = vld [vmem:[%s1] sm:$0xff]
  %v368 = vld [vmem:[%s1 + $0x8] sm:$0xff]
  %v369 = vld [vmem:[%s1 + $0x10] sm:$0xff]
  %v370 = vld [vmem:[%s1 + $0x18] sm:$0xff]
  %v371 = vld [vmem:[%s1 + $0x20] sm:$0xff]
  %v372 = vld [vmem:[%s1 + $0x28] sm:$0xff]
  %v373 = vld [vmem:[%s1 + $0x30] sm:$0xff]
  %v374 = vld [vmem:[%s1 + $0x38] sm:$0xff]
  %v375 = vld [vmem:[%s1 + $0x40] sm:$0xff]
  %v376 = vld [vmem:[%s1 + $0x48] sm:$0xff]
  %v377 = vld [vmem:[%s1 + $0x50] sm:$0xff]
  %v378 = vld [vmem:[%s1 + $0x58] sm:$0xff]
  %v379 = vld [vmem:[%s1 + $0x60] sm:$0xff]
  %v380 = vld [vmem:[%s1 + $0x68] sm:$0xff]
  %v381 = vld [vmem:[%s1 + $0x70] sm:$0xff]
  %v382 = vld [vmem:[%s1 + $0x78] sm:$0xff]
  %v383 = vld [vmem:[%s1 + $0x80] sm:$0xff]
  %v384 = vld [vmem:[%s1 + $0x88] sm:$0xff]
  %v385 = vld [vmem:[%s1 + $0x90] sm:$0xff]
  %v386 = vld [vmem:[%s1 + $0x98] sm:$0xff]
  %v387 = vld [vmem:[%s1 + $0xa0] sm:$0xff]
  %v388 = vld [vmem:[%s1 + $0xa8] sm:$0xff]
  %v389 = vld [vmem:[%s1 + $0xb0] sm:$0xff]
  %v390 = vld [vmem:[%s1 + $0xb8] sm:$0xff]
  %v391 = vld [vmem:[%s1 + $0xc0] sm:$0xff]
  %v392 = vld [vmem:[%s1 + $0xc8] sm:$0xff]
  %v393 = vld [vmem:[%s1 + $0xd0] sm:$0xff]
  %v394 = vld [vmem:[%s1 + $0xd8] sm:$0xff]
  %v395 = vld [vmem:[%s1 + $0xe0] sm:$0xff]
  %v396 = vld [vmem:[%s1 + $0xe8] sm:$0xff]
  %v397 = vld [vmem:[%s1 + $0xf0] sm:$0xff]
  %v398 = vld [vmem:[%s1 + $0xf8] sm:$0xff]
  %v399 = vld [vmem:[%s2] sm:$0xff]
  %v400 = vld [vmem:[%s2 + $0x8] sm:$0xff]
  %v401 = vld [vmem:[%s2 + $0x10] sm:$0xff]
  %v402 = vld [vmem:[%s2 + $0x18] sm:$0xff]
  %v403 = vld [vmem:[%s2 + $0x20] sm:$0xff]
  %v404 = vld [vmem:[%s2 + $0x28] sm:$0xff]
  %v405 = vld [vmem:[%s2 + $0x30] sm:$0xff]
  %v406 = vld [vmem:[%s2 + $0x38] sm:$0xff]
  %v407 = vld [vmem:[%s2 + $0x40] sm:$0xff]
  %v408 = vld [vmem:[%s2 + $0x48] sm:$0xff]
  %v409 = vld [vmem:[%s2 + $0x50] sm:$0xff]
  %v410 = vld [vmem:[%s2 + $0x58] sm:$0xff]
  %v411 = vld [vmem:[%s2 + $0x60] sm:$0xff]
  %v412 = vld [vmem:[%s2 + $0x68] sm:$0xff]
  %v413 = vld [vmem:[%s2 + $0x70] sm:$0xff]
  %v414 = vld [vmem:[%s2 + $0x78] sm:$0xff]
  %v415 = vld [vmem:[%s2 + $0x80] sm:$0xff]
  %v416 = vld [vmem:[%s2 + $0x88] sm:$0xff]
  %v417 = vld [vmem:[%s2 + $0x90] sm:$0xff]
  %v418 = vld [vmem:[%s2 + $0x98] sm:$0xff]
  %v419 = vld [vmem:[%s2 + $0xa0] sm:$0xff]
  %v420 = vld [vmem:[%s2 + $0xa8] sm:$0xff]
  %v421 = vld [vmem:[%s2 + $0xb0] sm:$0xff]
  %v422 = vld [vmem:[%s2 + $0xb8] sm:$0xff]
  %v423 = vld [vmem:[%s2 + $0xc0] sm:$0xff]
  %v424 = vld [vmem:[%s2 + $0xc8] sm:$0xff]
  %v425 = vld [vmem:[%s2 + $0xd0] sm:$0xff]
  %v426 = vld [vmem:[%s2 + $0xd8] sm:$0xff]
  %v427 = vld [vmem:[%s2 + $0xe0] sm:$0xff]
  %v428 = vld [vmem:[%s2 + $0xe8] sm:$0xff]
  %v429 = vld [vmem:[%s2 + $0xf0] sm:$0xff]
  %v430 = vld [vmem:[%s2 + $0xf8] sm:$0xff]
  %v431 = vand.u32 %v382, 4294901760
  %432 = vmatpush.msra.mxu0 %v431
  %v433 = vand.u32 %v381, 4294901760
  %434 = vmatpush.msra.mxu0 %v433
  %v435 = vand.u32 %v380, 4294901760
  %436 = vmatpush.msra.mxu0 %v435
  %v437 = vand.u32 %v379, 4294901760
  %438 = vmatpush.msra.mxu0 %v437
  %v439 = vand.u32 %v378, 4294901760
  %440 = vmatpush.msra.mxu0 %v439
  %v441 = vand.u32 %v377, 4294901760
  %442 = vmatpush.msra.mxu0 %v441
  %v443 = vand.u32 %v376, 4294901760
  %444 = vmatpush.msra.mxu0 %v443
  %v445 = vand.u32 %v375, 4294901760
  %446 = vmatpush.msra.mxu0 %v445
  %v447 = vand.u32 %v374, 4294901760
  %448 = vmatpush.msra.mxu0 %v447
  %v449 = vand.u32 %v373, 4294901760
  %450 = vmatpush.msra.mxu0 %v449
  %v451 = vand.u32 %v372, 4294901760
  %452 = vmatpush.msra.mxu0 %v451
  %v453 = vand.u32 %v371, 4294901760
  %454 = vmatpush.msra.mxu0 %v453
  %v455 = vand.u32 %v370, 4294901760
  %456 = vmatpush.msra.mxu0 %v455
  %v457 = vand.u32 %v369, 4294901760
  %458 = vmatpush.msra.mxu0 %v457
  %v459 = vand.u32 %v368, 4294901760
  %460 = vmatpush.msra.mxu0 %v459
  %v461 = vand.u32 %v367, 4294901760
  %462 = vmatpush.msra.mxu0 %v461
  %v463 = vand.u32 %v35, 4294901760
  %v464 = vsub.f32 %v35, %v463
  %v465 = vand.u32 %v464, 4294901760
  %v466 = vsub.f32 %v464, %v465
  %v467 = vand.u32 %v466, 4294901760
  %468 = vmatmul.f32.gmra.mxu0 %v467
  %v469 = vpop.f32.mrf.mxu0
  %v470 = vadd.f32 %v365, %v469
  %v471 = vand.u32 %v37, 4294901760
  %v472 = vsub.f32 %v37, %v471
  %v473 = vand.u32 %v472, 4294901760
  %v474 = vsub.f32 %v472, %v473
  %v475 = vand.u32 %v474, 4294901760
  %476 = vmatmul.f32.gmra.mxu0 %v475
  %v477 = vpop.f32.mrf.mxu0
  %v478 = vadd.f32 %v366, %v477
  %479 = vdwg.mxu0
  %v480 = vand.u32 %v382, 4294901760
  %v481 = vsub.f32 %v382, %v480
  %v482 = vand.u32 %v481, 4294901760
  %v483 = vsub.f32 %v481, %v482
  %v484 = vand.u32 %v483, 4294901760
  %485 = vmatpush.msra.mxu0 %v484
  %v486 = vand.u32 %v381, 4294901760
  %v487 = vsub.f32 %v381, %v486
  %v488 = vand.u32 %v487, 4294901760
  %v489 = vsub.f32 %v487, %v488
  %v490 = vand.u32 %v489, 4294901760
  %491 = vmatpush.msra.mxu0 %v490
  %v492 = vand.u32 %v380, 4294901760
  %v493 = vsub.f32 %v380, %v492
  %v494 = vand.u32 %v493, 4294901760
  %v495 = vsub.f32 %v493, %v494
  %v496 = vand.u32 %v495, 4294901760
  %497 = vmatpush.msra.mxu0 %v496
  %v498 = vand.u32 %v379, 4294901760
  %v499 = vsub.f32 %v379, %v498
  %v500 = vand.u32 %v499, 4294901760
  %v501 = vsub.f32 %v499, %v500
  %v502 = vand.u32 %v501, 4294901760
  %503 = vmatpush.msra.mxu0 %v502
  %v504 = vand.u32 %v378, 4294901760
  %v505 = vsub.f32 %v378, %v504
  %v506 = vand.u32 %v505, 4294901760
  %v507 = vsub.f32 %v505, %v506
  %v508 = vand.u32 %v507, 4294901760
  %509 = vmatpush.msra.mxu0 %v508
  %v510 = vand.u32 %v377, 4294901760
  %v511 = vsub.f32 %v377, %v510
  %v512 = vand.u32 %v511, 4294901760
  %v513 = vsub.f32 %v511, %v512
  %v514 = vand.u32 %v513, 4294901760
  %515 = vmatpush.msra.mxu0 %v514
  %v516 = vand.u32 %v376, 4294901760
  %v517 = vsub.f32 %v376, %v516
  %v518 = vand.u32 %v517, 4294901760
  %v519 = vsub.f32 %v517, %v518
  %v520 = vand.u32 %v519, 4294901760
  %521 = vmatpush.msra.mxu0 %v520
  %v522 = vand.u32 %v375, 4294901760
  %v523 = vsub.f32 %v375, %v522
  %v524 = vand.u32 %v523, 4294901760
  %v525 = vsub.f32 %v523, %v524
  %v526 = vand.u32 %v525, 4294901760
  %527 = vmatpush.msra.mxu0 %v526
  %v528 = vand.u32 %v374, 4294901760
  %v529 = vsub.f32 %v374, %v528
  %v530 = vand.u32 %v529, 4294901760
  %v531 = vsub.f32 %v529, %v530
  %v532 = vand.u32 %v531, 4294901760
  %533 = vmatpush.msra.mxu0 %v532
  %v534 = vand.u32 %v373, 4294901760
  %v535 = vsub.f32 %v373, %v534
  %v536 = vand.u32 %v535, 4294901760
  %v537 = vsub.f32 %v535, %v536
  %v538 = vand.u32 %v537, 4294901760
  %539 = vmatpush.msra.mxu0 %v538
  %v540 = vand.u32 %v372, 4294901760
  %v541 = vsub.f32 %v372, %v540
  %v542 = vand.u32 %v541, 4294901760
  %v543 = vsub.f32 %v541, %v542
  %v544 = vand.u32 %v543, 4294901760
  %545 = vmatpush.msra.mxu0 %v544
  %v546 = vand.u32 %v371, 4294901760
  %v547 = vsub.f32 %v371, %v546
  %v548 = vand.u32 %v547, 4294901760
  %v549 = vsub.f32 %v547, %v548
  %v550 = vand.u32 %v549, 4294901760
  %551 = vmatpush.msra.mxu0 %v550
  %v552 = vand.u32 %v370, 4294901760
  %v553 = vsub.f32 %v370, %v552
  %v554 = vand.u32 %v553, 4294901760
  %v555 = vsub.f32 %v553, %v554
  %v556 = vand.u32 %v555, 4294901760
  %557 = vmatpush.msra.mxu0 %v556
  %v558 = vand.u32 %v369, 4294901760
  %v559 = vsub.f32 %v369, %v558
  %v560 = vand.u32 %v559, 4294901760
  %v561 = vsub.f32 %v559, %v560
  %v562 = vand.u32 %v561, 4294901760
  %563 = vmatpush.msra.mxu0 %v562
  %v564 = vand.u32 %v368, 4294901760
  %v565 = vsub.f32 %v368, %v564
  %v566 = vand.u32 %v565, 4294901760
  %v567 = vsub.f32 %v565, %v566
  %v568 = vand.u32 %v567, 4294901760
  %569 = vmatpush.msra.mxu0 %v568
  %v570 = vand.u32 %v367, 4294901760
  %v571 = vsub.f32 %v367, %v570
  %v572 = vand.u32 %v571, 4294901760
  %v573 = vsub.f32 %v571, %v572
  %v574 = vand.u32 %v573, 4294901760
  %575 = vmatpush.msra.mxu0 %v574
  %v576 = vand.u32 %v35, 4294901760
  %577 = vmatmul.f32.gmra.mxu0 %v576
  %v578 = vpop.f32.mrf.mxu0
  %v579 = vadd.f32 %v470, %v578
  %v580 = vand.u32 %v37, 4294901760
  %581 = vmatmul.f32.gmra.mxu0 %v580
  %v582 = vpop.f32.mrf.mxu0
  %v583 = vadd.f32 %v478, %v582
  %584 = vdwg.mxu0
  %v585 = vand.u32 %v382, 4294901760
  %v586 = vsub.f32 %v382, %v585
  %587 = vmatpush.msra.mxu0 %v586
  %v588 = vand.u32 %v381, 4294901760
  %v589 = vsub.f32 %v381, %v588
  %590 = vmatpush.msra.mxu0 %v589
  %v591 = vand.u32 %v380, 4294901760
  %v592 = vsub.f32 %v380, %v591
  %593 = vmatpush.msra.mxu0 %v592
  %v594 = vand.u32 %v379, 4294901760
  %v595 = vsub.f32 %v379, %v594
  %596 = vmatpush.msra.mxu0 %v595
  %v597 = vand.u32 %v378, 4294901760
  %v598 = vsub.f32 %v378, %v597
  %599 = vmatpush.msra.mxu0 %v598
  %v600 = vand.u32 %v377, 4294901760
  %v601 = vsub.f32 %v377, %v600
  %602 = vmatpush.msra.mxu0 %v601
  %v603 = vand.u32 %v376, 4294901760
  %v604 = vsub.f32 %v376, %v603
  %605 = vmatpush.msra.mxu0 %v604
  %v606 = vand.u32 %v375, 4294901760
  %v607 = vsub.f32 %v375, %v606
  %608 = vmatpush.msra.mxu0 %v607
  %v609 = vand.u32 %v374, 4294901760
  %v610 = vsub.f32 %v374, %v609
  %611 = vmatpush.msra.mxu0 %v610
  %v612 = vand.u32 %v373, 4294901760
  %v613 = vsub.f32 %v373, %v612
  %614 = vmatpush.msra.mxu0 %v613
  %v615 = vand.u32 %v372, 4294901760
  %v616 = vsub.f32 %v372, %v615
  %617 = vmatpush.msra.mxu0 %v616
  %v618 = vand.u32 %v371, 4294901760
  %v619 = vsub.f32 %v371, %v618
  %620 = vmatpush.msra.mxu0 %v619
  %v621 = vand.u32 %v370, 4294901760
  %v622 = vsub.f32 %v370, %v621
  %623 = vmatpush.msra.mxu0 %v622
  %v624 = vand.u32 %v369, 4294901760
  %v625 = vsub.f32 %v369, %v624
  %626 = vmatpush.msra.mxu0 %v625
  %v627 = vand.u32 %v368, 4294901760
  %v628 = vsub.f32 %v368, %v627
  %629 = vmatpush.msra.mxu0 %v628
  %v630 = vand.u32 %v367, 4294901760
  %v631 = vsub.f32 %v367, %v630
  %632 = vmatpush.msra.mxu0 %v631
  %v633 = vand.u32 %v35, 4294901760
  %v634 = vsub.f32 %v35, %v633
  %635 = vmatmul.f32.gmra.mxu0 %v634
  %v636 = vpop.f32.mrf.mxu0
  %v637 = vadd.f32 %v579, %v636
  %v638 = vand.u32 %v37, 4294901760
  %v639 = vsub.f32 %v37, %v638
  %640 = vmatmul.f32.gmra.mxu0 %v639
  %v641 = vpop.f32.mrf.mxu0
  %v642 = vadd.f32 %v583, %v641
  %643 = vdwg.mxu0
  %v644 = vand.u32 %v382, 4294901760
  %645 = vmatpush.msra.mxu0 %v644
  %v646 = vand.u32 %v381, 4294901760
  %647 = vmatpush.msra.mxu0 %v646
  %v648 = vand.u32 %v380, 4294901760
  %649 = vmatpush.msra.mxu0 %v648
  %v650 = vand.u32 %v379, 4294901760
  %651 = vmatpush.msra.mxu0 %v650
  %v652 = vand.u32 %v378, 4294901760
  %653 = vmatpush.msra.mxu0 %v652
  %v654 = vand.u32 %v377, 4294901760
  %655 = vmatpush.msra.mxu0 %v654
  %v656 = vand.u32 %v376, 4294901760
  %657 = vmatpush.msra.mxu0 %v656
  %v658 = vand.u32 %v375, 4294901760
  %659 = vmatpush.msra.mxu0 %v658
  %v660 = vand.u32 %v374, 4294901760
  %661 = vmatpush.msra.mxu0 %v660
  %v662 = vand.u32 %v373, 4294901760
  %663 = vmatpush.msra.mxu0 %v662
  %v664 = vand.u32 %v372, 4294901760
  %665 = vmatpush.msra.mxu0 %v664
  %v666 = vand.u32 %v371, 4294901760
  %667 = vmatpush.msra.mxu0 %v666
  %v668 = vand.u32 %v370, 4294901760
  %669 = vmatpush.msra.mxu0 %v668
  %v670 = vand.u32 %v369, 4294901760
  %671 = vmatpush.msra.mxu0 %v670
  %v672 = vand.u32 %v368, 4294901760
  %673 = vmatpush.msra.mxu0 %v672
  %v674 = vand.u32 %v367, 4294901760
  %675 = vmatpush.msra.mxu0 %v674
  %v676 = vand.u32 %v35, 4294901760
  %v677 = vsub.f32 %v35, %v676
  %v678 = vand.u32 %v677, 4294901760
  %679 = vmatmul.f32.gmra.mxu0 %v678
  %v680 = vpop.f32.mrf.mxu0
  %v681 = vadd.f32 %v637, %v680
  %v682 = vand.u32 %v37, 4294901760
  %v683 = vsub.f32 %v37, %v682
  %v684 = vand.u32 %v683, 4294901760
  %685 = vmatmul.f32.gmra.mxu0 %v684
  %v686 = vpop.f32.mrf.mxu0
  %v687 = vadd.f32 %v642, %v686
  %688 = vdwg.mxu0
  %v689 = vand.u32 %v382, 4294901760
  %v690 = vsub.f32 %v382, %v689
  %v691 = vand.u32 %v690, 4294901760
  %692 = vmatpush.msra.mxu0 %v691
  %v693 = vand.u32 %v381, 4294901760
  %v694 = vsub.f32 %v381, %v693
  %v695 = vand.u32 %v694, 4294901760
  %696 = vmatpush.msra.mxu0 %v695
  %v697 = vand.u32 %v380, 4294901760
  %v698 = vsub.f32 %v380, %v697
  %v699 = vand.u32 %v698, 4294901760
  %700 = vmatpush.msra.mxu0 %v699
  %v701 = vand.u32 %v379, 4294901760
  %v702 = vsub.f32 %v379, %v701
  %v703 = vand.u32 %v702, 4294901760
  %704 = vmatpush.msra.mxu0 %v703
  %v705 = vand.u32 %v378, 4294901760
  %v706 = vsub.f32 %v378, %v705
  %v707 = vand.u32 %v706, 4294901760
  %708 = vmatpush.msra.mxu0 %v707
  %v709 = vand.u32 %v377, 4294901760
  %v710 = vsub.f32 %v377, %v709
  %v711 = vand.u32 %v710, 4294901760
  %712 = vmatpush.msra.mxu0 %v711
  %v713 = vand.u32 %v376, 4294901760
  %v714 = vsub.f32 %v376, %v713
  %v715 = vand.u32 %v714, 4294901760
  %716 = vmatpush.msra.mxu0 %v715
  %v717 = vand.u32 %v375, 4294901760
  %v718 = vsub.f32 %v375, %v717
  %v719 = vand.u32 %v718, 4294901760
  %720 = vmatpush.msra.mxu0 %v719
  %v721 = vand.u32 %v374, 4294901760
  %v722 = vsub.f32 %v374, %v721
  %v723 = vand.u32 %v722, 4294901760
  %724 = vmatpush.msra.mxu0 %v723
  %v725 = vand.u32 %v373, 4294901760
  %v726 = vsub.f32 %v373, %v725
  %v727 = vand.u32 %v726, 4294901760
  %728 = vmatpush.msra.mxu0 %v727
  %v729 = vand.u32 %v372, 4294901760
  %v730 = vsub.f32 %v372, %v729
  %v731 = vand.u32 %v730, 4294901760
  %732 = vmatpush.msra.mxu0 %v731
  %v733 = vand.u32 %v371, 4294901760
  %v734 = vsub.f32 %v371, %v733
  %v735 = vand.u32 %v734, 4294901760
  %736 = vmatpush.msra.mxu0 %v735
  %v737 = vand.u32 %v370, 4294901760
  %v738 = vsub.f32 %v370, %v737
  %v739 = vand.u32 %v738, 4294901760
  %740 = vmatpush.msra.mxu0 %v739
  %v741 = vand.u32 %v369, 4294901760
  %v742 = vsub.f32 %v369, %v741
  %v743 = vand.u32 %v742, 4294901760
  %744 = vmatpush.msra.mxu0 %v743
  %v745 = vand.u32 %v368, 4294901760
  %v746 = vsub.f32 %v368, %v745
  %v747 = vand.u32 %v746, 4294901760
  %748 = vmatpush.msra.mxu0 %v747
  %v749 = vand.u32 %v367, 4294901760
  %v750 = vsub.f32 %v367, %v749
  %v751 = vand.u32 %v750, 4294901760
  %752 = vmatpush.msra.mxu0 %v751
  %v753 = vand.u32 %v35, 4294901760
  %754 = vmatmul.f32.gmra.mxu0 %v753
  %v755 = vpop.f32.mrf.mxu0
  %v756 = vadd.f32 %v681, %v755
  %v757 = vand.u32 %v37, 4294901760
  %758 = vmatmul.f32.gmra.mxu0 %v757
  %v759 = vpop.f32.mrf.mxu0
  %v760 = vadd.f32 %v687, %v759
  %761 = vdwg.mxu0
  %v762 = vand.u32 %v382, 4294901760
  %763 = vmatpush.msra.mxu0 %v762
  %v764 = vand.u32 %v381, 4294901760
  %765 = vmatpush.msra.mxu0 %v764
  %v766 = vand.u32 %v380, 4294901760
  %767 = vmatpush.msra.mxu0 %v766
  %v768 = vand.u32 %v379, 4294901760
  %769 = vmatpush.msra.mxu0 %v768
  %v770 = vand.u32 %v378, 4294901760
  %771 = vmatpush.msra.mxu0 %v770
  %v772 = vand.u32 %v377, 4294901760
  %773 = vmatpush.msra.mxu0 %v772
  %v774 = vand.u32 %v376, 4294901760
  %775 = vmatpush.msra.mxu0 %v774
  %v776 = vand.u32 %v375, 4294901760
  %777 = vmatpush.msra.mxu0 %v776
  %v778 = vand.u32 %v374, 4294901760
  %779 = vmatpush.msra.mxu0 %v778
  %v780 = vand.u32 %v373, 4294901760
  %781 = vmatpush.msra.mxu0 %v780
  %v782 = vand.u32 %v372, 4294901760
  %783 = vmatpush.msra.mxu0 %v782
  %v784 = vand.u32 %v371, 4294901760
  %785 = vmatpush.msra.mxu0 %v784
  %v786 = vand.u32 %v370, 4294901760
  %787 = vmatpush.msra.mxu0 %v786
  %v788 = vand.u32 %v369, 4294901760
  %789 = vmatpush.msra.mxu0 %v788
  %v790 = vand.u32 %v368, 4294901760
  %791 = vmatpush.msra.mxu0 %v790
  %v792 = vand.u32 %v367, 4294901760
  %793 = vmatpush.msra.mxu0 %v792
  %v794 = vand.u32 %v35, 4294901760
  %795 = vmatmul.f32.gmra.mxu0 %v794
  %v796 = vpop.f32.mrf.mxu0
  %v797 = vadd.f32 %v756, %v796
  %v798 = vand.u32 %v37, 4294901760
  %799 = vmatmul.f32.gmra.mxu0 %v798
  %v800 = vpop.f32.mrf.mxu0
  %v801 = vadd.f32 %v760, %v800
  %802 = vdwg.mxu0
  %v803 = vand.u32 %v398, 4294901760
  %804 = vmatpush.msra.mxu0 %v803
  %v805 = vand.u32 %v397, 4294901760
  %806 = vmatpush.msra.mxu0 %v805
  %v807 = vand.u32 %v396, 4294901760
  %808 = vmatpush.msra.mxu0 %v807
  %v809 = vand.u32 %v395, 4294901760
  %810 = vmatpush.msra.mxu0 %v809
  %v811 = vand.u32 %v394, 4294901760
  %812 = vmatpush.msra.mxu0 %v811
  %v813 = vand.u32 %v393, 4294901760
  %814 = vmatpush.msra.mxu0 %v813
  %v815 = vand.u32 %v392, 4294901760
  %816 = vmatpush.msra.mxu0 %v815
  %v817 = vand.u32 %v391, 4294901760
  %818 = vmatpush.msra.mxu0 %v817
  %v819 = vand.u32 %v390, 4294901760
  %820 = vmatpush.msra.mxu0 %v819
  %v821 = vand.u32 %v389, 4294901760
  %822 = vmatpush.msra.mxu0 %v821
  %v823 = vand.u32 %v388, 4294901760
  %824 = vmatpush.msra.mxu0 %v823
  %v825 = vand.u32 %v387, 4294901760
  %826 = vmatpush.msra.mxu0 %v825
  %v827 = vand.u32 %v386, 4294901760
  %828 = vmatpush.msra.mxu0 %v827
  %v829 = vand.u32 %v385, 4294901760
  %830 = vmatpush.msra.mxu0 %v829
  %v831 = vand.u32 %v384, 4294901760
  %832 = vmatpush.msra.mxu0 %v831
  %v833 = vand.u32 %v383, 4294901760
  %834 = vmatpush.msra.mxu0 %v833
  %v835 = vand.u32 %v36, 4294901760
  %v836 = vsub.f32 %v36, %v835
  %v837 = vand.u32 %v836, 4294901760
  %v838 = vsub.f32 %v836, %v837
  %v839 = vand.u32 %v838, 4294901760
  %840 = vmatmul.f32.gmra.mxu0 %v839
  %v841 = vpop.f32.mrf.mxu0
  %v842 = vadd.f32 %v797, %v841
  %v843 = vand.u32 %v38, 4294901760
  %v844 = vsub.f32 %v38, %v843
  %v845 = vand.u32 %v844, 4294901760
  %v846 = vsub.f32 %v844, %v845
  %v847 = vand.u32 %v846, 4294901760
  %848 = vmatmul.f32.gmra.mxu0 %v847
  %v849 = vpop.f32.mrf.mxu0
  %v850 = vadd.f32 %v801, %v849
  %851 = vdwg.mxu0
  %v852 = vand.u32 %v398, 4294901760
  %v853 = vsub.f32 %v398, %v852
  %v854 = vand.u32 %v853, 4294901760
  %v855 = vsub.f32 %v853, %v854
  %v856 = vand.u32 %v855, 4294901760
  %857 = vmatpush.msra.mxu0 %v856
  %v858 = vand.u32 %v397, 4294901760
  %v859 = vsub.f32 %v397, %v858
  %v860 = vand.u32 %v859, 4294901760
  %v861 = vsub.f32 %v859, %v860
  %v862 = vand.u32 %v861, 4294901760
  %863 = vmatpush.msra.mxu0 %v862
  %v864 = vand.u32 %v396, 4294901760
  %v865 = vsub.f32 %v396, %v864
  %v866 = vand.u32 %v865, 4294901760
  %v867 = vsub.f32 %v865, %v866
  %v868 = vand.u32 %v867, 4294901760
  %869 = vmatpush.msra.mxu0 %v868
  %v870 = vand.u32 %v395, 4294901760
  %v871 = vsub.f32 %v395, %v870
  %v872 = vand.u32 %v871, 4294901760
  %v873 = vsub.f32 %v871, %v872
  %v874 = vand.u32 %v873, 4294901760
  %875 = vmatpush.msra.mxu0 %v874
  %v876 = vand.u32 %v394, 4294901760
  %v877 = vsub.f32 %v394, %v876
  %v878 = vand.u32 %v877, 4294901760
  %v879 = vsub.f32 %v877, %v878
  %v880 = vand.u32 %v879, 4294901760
  %881 = vmatpush.msra.mxu0 %v880
  %v882 = vand.u32 %v393, 4294901760
  %v883 = vsub.f32 %v393, %v882
  %v884 = vand.u32 %v883, 4294901760
  %v885 = vsub.f32 %v883, %v884
  %v886 = vand.u32 %v885, 4294901760
  %887 = vmatpush.msra.mxu0 %v886
  %v888 = vand.u32 %v392, 4294901760
  %v889 = vsub.f32 %v392, %v888
  %v890 = vand.u32 %v889, 4294901760
  %v891 = vsub.f32 %v889, %v890
  %v892 = vand.u32 %v891, 4294901760
  %893 = vmatpush.msra.mxu0 %v892
  %v894 = vand.u32 %v391, 4294901760
  %v895 = vsub.f32 %v391, %v894
  %v896 = vand.u32 %v895, 4294901760
  %v897 = vsub.f32 %v895, %v896
  %v898 = vand.u32 %v897, 4294901760
  %899 = vmatpush.msra.mxu0 %v898
  %v900 = vand.u32 %v390, 4294901760
  %v901 = vsub.f32 %v390, %v900
  %v902 = vand.u32 %v901, 4294901760
  %v903 = vsub.f32 %v901, %v902
  %v904 = vand.u32 %v903, 4294901760
  %905 = vmatpush.msra.mxu0 %v904
  %v906 = vand.u32 %v389, 4294901760
  %v907 = vsub.f32 %v389, %v906
  %v908 = vand.u32 %v907, 4294901760
  %v909 = vsub.f32 %v907, %v908
  %v910 = vand.u32 %v909, 4294901760
  %911 = vmatpush.msra.mxu0 %v910
  %v912 = vand.u32 %v388, 4294901760
  %v913 = vsub.f32 %v388, %v912
  %v914 = vand.u32 %v913, 4294901760
  %v915 = vsub.f32 %v913, %v914
  %v916 = vand.u32 %v915, 4294901760
  %917 = vmatpush.msra.mxu0 %v916
  %v918 = vand.u32 %v387, 4294901760
  %v919 = vsub.f32 %v387, %v918
  %v920 = vand.u32 %v919, 4294901760
  %v921 = vsub.f32 %v919, %v920
  %v922 = vand.u32 %v921, 4294901760
  %923 = vmatpush.msra.mxu0 %v922
  %v924 = vand.u32 %v386, 4294901760
  %v925 = vsub.f32 %v386, %v924
  %v926 = vand.u32 %v925, 4294901760
  %v927 = vsub.f32 %v925, %v926
  %v928 = vand.u32 %v927, 4294901760
  %929 = vmatpush.msra.mxu0 %v928
  %v930 = vand.u32 %v385, 4294901760
  %v931 = vsub.f32 %v385, %v930
  %v932 = vand.u32 %v931, 4294901760
  %v933 = vsub.f32 %v931, %v932
  %v934 = vand.u32 %v933, 4294901760
  %935 = vmatpush.msra.mxu0 %v934
  %v936 = vand.u32 %v384, 4294901760
  %v937 = vsub.f32 %v384, %v936
  %v938 = vand.u32 %v937, 4294901760
  %v939 = vsub.f32 %v937, %v938
  %v940 = vand.u32 %v939, 4294901760
  %941 = vmatpush.msra.mxu0 %v940
  %v942 = vand.u32 %v383, 4294901760
  %v943 = vsub.f32 %v383, %v942
  %v944 = vand.u32 %v943, 4294901760
  %v945 = vsub.f32 %v943, %v944
  %v946 = vand.u32 %v945, 4294901760
  %947 = vmatpush.msra.mxu0 %v946
  %v948 = vand.u32 %v36, 4294901760
  %949 = vmatmul.f32.gmra.mxu0 %v948
  %v950 = vpop.f32.mrf.mxu0
  %v951 = vadd.f32 %v842, %v950
  %v952 = vand.u32 %v38, 4294901760
  %953 = vmatmul.f32.gmra.mxu0 %v952
  %v954 = vpop.f32.mrf.mxu0
  %v955 = vadd.f32 %v850, %v954
  %956 = vdwg.mxu0
  %v957 = vand.u32 %v398, 4294901760
  %v958 = vsub.f32 %v398, %v957
  %959 = vmatpush.msra.mxu0 %v958
  %v960 = vand.u32 %v397, 4294901760
  %v961 = vsub.f32 %v397, %v960
  %962 = vmatpush.msra.mxu0 %v961
  %v963 = vand.u32 %v396, 4294901760
  %v964 = vsub.f32 %v396, %v963
  %965 = vmatpush.msra.mxu0 %v964
  %v966 = vand.u32 %v395, 4294901760
  %v967 = vsub.f32 %v395, %v966
  %968 = vmatpush.msra.mxu0 %v967
  %v969 = vand.u32 %v394, 4294901760
  %v970 = vsub.f32 %v394, %v969
  %971 = vmatpush.msra.mxu0 %v970
  %v972 = vand.u32 %v393, 4294901760
  %v973 = vsub.f32 %v393, %v972
  %974 = vmatpush.msra.mxu0 %v973
  %v975 = vand.u32 %v392, 4294901760
  %v976 = vsub.f32 %v392, %v975
  %977 = vmatpush.msra.mxu0 %v976
  %v978 = vand.u32 %v391, 4294901760
  %v979 = vsub.f32 %v391, %v978
  %980 = vmatpush.msra.mxu0 %v979
  %v981 = vand.u32 %v390, 4294901760
  %v982 = vsub.f32 %v390, %v981
  %983 = vmatpush.msra.mxu0 %v982
  %v984 = vand.u32 %v389, 4294901760
  %v985 = vsub.f32 %v389, %v984
  %986 = vmatpush.msra.mxu0 %v985
  %v987 = vand.u32 %v388, 4294901760
  %v988 = vsub.f32 %v388, %v987
  %989 = vmatpush.msra.mxu0 %v988
  %v990 = vand.u32 %v387, 4294901760
  %v991 = vsub.f32 %v387, %v990
  %992 = vmatpush.msra.mxu0 %v991
  %v993 = vand.u32 %v386, 4294901760
  %v994 = vsub.f32 %v386, %v993
  %995 = vmatpush.msra.mxu0 %v994
  %v996 = vand.u32 %v385, 4294901760
  %v997 = vsub.f32 %v385, %v996
  %998 = vmatpush.msra.mxu0 %v997
  %v999 = vand.u32 %v384, 4294901760
  %v1000 = vsub.f32 %v384, %v999
  %1001 = vmatpush.msra.mxu0 %v1000
  %v1002 = vand.u32 %v383, 4294901760
  %v1003 = vsub.f32 %v383, %v1002
  %1004 = vmatpush.msra.mxu0 %v1003
  %v1005 = vand.u32 %v36, 4294901760
  %v1006 = vsub.f32 %v36, %v1005
  %1007 = vmatmul.f32.gmra.mxu0 %v1006
  %v1008 = vpop.f32.mrf.mxu0
  %v1009 = vadd.f32 %v951, %v1008
  %v1010 = vand.u32 %v38, 4294901760
  %v1011 = vsub.f32 %v38, %v1010
  %1012 = vmatmul.f32.gmra.mxu0 %v1011
  %v1013 = vpop.f32.mrf.mxu0
  %v1014 = vadd.f32 %v955, %v1013
  %1015 = vdwg.mxu0
  %v1016 = vand.u32 %v398, 4294901760
  %1017 = vmatpush.msra.mxu0 %v1016
  %v1018 = vand.u32 %v397, 4294901760
  %1019 = vmatpush.msra.mxu0 %v1018
  %v1020 = vand.u32 %v396, 4294901760
  %1021 = vmatpush.msra.mxu0 %v1020
  %v1022 = vand.u32 %v395, 4294901760
  %1023 = vmatpush.msra.mxu0 %v1022
  %v1024 = vand.u32 %v394, 4294901760
  %1025 = vmatpush.msra.mxu0 %v1024
  %v1026 = vand.u32 %v393, 4294901760
  %1027 = vmatpush.msra.mxu0 %v1026
  %v1028 = vand.u32 %v392, 4294901760
  %1029 = vmatpush.msra.mxu0 %v1028
  %v1030 = vand.u32 %v391, 4294901760
  %1031 = vmatpush.msra.mxu0 %v1030
  %v1032 = vand.u32 %v390, 4294901760
  %1033 = vmatpush.msra.mxu0 %v1032
  %v1034 = vand.u32 %v389, 4294901760
  %1035 = vmatpush.msra.mxu0 %v1034
  %v1036 = vand.u32 %v388, 4294901760
  %1037 = vmatpush.msra.mxu0 %v1036
  %v1038 = vand.u32 %v387, 4294901760
  %1039 = vmatpush.msra.mxu0 %v1038
  %v1040 = vand.u32 %v386, 4294901760
  %1041 = vmatpush.msra.mxu0 %v1040
  %v1042 = vand.u32 %v385, 4294901760
  %1043 = vmatpush.msra.mxu0 %v1042
  %v1044 = vand.u32 %v384, 4294901760
  %1045 = vmatpush.msra.mxu0 %v1044
  %v1046 = vand.u32 %v383, 4294901760
  %1047 = vmatpush.msra.mxu0 %v1046
  %v1048 = vand.u32 %v36, 4294901760
  %v1049 = vsub.f32 %v36, %v1048
  %v1050 = vand.u32 %v1049, 4294901760
  %1051 = vmatmul.f32.gmra.mxu0 %v1050
  %v1052 = vpop.f32.mrf.mxu0
  %v1053 = vadd.f32 %v1009, %v1052
  %v1054 = vand.u32 %v38, 4294901760
  %v1055 = vsub.f32 %v38, %v1054
  %v1056 = vand.u32 %v1055, 4294901760
  %1057 = vmatmul.f32.gmra.mxu0 %v1056
  %v1058 = vpop.f32.mrf.mxu0
  %v1059 = vadd.f32 %v1014, %v1058
  %1060 = vdwg.mxu0
  %v1061 = vand.u32 %v398, 4294901760
  %v1062 = vsub.f32 %v398, %v1061
  %v1063 = vand.u32 %v1062, 4294901760
  %1064 = vmatpush.msra.mxu0 %v1063
  %v1065 = vand.u32 %v397, 4294901760
  %v1066 = vsub.f32 %v397, %v1065
  %v1067 = vand.u32 %v1066, 4294901760
  %1068 = vmatpush.msra.mxu0 %v1067
  %v1069 = vand.u32 %v396, 4294901760
  %v1070 = vsub.f32 %v396, %v1069
  %v1071 = vand.u32 %v1070, 4294901760
  %1072 = vmatpush.msra.mxu0 %v1071
  %v1073 = vand.u32 %v395, 4294901760
  %v1074 = vsub.f32 %v395, %v1073
  %v1075 = vand.u32 %v1074, 4294901760
  %1076 = vmatpush.msra.mxu0 %v1075
  %v1077 = vand.u32 %v394, 4294901760
  %v1078 = vsub.f32 %v394, %v1077
  %v1079 = vand.u32 %v1078, 4294901760
  %1080 = vmatpush.msra.mxu0 %v1079
  %v1081 = vand.u32 %v393, 4294901760
  %v1082 = vsub.f32 %v393, %v1081
  %v1083 = vand.u32 %v1082, 4294901760
  %1084 = vmatpush.msra.mxu0 %v1083
  %v1085 = vand.u32 %v392, 4294901760
  %v1086 = vsub.f32 %v392, %v1085
  %v1087 = vand.u32 %v1086, 4294901760
  %1088 = vmatpush.msra.mxu0 %v1087
  %v1089 = vand.u32 %v391, 4294901760
  %v1090 = vsub.f32 %v391, %v1089
  %v1091 = vand.u32 %v1090, 4294901760
  %1092 = vmatpush.msra.mxu0 %v1091
  %v1093 = vand.u32 %v390, 4294901760
  %v1094 = vsub.f32 %v390, %v1093
  %v1095 = vand.u32 %v1094, 4294901760
  %1096 = vmatpush.msra.mxu0 %v1095
  %v1097 = vand.u32 %v389, 4294901760
  %v1098 = vsub.f32 %v389, %v1097
  %v1099 = vand.u32 %v1098, 4294901760
  %1100 = vmatpush.msra.mxu0 %v1099
  %v1101 = vand.u32 %v388, 4294901760
  %v1102 = vsub.f32 %v388, %v1101
  %v1103 = vand.u32 %v1102, 4294901760
  %1104 = vmatpush.msra.mxu0 %v1103
  %v1105 = vand.u32 %v387, 4294901760
  %v1106 = vsub.f32 %v387, %v1105
  %v1107 = vand.u32 %v1106, 4294901760
  %1108 = vmatpush.msra.mxu0 %v1107
  %v1109 = vand.u32 %v386, 4294901760
  %v1110 = vsub.f32 %v386, %v1109
  %v1111 = vand.u32 %v1110, 4294901760
  %1112 = vmatpush.msra.mxu0 %v1111
  %v1113 = vand.u32 %v385, 4294901760
  %v1114 = vsub.f32 %v385, %v1113
  %v1115 = vand.u32 %v1114, 4294901760
  %1116 = vmatpush.msra.mxu0 %v1115
  %v1117 = vand.u32 %v384, 4294901760
  %v1118 = vsub.f32 %v384, %v1117
  %v1119 = vand.u32 %v1118, 4294901760
  %1120 = vmatpush.msra.mxu0 %v1119
  %v1121 = vand.u32 %v383, 4294901760
  %v1122 = vsub.f32 %v383, %v1121
  %v1123 = vand.u32 %v1122, 4294901760
  %1124 = vmatpush.msra.mxu0 %v1123
  %v1125 = vand.u32 %v36, 4294901760
  %1126 = vmatmul.f32.gmra.mxu0 %v1125
  %v1127 = vpop.f32.mrf.mxu0
  %v1128 = vadd.f32 %v1053, %v1127
  %v1129 = vand.u32 %v38, 4294901760
  %1130 = vmatmul.f32.gmra.mxu0 %v1129
  %v1131 = vpop.f32.mrf.mxu0
  %v1132 = vadd.f32 %v1059, %v1131
  %1133 = vdwg.mxu0
  %v1134 = vand.u32 %v398, 4294901760
  %1135 = vmatpush.msra.mxu0 %v1134
  %v1136 = vand.u32 %v397, 4294901760
  %1137 = vmatpush.msra.mxu0 %v1136
  %v1138 = vand.u32 %v396, 4294901760
  %1139 = vmatpush.msra.mxu0 %v1138
  %v1140 = vand.u32 %v395, 4294901760
  %1141 = vmatpush.msra.mxu0 %v1140
  %v1142 = vand.u32 %v394, 4294901760
  %1143 = vmatpush.msra.mxu0 %v1142
  %v1144 = vand.u32 %v393, 4294901760
  %1145 = vmatpush.msra.mxu0 %v1144
  %v1146 = vand.u32 %v392, 4294901760
  %1147 = vmatpush.msra.mxu0 %v1146
  %v1148 = vand.u32 %v391, 4294901760
  %1149 = vmatpush.msra.mxu0 %v1148
  %v1150 = vand.u32 %v390, 4294901760
  %1151 = vmatpush.msra.mxu0 %v1150
  %v1152 = vand.u32 %v389, 4294901760
  %1153 = vmatpush.msra.mxu0 %v1152
  %v1154 = vand.u32 %v388, 4294901760
  %1155 = vmatpush.msra.mxu0 %v1154
  %v1156 = vand.u32 %v387, 4294901760
  %1157 = vmatpush.msra.mxu0 %v1156
  %v1158 = vand.u32 %v386, 4294901760
  %1159 = vmatpush.msra.mxu0 %v1158
  %v1160 = vand.u32 %v385, 4294901760
  %1161 = vmatpush.msra.mxu0 %v1160
  %v1162 = vand.u32 %v384, 4294901760
  %1163 = vmatpush.msra.mxu0 %v1162
  %v1164 = vand.u32 %v383, 4294901760
  %1165 = vmatpush.msra.mxu0 %v1164
  %v1166 = vand.u32 %v36, 4294901760
  %1167 = vmatmul.f32.gmra.mxu0 %v1166
  %v1168 = vpop.f32.mrf.mxu0
  %v1169 = vadd.f32 %v1128, %v1168
  %v1170 = vand.u32 %v38, 4294901760
  %1171 = vmatmul.f32.gmra.mxu0 %v1170
  %v1172 = vpop.f32.mrf.mxu0
  %v1173 = vadd.f32 %v1132, %v1172
  %1174 = vdwg.mxu0
  %v1175 = vand.u32 %v414, 4294901760
  %1176 = vmatpush.msra.mxu0 %v1175
  %v1177 = vand.u32 %v413, 4294901760
  %1178 = vmatpush.msra.mxu0 %v1177
  %v1179 = vand.u32 %v412, 4294901760
  %1180 = vmatpush.msra.mxu0 %v1179
  %v1181 = vand.u32 %v411, 4294901760
  %1182 = vmatpush.msra.mxu0 %v1181
  %v1183 = vand.u32 %v410, 4294901760
  %1184 = vmatpush.msra.mxu0 %v1183
  %v1185 = vand.u32 %v409, 4294901760
  %1186 = vmatpush.msra.mxu0 %v1185
  %v1187 = vand.u32 %v408, 4294901760
  %1188 = vmatpush.msra.mxu0 %v1187
  %v1189 = vand.u32 %v407, 4294901760
  %1190 = vmatpush.msra.mxu0 %v1189
  %v1191 = vand.u32 %v406, 4294901760
  %1192 = vmatpush.msra.mxu0 %v1191
  %v1193 = vand.u32 %v405, 4294901760
  %1194 = vmatpush.msra.mxu0 %v1193
  %v1195 = vand.u32 %v404, 4294901760
  %1196 = vmatpush.msra.mxu0 %v1195
  %v1197 = vand.u32 %v403, 4294901760
  %1198 = vmatpush.msra.mxu0 %v1197
  %v1199 = vand.u32 %v402, 4294901760
  %1200 = vmatpush.msra.mxu0 %v1199
  %v1201 = vand.u32 %v401, 4294901760
  %1202 = vmatpush.msra.mxu0 %v1201
  %v1203 = vand.u32 %v400, 4294901760
  %1204 = vmatpush.msra.mxu0 %v1203
  %v1205 = vand.u32 %v399, 4294901760
  %1206 = vmatpush.msra.mxu0 %v1205
  %v1207 = vand.u32 %v35, 4294901760
  %v1208 = vsub.f32 %v35, %v1207
  %v1209 = vand.u32 %v1208, 4294901760
  %v1210 = vsub.f32 %v1208, %v1209
  %v1211 = vand.u32 %v1210, 4294901760
  %1212 = vmatmul.f32.gmra.mxu0 %v1211
  %v1213 = vpop.f32.mrf.mxu0
  %v1214 = vadd.f32 %v354, %v1213
  %v1215 = vand.u32 %v37, 4294901760
  %v1216 = vsub.f32 %v37, %v1215
  %v1217 = vand.u32 %v1216, 4294901760
  %v1218 = vsub.f32 %v1216, %v1217
  %v1219 = vand.u32 %v1218, 4294901760
  %1220 = vmatmul.f32.gmra.mxu0 %v1219
  %v1221 = vpop.f32.mrf.mxu0
  %v1222 = vadd.f32 %v355, %v1221
  %1223 = vdwg.mxu0
  %v1224 = vand.u32 %v414, 4294901760
  %v1225 = vsub.f32 %v414, %v1224
  %v1226 = vand.u32 %v1225, 4294901760
  %v1227 = vsub.f32 %v1225, %v1226
  %v1228 = vand.u32 %v1227, 4294901760
  %1229 = vmatpush.msra.mxu0 %v1228
  %v1230 = vand.u32 %v413, 4294901760
  %v1231 = vsub.f32 %v413, %v1230
  %v1232 = vand.u32 %v1231, 4294901760
  %v1233 = vsub.f32 %v1231, %v1232
  %v1234 = vand.u32 %v1233, 4294901760
  %1235 = vmatpush.msra.mxu0 %v1234
  %v1236 = vand.u32 %v412, 4294901760
  %v1237 = vsub.f32 %v412, %v1236
  %v1238 = vand.u32 %v1237, 4294901760
  %v1239 = vsub.f32 %v1237, %v1238
  %v1240 = vand.u32 %v1239, 4294901760
  %1241 = vmatpush.msra.mxu0 %v1240
  %v1242 = vand.u32 %v411, 4294901760
  %v1243 = vsub.f32 %v411, %v1242
  %v1244 = vand.u32 %v1243, 4294901760
  %v1245 = vsub.f32 %v1243, %v1244
  %v1246 = vand.u32 %v1245, 4294901760
  %1247 = vmatpush.msra.mxu0 %v1246
  %v1248 = vand.u32 %v410, 4294901760
  %v1249 = vsub.f32 %v410, %v1248
  %v1250 = vand.u32 %v1249, 4294901760
  %v1251 = vsub.f32 %v1249, %v1250
  %v1252 = vand.u32 %v1251, 4294901760
  %1253 = vmatpush.msra.mxu0 %v1252
  %v1254 = vand.u32 %v409, 4294901760
  %v1255 = vsub.f32 %v409, %v1254
  %v1256 = vand.u32 %v1255, 4294901760
  %v1257 = vsub.f32 %v1255, %v1256
  %v1258 = vand.u32 %v1257, 4294901760
  %1259 = vmatpush.msra.mxu0 %v1258
  %v1260 = vand.u32 %v408, 4294901760
  %v1261 = vsub.f32 %v408, %v1260
  %v1262 = vand.u32 %v1261, 4294901760
  %v1263 = vsub.f32 %v1261, %v1262
  %v1264 = vand.u32 %v1263, 4294901760
  %1265 = vmatpush.msra.mxu0 %v1264
  %v1266 = vand.u32 %v407, 4294901760
  %v1267 = vsub.f32 %v407, %v1266
  %v1268 = vand.u32 %v1267, 4294901760
  %v1269 = vsub.f32 %v1267, %v1268
  %v1270 = vand.u32 %v1269, 4294901760
  %1271 = vmatpush.msra.mxu0 %v1270
  %v1272 = vand.u32 %v406, 4294901760
  %v1273 = vsub.f32 %v406, %v1272
  %v1274 = vand.u32 %v1273, 4294901760
  %v1275 = vsub.f32 %v1273, %v1274
  %v1276 = vand.u32 %v1275, 4294901760
  %1277 = vmatpush.msra.mxu0 %v1276
  %v1278 = vand.u32 %v405, 4294901760
  %v1279 = vsub.f32 %v405, %v1278
  %v1280 = vand.u32 %v1279, 4294901760
  %v1281 = vsub.f32 %v1279, %v1280
  %v1282 = vand.u32 %v1281, 4294901760
  %1283 = vmatpush.msra.mxu0 %v1282
  %v1284 = vand.u32 %v404, 4294901760
  %v1285 = vsub.f32 %v404, %v1284
  %v1286 = vand.u32 %v1285, 4294901760
  %v1287 = vsub.f32 %v1285, %v1286
  %v1288 = vand.u32 %v1287, 4294901760
  %1289 = vmatpush.msra.mxu0 %v1288
  %v1290 = vand.u32 %v403, 4294901760
  %v1291 = vsub.f32 %v403, %v1290
  %v1292 = vand.u32 %v1291, 4294901760
  %v1293 = vsub.f32 %v1291, %v1292
  %v1294 = vand.u32 %v1293, 4294901760
  %1295 = vmatpush.msra.mxu0 %v1294
  %v1296 = vand.u32 %v402, 4294901760
  %v1297 = vsub.f32 %v402, %v1296
  %v1298 = vand.u32 %v1297, 4294901760
  %v1299 = vsub.f32 %v1297, %v1298
  %v1300 = vand.u32 %v1299, 4294901760
  %1301 = vmatpush.msra.mxu0 %v1300
  %v1302 = vand.u32 %v401, 4294901760
  %v1303 = vsub.f32 %v401, %v1302
  %v1304 = vand.u32 %v1303, 4294901760
  %v1305 = vsub.f32 %v1303, %v1304
  %v1306 = vand.u32 %v1305, 4294901760
  %1307 = vmatpush.msra.mxu0 %v1306
  %v1308 = vand.u32 %v400, 4294901760
  %v1309 = vsub.f32 %v400, %v1308
  %v1310 = vand.u32 %v1309, 4294901760
  %v1311 = vsub.f32 %v1309, %v1310
  %v1312 = vand.u32 %v1311, 4294901760
  %1313 = vmatpush.msra.mxu0 %v1312
  %v1314 = vand.u32 %v399, 4294901760
  %v1315 = vsub.f32 %v399, %v1314
  %v1316 = vand.u32 %v1315, 4294901760
  %v1317 = vsub.f32 %v1315, %v1316
  %v1318 = vand.u32 %v1317, 4294901760
  %1319 = vmatpush.msra.mxu0 %v1318
  %v1320 = vand.u32 %v35, 4294901760
  %1321 = vmatmul.f32.gmra.mxu0 %v1320
  %v1322 = vpop.f32.mrf.mxu0
  %v1323 = vadd.f32 %v1214, %v1322
  %v1324 = vand.u32 %v37, 4294901760
  %1325 = vmatmul.f32.gmra.mxu0 %v1324
  %v1326 = vpop.f32.mrf.mxu0
  %v1327 = vadd.f32 %v1222, %v1326
  %1328 = vdwg.mxu0
  %v1329 = vand.u32 %v414, 4294901760
  %v1330 = vsub.f32 %v414, %v1329
  %1331 = vmatpush.msra.mxu0 %v1330
  %v1332 = vand.u32 %v413, 4294901760
  %v1333 = vsub.f32 %v413, %v1332
  %1334 = vmatpush.msra.mxu0 %v1333
  %v1335 = vand.u32 %v412, 4294901760
  %v1336 = vsub.f32 %v412, %v1335
  %1337 = vmatpush.msra.mxu0 %v1336
  %v1338 = vand.u32 %v411, 4294901760
  %v1339 = vsub.f32 %v411, %v1338
  %1340 = vmatpush.msra.mxu0 %v1339
  %v1341 = vand.u32 %v410, 4294901760
  %v1342 = vsub.f32 %v410, %v1341
  %1343 = vmatpush.msra.mxu0 %v1342
  %v1344 = vand.u32 %v409, 4294901760
  %v1345 = vsub.f32 %v409, %v1344
  %1346 = vmatpush.msra.mxu0 %v1345
  %v1347 = vand.u32 %v408, 4294901760
  %v1348 = vsub.f32 %v408, %v1347
  %1349 = vmatpush.msra.mxu0 %v1348
  %v1350 = vand.u32 %v407, 4294901760
  %v1351 = vsub.f32 %v407, %v1350
  %1352 = vmatpush.msra.mxu0 %v1351
  %v1353 = vand.u32 %v406, 4294901760
  %v1354 = vsub.f32 %v406, %v1353
  %1355 = vmatpush.msra.mxu0 %v1354
  %v1356 = vand.u32 %v405, 4294901760
  %v1357 = vsub.f32 %v405, %v1356
  %1358 = vmatpush.msra.mxu0 %v1357
  %v1359 = vand.u32 %v404, 4294901760
  %v1360 = vsub.f32 %v404, %v1359
  %1361 = vmatpush.msra.mxu0 %v1360
  %v1362 = vand.u32 %v403, 4294901760
  %v1363 = vsub.f32 %v403, %v1362
  %1364 = vmatpush.msra.mxu0 %v1363
  %v1365 = vand.u32 %v402, 4294901760
  %v1366 = vsub.f32 %v402, %v1365
  %1367 = vmatpush.msra.mxu0 %v1366
  %v1368 = vand.u32 %v401, 4294901760
  %v1369 = vsub.f32 %v401, %v1368
  %1370 = vmatpush.msra.mxu0 %v1369
  %v1371 = vand.u32 %v400, 4294901760
  %v1372 = vsub.f32 %v400, %v1371
  %1373 = vmatpush.msra.mxu0 %v1372
  %v1374 = vand.u32 %v399, 4294901760
  %v1375 = vsub.f32 %v399, %v1374
  %1376 = vmatpush.msra.mxu0 %v1375
  %v1377 = vand.u32 %v35, 4294901760
  %v1378 = vsub.f32 %v35, %v1377
  %1379 = vmatmul.f32.gmra.mxu0 %v1378
  %v1380 = vpop.f32.mrf.mxu0
  %v1381 = vadd.f32 %v1323, %v1380
  %v1382 = vand.u32 %v37, 4294901760
  %v1383 = vsub.f32 %v37, %v1382
  %1384 = vmatmul.f32.gmra.mxu0 %v1383
  %v1385 = vpop.f32.mrf.mxu0
  %v1386 = vadd.f32 %v1327, %v1385
  %1387 = vdwg.mxu0
  %v1388 = vand.u32 %v414, 4294901760
  %1389 = vmatpush.msra.mxu0 %v1388
  %v1390 = vand.u32 %v413, 4294901760
  %1391 = vmatpush.msra.mxu0 %v1390
  %v1392 = vand.u32 %v412, 4294901760
  %1393 = vmatpush.msra.mxu0 %v1392
  %v1394 = vand.u32 %v411, 4294901760
  %1395 = vmatpush.msra.mxu0 %v1394
  %v1396 = vand.u32 %v410, 4294901760
  %1397 = vmatpush.msra.mxu0 %v1396
  %v1398 = vand.u32 %v409, 4294901760
  %1399 = vmatpush.msra.mxu0 %v1398
  %v1400 = vand.u32 %v408, 4294901760
  %1401 = vmatpush.msra.mxu0 %v1400
  %v1402 = vand.u32 %v407, 4294901760
  %1403 = vmatpush.msra.mxu0 %v1402
  %v1404 = vand.u32 %v406, 4294901760
  %1405 = vmatpush.msra.mxu0 %v1404
  %v1406 = vand.u32 %v405, 4294901760
  %1407 = vmatpush.msra.mxu0 %v1406
  %v1408 = vand.u32 %v404, 4294901760
  %1409 = vmatpush.msra.mxu0 %v1408
  %v1410 = vand.u32 %v403, 4294901760
  %1411 = vmatpush.msra.mxu0 %v1410
  %v1412 = vand.u32 %v402, 4294901760
  %1413 = vmatpush.msra.mxu0 %v1412
  %v1414 = vand.u32 %v401, 4294901760
  %1415 = vmatpush.msra.mxu0 %v1414
  %v1416 = vand.u32 %v400, 4294901760
  %1417 = vmatpush.msra.mxu0 %v1416
  %v1418 = vand.u32 %v399, 4294901760
  %1419 = vmatpush.msra.mxu0 %v1418
  %v1420 = vand.u32 %v35, 4294901760
  %v1421 = vsub.f32 %v35, %v1420
  %v1422 = vand.u32 %v1421, 4294901760
  %1423 = vmatmul.f32.gmra.mxu0 %v1422
  %v1424 = vpop.f32.mrf.mxu0
  %v1425 = vadd.f32 %v1381, %v1424
  %v1426 = vand.u32 %v37, 4294901760
  %v1427 = vsub.f32 %v37, %v1426
  %v1428 = vand.u32 %v1427, 4294901760
  %1429 = vmatmul.f32.gmra.mxu0 %v1428
  %v1430 = vpop.f32.mrf.mxu0
  %v1431 = vadd.f32 %v1386, %v1430
  %1432 = vdwg.mxu0
  %v1433 = vand.u32 %v414, 4294901760
  %v1434 = vsub.f32 %v414, %v1433
  %v1435 = vand.u32 %v1434, 4294901760
  %1436 = vmatpush.msra.mxu0 %v1435
  %v1437 = vand.u32 %v413, 4294901760
  %v1438 = vsub.f32 %v413, %v1437
  %v1439 = vand.u32 %v1438, 4294901760
  %1440 = vmatpush.msra.mxu0 %v1439
  %v1441 = vand.u32 %v412, 4294901760
  %v1442 = vsub.f32 %v412, %v1441
  %v1443 = vand.u32 %v1442, 4294901760
  %1444 = vmatpush.msra.mxu0 %v1443
  %v1445 = vand.u32 %v411, 4294901760
  %v1446 = vsub.f32 %v411, %v1445
  %v1447 = vand.u32 %v1446, 4294901760
  %1448 = vmatpush.msra.mxu0 %v1447
  %v1449 = vand.u32 %v410, 4294901760
  %v1450 = vsub.f32 %v410, %v1449
  %v1451 = vand.u32 %v1450, 4294901760
  %1452 = vmatpush.msra.mxu0 %v1451
  %v1453 = vand.u32 %v409, 4294901760
  %v1454 = vsub.f32 %v409, %v1453
  %v1455 = vand.u32 %v1454, 4294901760
  %1456 = vmatpush.msra.mxu0 %v1455
  %v1457 = vand.u32 %v408, 4294901760
  %v1458 = vsub.f32 %v408, %v1457
  %v1459 = vand.u32 %v1458, 4294901760
  %1460 = vmatpush.msra.mxu0 %v1459
  %v1461 = vand.u32 %v407, 4294901760
  %v1462 = vsub.f32 %v407, %v1461
  %v1463 = vand.u32 %v1462, 4294901760
  %1464 = vmatpush.msra.mxu0 %v1463
  %v1465 = vand.u32 %v406, 4294901760
  %v1466 = vsub.f32 %v406, %v1465
  %v1467 = vand.u32 %v1466, 4294901760
  %1468 = vmatpush.msra.mxu0 %v1467
  %v1469 = vand.u32 %v405, 4294901760
  %v1470 = vsub.f32 %v405, %v1469
  %v1471 = vand.u32 %v1470, 4294901760
  %1472 = vmatpush.msra.mxu0 %v1471
  %v1473 = vand.u32 %v404, 4294901760
  %v1474 = vsub.f32 %v404, %v1473
  %v1475 = vand.u32 %v1474, 4294901760
  %1476 = vmatpush.msra.mxu0 %v1475
  %v1477 = vand.u32 %v403, 4294901760
  %v1478 = vsub.f32 %v403, %v1477
  %v1479 = vand.u32 %v1478, 4294901760
  %1480 = vmatpush.msra.mxu0 %v1479
  %v1481 = vand.u32 %v402, 4294901760
  %v1482 = vsub.f32 %v402, %v1481
  %v1483 = vand.u32 %v1482, 4294901760
  %1484 = vmatpush.msra.mxu0 %v1483
  %v1485 = vand.u32 %v401, 4294901760
  %v1486 = vsub.f32 %v401, %v1485
  %v1487 = vand.u32 %v1486, 4294901760
  %1488 = vmatpush.msra.mxu0 %v1487
  %v1489 = vand.u32 %v400, 4294901760
  %v1490 = vsub.f32 %v400, %v1489
  %v1491 = vand.u32 %v1490, 4294901760
  %1492 = vmatpush.msra.mxu0 %v1491
  %v1493 = vand.u32 %v399, 4294901760
  %v1494 = vsub.f32 %v399, %v1493
  %v1495 = vand.u32 %v1494, 4294901760
  %1496 = vmatpush.msra.mxu0 %v1495
  %v1497 = vand.u32 %v35, 4294901760
  %1498 = vmatmul.f32.gmra.mxu0 %v1497
  %v1499 = vpop.f32.mrf.mxu0
  %v1500 = vadd.f32 %v1425, %v1499
  %v1501 = vand.u32 %v37, 4294901760
  %1502 = vmatmul.f32.gmra.mxu0 %v1501
  %v1503 = vpop.f32.mrf.mxu0
  %v1504 = vadd.f32 %v1431, %v1503
  %1505 = vdwg.mxu0
  %v1506 = vand.u32 %v414, 4294901760
  %1507 = vmatpush.msra.mxu0 %v1506
  %v1508 = vand.u32 %v413, 4294901760
  %1509 = vmatpush.msra.mxu0 %v1508
  %v1510 = vand.u32 %v412, 4294901760
  %1511 = vmatpush.msra.mxu0 %v1510
  %v1512 = vand.u32 %v411, 4294901760
  %1513 = vmatpush.msra.mxu0 %v1512
  %v1514 = vand.u32 %v410, 4294901760
  %1515 = vmatpush.msra.mxu0 %v1514
  %v1516 = vand.u32 %v409, 4294901760
  %1517 = vmatpush.msra.mxu0 %v1516
  %v1518 = vand.u32 %v408, 4294901760
  %1519 = vmatpush.msra.mxu0 %v1518
  %v1520 = vand.u32 %v407, 4294901760
  %1521 = vmatpush.msra.mxu0 %v1520
  %v1522 = vand.u32 %v406, 4294901760
  %1523 = vmatpush.msra.mxu0 %v1522
  %v1524 = vand.u32 %v405, 4294901760
  %1525 = vmatpush.msra.mxu0 %v1524
  %v1526 = vand.u32 %v404, 4294901760
  %1527 = vmatpush.msra.mxu0 %v1526
  %v1528 = vand.u32 %v403, 4294901760
  %1529 = vmatpush.msra.mxu0 %v1528
  %v1530 = vand.u32 %v402, 4294901760
  %1531 = vmatpush.msra.mxu0 %v1530
  %v1532 = vand.u32 %v401, 4294901760
  %1533 = vmatpush.msra.mxu0 %v1532
  %v1534 = vand.u32 %v400, 4294901760
  %1535 = vmatpush.msra.mxu0 %v1534
  %v1536 = vand.u32 %v399, 4294901760
  %1537 = vmatpush.msra.mxu0 %v1536
  %v1538 = vand.u32 %v35, 4294901760
  %1539 = vmatmul.f32.gmra.mxu0 %v1538
  %v1540 = vpop.f32.mrf.mxu0
  %v1541 = vadd.f32 %v1500, %v1540
  %v1542 = vand.u32 %v37, 4294901760
  %1543 = vmatmul.f32.gmra.mxu0 %v1542
  %v1544 = vpop.f32.mrf.mxu0
  %v1545 = vadd.f32 %v1504, %v1544
  %1546 = vdwg.mxu0
  %v1547 = vand.u32 %v430, 4294901760
  %1548 = vmatpush.msra.mxu0 %v1547
  %v1549 = vand.u32 %v429, 4294901760
  %1550 = vmatpush.msra.mxu0 %v1549
  %v1551 = vand.u32 %v428, 4294901760
  %1552 = vmatpush.msra.mxu0 %v1551
  %v1553 = vand.u32 %v427, 4294901760
  %1554 = vmatpush.msra.mxu0 %v1553
  %v1555 = vand.u32 %v426, 4294901760
  %1556 = vmatpush.msra.mxu0 %v1555
  %v1557 = vand.u32 %v425, 4294901760
  %1558 = vmatpush.msra.mxu0 %v1557
  %v1559 = vand.u32 %v424, 4294901760
  %1560 = vmatpush.msra.mxu0 %v1559
  %v1561 = vand.u32 %v423, 4294901760
  %1562 = vmatpush.msra.mxu0 %v1561
  %v1563 = vand.u32 %v422, 4294901760
  %1564 = vmatpush.msra.mxu0 %v1563
  %v1565 = vand.u32 %v421, 4294901760
  %1566 = vmatpush.msra.mxu0 %v1565
  %v1567 = vand.u32 %v420, 4294901760
  %1568 = vmatpush.msra.mxu0 %v1567
  %v1569 = vand.u32 %v419, 4294901760
  %1570 = vmatpush.msra.mxu0 %v1569
  %v1571 = vand.u32 %v418, 4294901760
  %1572 = vmatpush.msra.mxu0 %v1571
  %v1573 = vand.u32 %v417, 4294901760
  %1574 = vmatpush.msra.mxu0 %v1573
  %v1575 = vand.u32 %v416, 4294901760
  %1576 = vmatpush.msra.mxu0 %v1575
  %v1577 = vand.u32 %v415, 4294901760
  %1578 = vmatpush.msra.mxu0 %v1577
  %v1579 = vand.u32 %v36, 4294901760
  %v1580 = vsub.f32 %v36, %v1579
  %v1581 = vand.u32 %v1580, 4294901760
  %v1582 = vsub.f32 %v1580, %v1581
  %v1583 = vand.u32 %v1582, 4294901760
  %1584 = vmatmul.f32.gmra.mxu0 %v1583
  %v1585 = vpop.f32.mrf.mxu0
  %v1586 = vadd.f32 %v1541, %v1585
  %v1587 = vand.u32 %v38, 4294901760
  %v1588 = vsub.f32 %v38, %v1587
  %v1589 = vand.u32 %v1588, 4294901760
  %v1590 = vsub.f32 %v1588, %v1589
  %v1591 = vand.u32 %v1590, 4294901760
  %1592 = vmatmul.f32.gmra.mxu0 %v1591
  %v1593 = vpop.f32.mrf.mxu0
  %v1594 = vadd.f32 %v1545, %v1593
  %1595 = vdwg.mxu0
  %v1596 = vand.u32 %v430, 4294901760
  %v1597 = vsub.f32 %v430, %v1596
  %v1598 = vand.u32 %v1597, 4294901760
  %v1599 = vsub.f32 %v1597, %v1598
  %v1600 = vand.u32 %v1599, 4294901760
  %1601 = vmatpush.msra.mxu0 %v1600
  %v1602 = vand.u32 %v429, 4294901760
  %v1603 = vsub.f32 %v429, %v1602
  %v1604 = vand.u32 %v1603, 4294901760
  %v1605 = vsub.f32 %v1603, %v1604
  %v1606 = vand.u32 %v1605, 4294901760
  %1607 = vmatpush.msra.mxu0 %v1606
  %v1608 = vand.u32 %v428, 4294901760
  %v1609 = vsub.f32 %v428, %v1608
  %v1610 = vand.u32 %v1609, 4294901760
  %v1611 = vsub.f32 %v1609, %v1610
  %v1612 = vand.u32 %v1611, 4294901760
  %1613 = vmatpush.msra.mxu0 %v1612
  %v1614 = vand.u32 %v427, 4294901760
  %v1615 = vsub.f32 %v427, %v1614
  %v1616 = vand.u32 %v1615, 4294901760
  %v1617 = vsub.f32 %v1615, %v1616
  %v1618 = vand.u32 %v1617, 4294901760
  %1619 = vmatpush.msra.mxu0 %v1618
  %v1620 = vand.u32 %v426, 4294901760
  %v1621 = vsub.f32 %v426, %v1620
  %v1622 = vand.u32 %v1621, 4294901760
  %v1623 = vsub.f32 %v1621, %v1622
  %v1624 = vand.u32 %v1623, 4294901760
  %1625 = vmatpush.msra.mxu0 %v1624
  %v1626 = vand.u32 %v425, 4294901760
  %v1627 = vsub.f32 %v425, %v1626
  %v1628 = vand.u32 %v1627, 4294901760
  %v1629 = vsub.f32 %v1627, %v1628
  %v1630 = vand.u32 %v1629, 4294901760
  %1631 = vmatpush.msra.mxu0 %v1630
  %v1632 = vand.u32 %v424, 4294901760
  %v1633 = vsub.f32 %v424, %v1632
  %v1634 = vand.u32 %v1633, 4294901760
  %v1635 = vsub.f32 %v1633, %v1634
  %v1636 = vand.u32 %v1635, 4294901760
  %1637 = vmatpush.msra.mxu0 %v1636
  %v1638 = vand.u32 %v423, 4294901760
  %v1639 = vsub.f32 %v423, %v1638
  %v1640 = vand.u32 %v1639, 4294901760
  %v1641 = vsub.f32 %v1639, %v1640
  %v1642 = vand.u32 %v1641, 4294901760
  %1643 = vmatpush.msra.mxu0 %v1642
  %v1644 = vand.u32 %v422, 4294901760
  %v1645 = vsub.f32 %v422, %v1644
  %v1646 = vand.u32 %v1645, 4294901760
  %v1647 = vsub.f32 %v1645, %v1646
  %v1648 = vand.u32 %v1647, 4294901760
  %1649 = vmatpush.msra.mxu0 %v1648
  %v1650 = vand.u32 %v421, 4294901760
  %v1651 = vsub.f32 %v421, %v1650
  %v1652 = vand.u32 %v1651, 4294901760
  %v1653 = vsub.f32 %v1651, %v1652
  %v1654 = vand.u32 %v1653, 4294901760
  %1655 = vmatpush.msra.mxu0 %v1654
  %v1656 = vand.u32 %v420, 4294901760
  %v1657 = vsub.f32 %v420, %v1656
  %v1658 = vand.u32 %v1657, 4294901760
  %v1659 = vsub.f32 %v1657, %v1658
  %v1660 = vand.u32 %v1659, 4294901760
  %1661 = vmatpush.msra.mxu0 %v1660
  %v1662 = vand.u32 %v419, 4294901760
  %v1663 = vsub.f32 %v419, %v1662
  %v1664 = vand.u32 %v1663, 4294901760
  %v1665 = vsub.f32 %v1663, %v1664
  %v1666 = vand.u32 %v1665, 4294901760
  %1667 = vmatpush.msra.mxu0 %v1666
  %v1668 = vand.u32 %v418, 4294901760
  %v1669 = vsub.f32 %v418, %v1668
  %v1670 = vand.u32 %v1669, 4294901760
  %v1671 = vsub.f32 %v1669, %v1670
  %v1672 = vand.u32 %v1671, 4294901760
  %1673 = vmatpush.msra.mxu0 %v1672
  %v1674 = vand.u32 %v417, 4294901760
  %v1675 = vsub.f32 %v417, %v1674
  %v1676 = vand.u32 %v1675, 4294901760
  %v1677 = vsub.f32 %v1675, %v1676
  %v1678 = vand.u32 %v1677, 4294901760
  %1679 = vmatpush.msra.mxu0 %v1678
  %v1680 = vand.u32 %v416, 4294901760
  %v1681 = vsub.f32 %v416, %v1680
  %v1682 = vand.u32 %v1681, 4294901760
  %v1683 = vsub.f32 %v1681, %v1682
  %v1684 = vand.u32 %v1683, 4294901760
  %1685 = vmatpush.msra.mxu0 %v1684
  %v1686 = vand.u32 %v415, 4294901760
  %v1687 = vsub.f32 %v415, %v1686
  %v1688 = vand.u32 %v1687, 4294901760
  %v1689 = vsub.f32 %v1687, %v1688
  %v1690 = vand.u32 %v1689, 4294901760
  %1691 = vmatpush.msra.mxu0 %v1690
  %v1692 = vand.u32 %v36, 4294901760
  %1693 = vmatmul.f32.gmra.mxu0 %v1692
  %v1694 = vpop.f32.mrf.mxu0
  %v1695 = vadd.f32 %v1586, %v1694
  %v1696 = vand.u32 %v38, 4294901760
  %1697 = vmatmul.f32.gmra.mxu0 %v1696
  %v1698 = vpop.f32.mrf.mxu0
  %v1699 = vadd.f32 %v1594, %v1698
  %1700 = vdwg.mxu0
  %v1701 = vand.u32 %v430, 4294901760
  %v1702 = vsub.f32 %v430, %v1701
  %1703 = vmatpush.msra.mxu0 %v1702
  %v1704 = vand.u32 %v429, 4294901760
  %v1705 = vsub.f32 %v429, %v1704
  %1706 = vmatpush.msra.mxu0 %v1705
  %v1707 = vand.u32 %v428, 4294901760
  %v1708 = vsub.f32 %v428, %v1707
  %1709 = vmatpush.msra.mxu0 %v1708
  %v1710 = vand.u32 %v427, 4294901760
  %v1711 = vsub.f32 %v427, %v1710
  %1712 = vmatpush.msra.mxu0 %v1711
  %v1713 = vand.u32 %v426, 4294901760
  %v1714 = vsub.f32 %v426, %v1713
  %1715 = vmatpush.msra.mxu0 %v1714
  %v1716 = vand.u32 %v425, 4294901760
  %v1717 = vsub.f32 %v425, %v1716
  %1718 = vmatpush.msra.mxu0 %v1717
  %v1719 = vand.u32 %v424, 4294901760
  %v1720 = vsub.f32 %v424, %v1719
  %1721 = vmatpush.msra.mxu0 %v1720
  %v1722 = vand.u32 %v423, 4294901760
  %v1723 = vsub.f32 %v423, %v1722
  %1724 = vmatpush.msra.mxu0 %v1723
  %v1725 = vand.u32 %v422, 4294901760
  %v1726 = vsub.f32 %v422, %v1725
  %1727 = vmatpush.msra.mxu0 %v1726
  %v1728 = vand.u32 %v421, 4294901760
  %v1729 = vsub.f32 %v421, %v1728
  %1730 = vmatpush.msra.mxu0 %v1729
  %v1731 = vand.u32 %v420, 4294901760
  %v1732 = vsub.f32 %v420, %v1731
  %1733 = vmatpush.msra.mxu0 %v1732
  %v1734 = vand.u32 %v419, 4294901760
  %v1735 = vsub.f32 %v419, %v1734
  %1736 = vmatpush.msra.mxu0 %v1735
  %v1737 = vand.u32 %v418, 4294901760
  %v1738 = vsub.f32 %v418, %v1737
  %1739 = vmatpush.msra.mxu0 %v1738
  %v1740 = vand.u32 %v417, 4294901760
  %v1741 = vsub.f32 %v417, %v1740
  %1742 = vmatpush.msra.mxu0 %v1741
  %v1743 = vand.u32 %v416, 4294901760
  %v1744 = vsub.f32 %v416, %v1743
  %1745 = vmatpush.msra.mxu0 %v1744
  %v1746 = vand.u32 %v415, 4294901760
  %v1747 = vsub.f32 %v415, %v1746
  %1748 = vmatpush.msra.mxu0 %v1747
  %v1749 = vand.u32 %v36, 4294901760
  %v1750 = vsub.f32 %v36, %v1749
  %1751 = vmatmul.f32.gmra.mxu0 %v1750
  %v1752 = vpop.f32.mrf.mxu0
  %v1753 = vadd.f32 %v1695, %v1752
  %v1754 = vand.u32 %v38, 4294901760
  %v1755 = vsub.f32 %v38, %v1754
  %1756 = vmatmul.f32.gmra.mxu0 %v1755
  %v1757 = vpop.f32.mrf.mxu0
  %v1758 = vadd.f32 %v1699, %v1757
  %1759 = vdwg.mxu0
  %v1760 = vand.u32 %v430, 4294901760
  %1761 = vmatpush.msra.mxu0 %v1760
  %v1762 = vand.u32 %v429, 4294901760
  %1763 = vmatpush.msra.mxu0 %v1762
  %v1764 = vand.u32 %v428, 4294901760
  %1765 = vmatpush.msra.mxu0 %v1764
  %v1766 = vand.u32 %v427, 4294901760
  %1767 = vmatpush.msra.mxu0 %v1766
  %v1768 = vand.u32 %v426, 4294901760
  %1769 = vmatpush.msra.mxu0 %v1768
  %v1770 = vand.u32 %v425, 4294901760
  %1771 = vmatpush.msra.mxu0 %v1770
  %v1772 = vand.u32 %v424, 4294901760
  %1773 = vmatpush.msra.mxu0 %v1772
  %v1774 = vand.u32 %v423, 4294901760
  %1775 = vmatpush.msra.mxu0 %v1774
  %v1776 = vand.u32 %v422, 4294901760
  %1777 = vmatpush.msra.mxu0 %v1776
  %v1778 = vand.u32 %v421, 4294901760
  %1779 = vmatpush.msra.mxu0 %v1778
  %v1780 = vand.u32 %v420, 4294901760
  %1781 = vmatpush.msra.mxu0 %v1780
  %v1782 = vand.u32 %v419, 4294901760
  %1783 = vmatpush.msra.mxu0 %v1782
  %v1784 = vand.u32 %v418, 4294901760
  %1785 = vmatpush.msra.mxu0 %v1784
  %v1786 = vand.u32 %v417, 4294901760
  %1787 = vmatpush.msra.mxu0 %v1786
  %v1788 = vand.u32 %v416, 4294901760
  %1789 = vmatpush.msra.mxu0 %v1788
  %v1790 = vand.u32 %v415, 4294901760
  %1791 = vmatpush.msra.mxu0 %v1790
  %v1792 = vand.u32 %v36, 4294901760
  %v1793 = vsub.f32 %v36, %v1792
  %v1794 = vand.u32 %v1793, 4294901760
  %1795 = vmatmul.f32.gmra.mxu0 %v1794
  %v1796 = vpop.f32.mrf.mxu0
  %v1797 = vadd.f32 %v1753, %v1796
  %v1798 = vand.u32 %v38, 4294901760
  %v1799 = vsub.f32 %v38, %v1798
  %v1800 = vand.u32 %v1799, 4294901760
  %1801 = vmatmul.f32.gmra.mxu0 %v1800
  %v1802 = vpop.f32.mrf.mxu0
  %v1803 = vadd.f32 %v1758, %v1802
  %1804 = vdwg.mxu0
  %v1805 = vand.u32 %v430, 4294901760
  %v1806 = vsub.f32 %v430, %v1805
  %v1807 = vand.u32 %v1806, 4294901760
  %1808 = vmatpush.msra.mxu0 %v1807
  %v1809 = vand.u32 %v429, 4294901760
  %v1810 = vsub.f32 %v429, %v1809
  %v1811 = vand.u32 %v1810, 4294901760
  %1812 = vmatpush.msra.mxu0 %v1811
  %v1813 = vand.u32 %v428, 4294901760
  %v1814 = vsub.f32 %v428, %v1813
  %v1815 = vand.u32 %v1814, 4294901760
  %1816 = vmatpush.msra.mxu0 %v1815
  %v1817 = vand.u32 %v427, 4294901760
  %v1818 = vsub.f32 %v427, %v1817
  %v1819 = vand.u32 %v1818, 4294901760
  %1820 = vmatpush.msra.mxu0 %v1819
  %v1821 = vand.u32 %v426, 4294901760
  %v1822 = vsub.f32 %v426, %v1821
  %v1823 = vand.u32 %v1822, 4294901760
  %1824 = vmatpush.msra.mxu0 %v1823
  %v1825 = vand.u32 %v425, 4294901760
  %v1826 = vsub.f32 %v425, %v1825
  %v1827 = vand.u32 %v1826, 4294901760
  %1828 = vmatpush.msra.mxu0 %v1827
  %v1829 = vand.u32 %v424, 4294901760
  %v1830 = vsub.f32 %v424, %v1829
  %v1831 = vand.u32 %v1830, 4294901760
  %1832 = vmatpush.msra.mxu0 %v1831
  %v1833 = vand.u32 %v423, 4294901760
  %v1834 = vsub.f32 %v423, %v1833
  %v1835 = vand.u32 %v1834, 4294901760
  %1836 = vmatpush.msra.mxu0 %v1835
  %v1837 = vand.u32 %v422, 4294901760
  %v1838 = vsub.f32 %v422, %v1837
  %v1839 = vand.u32 %v1838, 4294901760
  %1840 = vmatpush.msra.mxu0 %v1839
  %v1841 = vand.u32 %v421, 4294901760
  %v1842 = vsub.f32 %v421, %v1841
  %v1843 = vand.u32 %v1842, 4294901760
  %1844 = vmatpush.msra.mxu0 %v1843
  %v1845 = vand.u32 %v420, 4294901760
  %v1846 = vsub.f32 %v420, %v1845
  %v1847 = vand.u32 %v1846, 4294901760
  %1848 = vmatpush.msra.mxu0 %v1847
  %v1849 = vand.u32 %v419, 4294901760
  %v1850 = vsub.f32 %v419, %v1849
  %v1851 = vand.u32 %v1850, 4294901760
  %1852 = vmatpush.msra.mxu0 %v1851
  %v1853 = vand.u32 %v418, 4294901760
  %v1854 = vsub.f32 %v418, %v1853
  %v1855 = vand.u32 %v1854, 4294901760
  %1856 = vmatpush.msra.mxu0 %v1855
  %v1857 = vand.u32 %v417, 4294901760
  %v1858 = vsub.f32 %v417, %v1857
  %v1859 = vand.u32 %v1858, 4294901760
  %1860 = vmatpush.msra.mxu0 %v1859
  %v1861 = vand.u32 %v416, 4294901760
  %v1862 = vsub.f32 %v416, %v1861
  %v1863 = vand.u32 %v1862, 4294901760
  %1864 = vmatpush.msra.mxu0 %v1863
  %v1865 = vand.u32 %v415, 4294901760
  %v1866 = vsub.f32 %v415, %v1865
  %v1867 = vand.u32 %v1866, 4294901760
  %1868 = vmatpush.msra.mxu0 %v1867
  %v1869 = vand.u32 %v36, 4294901760
  %1870 = vmatmul.f32.gmra.mxu0 %v1869
  %v1871 = vpop.f32.mrf.mxu0
  %v1872 = vadd.f32 %v1797, %v1871
  %v1873 = vand.u32 %v38, 4294901760
  %1874 = vmatmul.f32.gmra.mxu0 %v1873
  %v1875 = vpop.f32.mrf.mxu0
  %v1876 = vadd.f32 %v1803, %v1875
  %1877 = vdwg.mxu0
  %v1878 = vand.u32 %v430, 4294901760
  %1879 = vmatpush.msra.mxu0 %v1878
  %v1880 = vand.u32 %v429, 4294901760
  %1881 = vmatpush.msra.mxu0 %v1880
  %v1882 = vand.u32 %v428, 4294901760
  %1883 = vmatpush.msra.mxu0 %v1882
  %v1884 = vand.u32 %v427, 4294901760
  %1885 = vmatpush.msra.mxu0 %v1884
  %v1886 = vand.u32 %v426, 4294901760
  %1887 = vmatpush.msra.mxu0 %v1886
  %v1888 = vand.u32 %v425, 4294901760
  %1889 = vmatpush.msra.mxu0 %v1888
  %v1890 = vand.u32 %v424, 4294901760
  %1891 = vmatpush.msra.mxu0 %v1890
  %v1892 = vand.u32 %v423, 4294901760
  %1893 = vmatpush.msra.mxu0 %v1892
  %v1894 = vand.u32 %v422, 4294901760
  %1895 = vmatpush.msra.mxu0 %v1894
  %v1896 = vand.u32 %v421, 4294901760
  %1897 = vmatpush.msra.mxu0 %v1896
  %v1898 = vand.u32 %v420, 4294901760
  %1899 = vmatpush.msra.mxu0 %v1898
  %v1900 = vand.u32 %v419, 4294901760
  %1901 = vmatpush.msra.mxu0 %v1900
  %v1902 = vand.u32 %v418, 4294901760
  %1903 = vmatpush.msra.mxu0 %v1902
  %v1904 = vand.u32 %v417, 4294901760
  %1905 = vmatpush.msra.mxu0 %v1904
  %v1906 = vand.u32 %v416, 4294901760
  %1907 = vmatpush.msra.mxu0 %v1906
  %v1908 = vand.u32 %v415, 4294901760
  %1909 = vmatpush.msra.mxu0 %v1908
  %v1910 = vand.u32 %v36, 4294901760
  %1911 = vmatmul.f32.gmra.mxu0 %v1910
  %v1912 = vpop.f32.mrf.mxu0
  %v1913 = vadd.f32 %v1872, %v1912
  %v1914 = vand.u32 %v38, 4294901760
  %1915 = vmatmul.f32.gmra.mxu0 %v1914
  %v1916 = vpop.f32.mrf.mxu0
  %v1917 = vadd.f32 %v1876, %v1916
  %1918 = vdwg.mxu0
  %1921 = vrot.lane.b32.xlu0 %v1913, 16
  %v1922 = vpop.permute.xlu0 %1921
  %1923 = vrot.lane.b32.xlu0 %v1917, 16
  %v1924 = vpop.permute.xlu0 %1923
  %v1927 = vsel %vm41, %v1169, %v1922
  %v1928 = vsel %vm41, %v1173, %v1924
  %v1929 = vld [vmem:[%s5] sm:$0xf]
  %v1930 = vld [vmem:[%s6] sm:$0xf]
  %1932 = vset.pattern.permute.xlu0 0
  %1933 = vperm.xlu0 %1932, %v1930
  %v1934 = vpop.permute.xlu0 %1933
  %v1937 = vsel %vm41, %v1929, 0
  %1939 = vmatpush.msra.mxu0 0.0
  %1940 = vmatpush.msra.mxu0 0.0
  %1941 = vmatpush.msra.mxu0 0.0
  %1942 = vmatpush.msra.mxu0 0.0
  %1943 = vmatpush.msra.mxu0 0.0
  %1944 = vmatpush.msra.mxu0 0.0
  %1945 = vmatpush.msra.mxu0 0.0
  %1946 = vmatpush.msra.mxu0 0.0
  %1947 = vmatpush.msra.mxu0 0.0
  %1948 = vmatpush.msra.mxu0 0.0
  %1949 = vmatpush.msra.mxu0 0.0
  %1950 = vmatpush.msra.mxu0 0.0
  %1951 = vmatpush.msra.mxu0 0.0
  %1952 = vmatpush.msra.mxu0 0.0
  %v1953 = vand.u32 %v1928, 4294901760
  %1954 = vmatpush.msra.mxu0 %v1953
  %v1955 = vand.u32 %v1927, 4294901760
  %1956 = vmatpush.msra.mxu0 %v1955
  %v1957 = vand.u32 %v1937, 4294901760
  %v1958 = vsub.f32 %v1937, %v1957
  %v1959 = vand.u32 %v1958, 4294901760
  %v1960 = vsub.f32 %v1958, %v1959
  %v1961 = vand.u32 %v1960, 4294901760
  %1962 = vmatmul.f32.gmra.mxu0 %v1961
  %v1963 = vpop.f32.mrf.mxu0
  %v1964 = vadd.f32 %v1934, %v1963
  %1965 = vdwg.mxu0
  %1966 = vmatpush.msra.mxu0 0.0
  %1967 = vmatpush.msra.mxu0 0.0
  %1968 = vmatpush.msra.mxu0 0.0
  %1969 = vmatpush.msra.mxu0 0.0
  %1970 = vmatpush.msra.mxu0 0.0
  %1971 = vmatpush.msra.mxu0 0.0
  %1972 = vmatpush.msra.mxu0 0.0
  %1973 = vmatpush.msra.mxu0 0.0
  %1974 = vmatpush.msra.mxu0 0.0
  %1975 = vmatpush.msra.mxu0 0.0
  %1976 = vmatpush.msra.mxu0 0.0
  %1977 = vmatpush.msra.mxu0 0.0
  %1978 = vmatpush.msra.mxu0 0.0
  %1979 = vmatpush.msra.mxu0 0.0
  %v1980 = vand.u32 %v1928, 4294901760
  %v1981 = vsub.f32 %v1928, %v1980
  %v1982 = vand.u32 %v1981, 4294901760
  %v1983 = vsub.f32 %v1981, %v1982
  %v1984 = vand.u32 %v1983, 4294901760
  %1985 = vmatpush.msra.mxu0 %v1984
  %v1986 = vand.u32 %v1927, 4294901760
  %v1987 = vsub.f32 %v1927, %v1986
  %v1988 = vand.u32 %v1987, 4294901760
  %v1989 = vsub.f32 %v1987, %v1988
  %v1990 = vand.u32 %v1989, 4294901760
  %1991 = vmatpush.msra.mxu0 %v1990
  %v1992 = vand.u32 %v1937, 4294901760
  %1993 = vmatmul.f32.gmra.mxu0 %v1992
  %v1994 = vpop.f32.mrf.mxu0
  %v1995 = vadd.f32 %v1964, %v1994
  %1996 = vdwg.mxu0
  %1997 = vmatpush.msra.mxu0 0.0
  %1998 = vmatpush.msra.mxu0 0.0
  %1999 = vmatpush.msra.mxu0 0.0
  %2000 = vmatpush.msra.mxu0 0.0
  %2001 = vmatpush.msra.mxu0 0.0
  %2002 = vmatpush.msra.mxu0 0.0
  %2003 = vmatpush.msra.mxu0 0.0
  %2004 = vmatpush.msra.mxu0 0.0
  %2005 = vmatpush.msra.mxu0 0.0
  %2006 = vmatpush.msra.mxu0 0.0
  %2007 = vmatpush.msra.mxu0 0.0
  %2008 = vmatpush.msra.mxu0 0.0
  %2009 = vmatpush.msra.mxu0 0.0
  %2010 = vmatpush.msra.mxu0 0.0
  %v2011 = vand.u32 %v1928, 4294901760
  %v2012 = vsub.f32 %v1928, %v2011
  %2013 = vmatpush.msra.mxu0 %v2012
  %v2014 = vand.u32 %v1927, 4294901760
  %v2015 = vsub.f32 %v1927, %v2014
  %2016 = vmatpush.msra.mxu0 %v2015
  %v2017 = vand.u32 %v1937, 4294901760
  %v2018 = vsub.f32 %v1937, %v2017
  %2019 = vmatmul.f32.gmra.mxu0 %v2018
  %v2020 = vpop.f32.mrf.mxu0
  %v2021 = vadd.f32 %v1995, %v2020
  %2022 = vdwg.mxu0
  %2023 = vmatpush.msra.mxu0 0.0
  %2024 = vmatpush.msra.mxu0 0.0
  %2025 = vmatpush.msra.mxu0 0.0
  %2026 = vmatpush.msra.mxu0 0.0
  %2027 = vmatpush.msra.mxu0 0.0
  %2028 = vmatpush.msra.mxu0 0.0
  %2029 = vmatpush.msra.mxu0 0.0
  %2030 = vmatpush.msra.mxu0 0.0
  %2031 = vmatpush.msra.mxu0 0.0
  %2032 = vmatpush.msra.mxu0 0.0
  %2033 = vmatpush.msra.mxu0 0.0
  %2034 = vmatpush.msra.mxu0 0.0
  %2035 = vmatpush.msra.mxu0 0.0
  %2036 = vmatpush.msra.mxu0 0.0
  %v2037 = vand.u32 %v1928, 4294901760
  %2038 = vmatpush.msra.mxu0 %v2037
  %v2039 = vand.u32 %v1927, 4294901760
  %2040 = vmatpush.msra.mxu0 %v2039
  %v2041 = vand.u32 %v1937, 4294901760
  %v2042 = vsub.f32 %v1937, %v2041
  %v2043 = vand.u32 %v2042, 4294901760
  %2044 = vmatmul.f32.gmra.mxu0 %v2043
  %v2045 = vpop.f32.mrf.mxu0
  %v2046 = vadd.f32 %v2021, %v2045
  %2047 = vdwg.mxu0
  %2048 = vmatpush.msra.mxu0 0.0
  %2049 = vmatpush.msra.mxu0 0.0
  %2050 = vmatpush.msra.mxu0 0.0
  %2051 = vmatpush.msra.mxu0 0.0
  %2052 = vmatpush.msra.mxu0 0.0
  %2053 = vmatpush.msra.mxu0 0.0
  %2054 = vmatpush.msra.mxu0 0.0
  %2055 = vmatpush.msra.mxu0 0.0
  %2056 = vmatpush.msra.mxu0 0.0
  %2057 = vmatpush.msra.mxu0 0.0
  %2058 = vmatpush.msra.mxu0 0.0
  %2059 = vmatpush.msra.mxu0 0.0
  %2060 = vmatpush.msra.mxu0 0.0
  %2061 = vmatpush.msra.mxu0 0.0
  %v2062 = vand.u32 %v1928, 4294901760
  %v2063 = vsub.f32 %v1928, %v2062
  %v2064 = vand.u32 %v2063, 4294901760
  %2065 = vmatpush.msra.mxu0 %v2064
  %v2066 = vand.u32 %v1927, 4294901760
  %v2067 = vsub.f32 %v1927, %v2066
  %v2068 = vand.u32 %v2067, 4294901760
  %2069 = vmatpush.msra.mxu0 %v2068
  %v2070 = vand.u32 %v1937, 4294901760
  %2071 = vmatmul.f32.gmra.mxu0 %v2070
  %v2072 = vpop.f32.mrf.mxu0
  %v2073 = vadd.f32 %v2046, %v2072
  %2074 = vdwg.mxu0
  %2075 = vmatpush.msra.mxu0 0.0
  %2076 = vmatpush.msra.mxu0 0.0
  %2077 = vmatpush.msra.mxu0 0.0
  %2078 = vmatpush.msra.mxu0 0.0
  %2079 = vmatpush.msra.mxu0 0.0
  %2080 = vmatpush.msra.mxu0 0.0
  %2081 = vmatpush.msra.mxu0 0.0
  %2082 = vmatpush.msra.mxu0 0.0
  %2083 = vmatpush.msra.mxu0 0.0
  %2084 = vmatpush.msra.mxu0 0.0
  %2085 = vmatpush.msra.mxu0 0.0
  %2086 = vmatpush.msra.mxu0 0.0
  %2087 = vmatpush.msra.mxu0 0.0
  %2088 = vmatpush.msra.mxu0 0.0
  %v2089 = vand.u32 %v1928, 4294901760
  %2090 = vmatpush.msra.mxu0 %v2089
  %v2091 = vand.u32 %v1927, 4294901760
  %2092 = vmatpush.msra.mxu0 %v2091
  %v2093 = vand.u32 %v1937, 4294901760
  %2094 = vmatmul.f32.gmra.mxu0 %v2093
  %v2095 = vpop.f32.mrf.mxu0
  %v2096 = vadd.f32 %v2073, %v2095
  %2097 = vdwg.mxu0
  %v2098 = vmax.f32 %v2096, 0.0
  %v2099 = vmin.f32 %v2098, 6.0
  %2101 = vrot.lane.b32.xlu0 %v2099, 1
  %v2102 = vpop.permute.xlu0 %2101
  %v2104 = vsel %vm48, 0.0, %v2102
  %2105 = vrot.lane.b32.xlu0 %v2099, 127
  %v2106 = vpop.permute.xlu0 %2105
  %vm2108 = vcmask 121856
  %v2109 = vsel %vm2108, %v2106, 0.0
  %2110 = vrot.lane.b32.xlu0 %v2099, 113
  %v2111 = vpop.permute.xlu0 %2110
  %v2113 = vsel %vm48, 0.0, %v2111
  %2114 = vrot.lane.b32.xlu0 %v2099, 111
  %v2115 = vpop.permute.xlu0 %2114
  %v2117 = vsel %vm2108, %v2115, 0.0
  %v2118 = vrot.slane %v2099, 4
  %vm2120 = vcmask 1043456
  %v2121 = vsel %vm2120, %v2104, %v2118
  %2122 = vrot.lane.b32.xlu0 %v2118, 112
  %v2123 = vpop.permute.xlu0 %2122
  %v2125 = vsel %vm2120, %v2113, %v2123
  %v2126 = vld [vmem:[%s7] sm:$0xff]
  %v2127 = vld [vmem:[%s7 + $0x8] sm:$0xff]
  %v2128 = vld [vmem:[%s9] sm:$0xff]
  %v2129 = vld [vmem:[%s9 + $0x8] sm:$0xff]
  %2131 = vset.pattern.permute.xlu0 0
  %2132 = vperm.xlu0 %2131, %v2128
  %v2133 = vpop.permute.xlu0 %2132
  %2136 = vset.pattern.permute.xlu0 0
  %2137 = vperm.xlu0 %2136, %v2129
  %v2138 = vpop.permute.xlu0 %2137
  %vm2140 = vcmask 97280
  %v2142 = vsel %vm2140, %v2126, 0
  %v2145 = vsel %vm2140, %v2127, 0
  %v2148 = vsel %vm2120, %v2109, 0
  %2150 = vmatpush.msra.mxu0 0.0
  %2151 = vmatpush.msra.mxu0 0.0
  %2152 = vmatpush.msra.mxu0 0.0
  %2153 = vmatpush.msra.mxu0 0.0
  %2154 = vmatpush.msra.mxu0 0.0
  %2155 = vmatpush.msra.mxu0 0.0
  %2156 = vmatpush.msra.mxu0 0.0
  %2157 = vmatpush.msra.mxu0 0.0
  %2158 = vmatpush.msra.mxu0 0.0
  %2159 = vmatpush.msra.mxu0 0.0
  %2160 = vmatpush.msra.mxu0 0.0
  %2161 = vmatpush.msra.mxu0 0.0
  %2162 = vmatpush.msra.mxu0 0.0
  %2163 = vmatpush.msra.mxu0 0.0
  %v2164 = vand.u32 %v2148, 4294901760
  %2165 = vmatpush.msra.mxu0 %v2164
  %v2166 = vand.u32 %v2121, 4294901760
  %2167 = vmatpush.msra.mxu0 %v2166
  %v2168 = vand.u32 %v2142, 4294901760
  %v2169 = vsub.f32 %v2142, %v2168
  %v2170 = vand.u32 %v2169, 4294901760
  %v2171 = vsub.f32 %v2169, %v2170
  %v2172 = vand.u32 %v2171, 4294901760
  %2173 = vmatmul.f32.gmra.mxu0 %v2172
  %v2174 = vpop.f32.mrf.mxu0
  %v2175 = vadd.f32 %v2133, %v2174
  %v2176 = vand.u32 %v2145, 4294901760
  %v2177 = vsub.f32 %v2145, %v2176
  %v2178 = vand.u32 %v2177, 4294901760
  %v2179 = vsub.f32 %v2177, %v2178
  %v2180 = vand.u32 %v2179, 4294901760
  %2181 = vmatmul.f32.gmra.mxu0 %v2180
  %v2182 = vpop.f32.mrf.mxu0
  %v2183 = vadd.f32 %v2138, %v2182
  %2184 = vdwg.mxu0
  %2185 = vmatpush.msra.mxu0 0.0
  %2186 = vmatpush.msra.mxu0 0.0
  %2187 = vmatpush.msra.mxu0 0.0
  %2188 = vmatpush.msra.mxu0 0.0
  %2189 = vmatpush.msra.mxu0 0.0
  %2190 = vmatpush.msra.mxu0 0.0
  %2191 = vmatpush.msra.mxu0 0.0
  %2192 = vmatpush.msra.mxu0 0.0
  %2193 = vmatpush.msra.mxu0 0.0
  %2194 = vmatpush.msra.mxu0 0.0
  %2195 = vmatpush.msra.mxu0 0.0
  %2196 = vmatpush.msra.mxu0 0.0
  %2197 = vmatpush.msra.mxu0 0.0
  %2198 = vmatpush.msra.mxu0 0.0
  %v2199 = vand.u32 %v2148, 4294901760
  %v2200 = vsub.f32 %v2148, %v2199
  %v2201 = vand.u32 %v2200, 4294901760
  %v2202 = vsub.f32 %v2200, %v2201
  %v2203 = vand.u32 %v2202, 4294901760
  %2204 = vmatpush.msra.mxu0 %v2203
  %v2205 = vand.u32 %v2121, 4294901760
  %v2206 = vsub.f32 %v2121, %v2205
  %v2207 = vand.u32 %v2206, 4294901760
  %v2208 = vsub.f32 %v2206, %v2207
  %v2209 = vand.u32 %v2208, 4294901760
  %2210 = vmatpush.msra.mxu0 %v2209
  %v2211 = vand.u32 %v2142, 4294901760
  %2212 = vmatmul.f32.gmra.mxu0 %v2211
  %v2213 = vpop.f32.mrf.mxu0
  %v2214 = vadd.f32 %v2175, %v2213
  %v2215 = vand.u32 %v2145, 4294901760
  %2216 = vmatmul.f32.gmra.mxu0 %v2215
  %v2217 = vpop.f32.mrf.mxu0
  %v2218 = vadd.f32 %v2183, %v2217
  %2219 = vdwg.mxu0
  %2220 = vmatpush.msra.mxu0 0.0
  %2221 = vmatpush.msra.mxu0 0.0
  %2222 = vmatpush.msra.mxu0 0.0
  %2223 = vmatpush.msra.mxu0 0.0
  %2224 = vmatpush.msra.mxu0 0.0
  %2225 = vmatpush.msra.mxu0 0.0
  %2226 = vmatpush.msra.mxu0 0.0
  %2227 = vmatpush.msra.mxu0 0.0
  %2228 = vmatpush.msra.mxu0 0.0
  %2229 = vmatpush.msra.mxu0 0.0
  %2230 = vmatpush.msra.mxu0 0.0
  %2231 = vmatpush.msra.mxu0 0.0
  %2232 = vmatpush.msra.mxu0 0.0
  %2233 = vmatpush.msra.mxu0 0.0
  %v2234 = vand.u32 %v2148, 4294901760
  %v2235 = vsub.f32 %v2148, %v2234
  %2236 = vmatpush.msra.mxu0 %v2235
  %v2237 = vand.u32 %v2121, 4294901760
  %v2238 = vsub.f32 %v2121, %v2237
  %2239 = vmatpush.msra.mxu0 %v2238
  %v2240 = vand.u32 %v2142, 4294901760
  %v2241 = vsub.f32 %v2142, %v2240
  %2242 = vmatmul.f32.gmra.mxu0 %v2241
  %v2243 = vpop.f32.mrf.mxu0
  %v2244 = vadd.f32 %v2214, %v2243
  %v2245 = vand.u32 %v2145, 4294901760
  %v2246 = vsub.f32 %v2145, %v2245
  %2247 = vmatmul.f32.gmra.mxu0 %v2246
  %v2248 = vpop.f32.mrf.mxu0
  %v2249 = vadd.f32 %v2218, %v2248
  %2250 = vdwg.mxu0
  %2251 = vmatpush.msra.mxu0 0.0
  %2252 = vmatpush.msra.mxu0 0.0
  %2253 = vmatpush.msra.mxu0 0.0
  %2254 = vmatpush.msra.mxu0 0.0
  %2255 = vmatpush.msra.mxu0 0.0
  %2256 = vmatpush.msra.mxu0 0.0
  %2257 = vmatpush.msra.mxu0 0.0
  %2258 = vmatpush.msra.mxu0 0.0
  %2259 = vmatpush.msra.mxu0 0.0
  %2260 = vmatpush.msra.mxu0 0.0
  %2261 = vmatpush.msra.mxu0 0.0
  %2262 = vmatpush.msra.mxu0 0.0
  %2263 = vmatpush.msra.mxu0 0.0
  %2264 = vmatpush.msra.mxu0 0.0
  %v2265 = vand.u32 %v2148, 4294901760
  %2266 = vmatpush.msra.mxu0 %v2265
  %v2267 = vand.u32 %v2121, 4294901760
  %2268 = vmatpush.msra.mxu0 %v2267
  %v2269 = vand.u32 %v2142, 4294901760
  %v2270 = vsub.f32 %v2142, %v2269
  %v2271 = vand.u32 %v2270, 4294901760
  %2272 = vmatmul.f32.gmra.mxu0 %v2271
  %v2273 = vpop.f32.mrf.mxu0
  %v2274 = vadd.f32 %v2244, %v2273
  %v2275 = vand.u32 %v2145, 4294901760
  %v2276 = vsub.f32 %v2145, %v2275
  %v2277 = vand.u32 %v2276, 4294901760
  %2278 = vmatmul.f32.gmra.mxu0 %v2277
  %v2279 = vpop.f32.mrf.mxu0
  %v2280 = vadd.f32 %v2249, %v2279
  %2281 = vdwg.mxu0
  %2282 = vmatpush.msra.mxu0 0.0
  %2283 = vmatpush.msra.mxu0 0.0
  %2284 = vmatpush.msra.mxu0 0.0
  %2285 = vmatpush.msra.mxu0 0.0
  %2286 = vmatpush.msra.mxu0 0.0
  %2287 = vmatpush.msra.mxu0 0.0
  %2288 = vmatpush.msra.mxu0 0.0
  %2289 = vmatpush.msra.mxu0 0.0
  %2290 = vmatpush.msra.mxu0 0.0
  %2291 = vmatpush.msra.mxu0 0.0
  %2292 = vmatpush.msra.mxu0 0.0
  %2293 = vmatpush.msra.mxu0 0.0
  %2294 = vmatpush.msra.mxu0 0.0
  %2295 = vmatpush.msra.mxu0 0.0
  %v2296 = vand.u32 %v2148, 4294901760
  %v2297 = vsub.f32 %v2148, %v2296
  %v2298 = vand.u32 %v2297, 4294901760
  %2299 = vmatpush.msra.mxu0 %v2298
  %v2300 = vand.u32 %v2121, 4294901760
  %v2301 = vsub.f32 %v2121, %v2300
  %v2302 = vand.u32 %v2301, 4294901760
  %2303 = vmatpush.msra.mxu0 %v2302
  %v2304 = vand.u32 %v2142, 4294901760
  %2305 = vmatmul.f32.gmra.mxu0 %v2304
  %v2306 = vpop.f32.mrf.mxu0
  %v2307 = vadd.f32 %v2274, %v2306
  %v2308 = vand.u32 %v2145, 4294901760
  %2309 = vmatmul.f32.gmra.mxu0 %v2308
  %v2310 = vpop.f32.mrf.mxu0
  %v2311 = vadd.f32 %v2280, %v2310
  %2312 = vdwg.mxu0
  %2313 = vmatpush.msra.mxu0 0.0
  %2314 = vmatpush.msra.mxu0 0.0
  %2315 = vmatpush.msra.mxu0 0.0
  %2316 = vmatpush.msra.mxu0 0.0
  %2317 = vmatpush.msra.mxu0 0.0
  %2318 = vmatpush.msra.mxu0 0.0
  %2319 = vmatpush.msra.mxu0 0.0
  %2320 = vmatpush.msra.mxu0 0.0
  %2321 = vmatpush.msra.mxu0 0.0
  %2322 = vmatpush.msra.mxu0 0.0
  %2323 = vmatpush.msra.mxu0 0.0
  %2324 = vmatpush.msra.mxu0 0.0
  %2325 = vmatpush.msra.mxu0 0.0
  %2326 = vmatpush.msra.mxu0 0.0
  %v2327 = vand.u32 %v2148, 4294901760
  %2328 = vmatpush.msra.mxu0 %v2327
  %v2329 = vand.u32 %v2121, 4294901760
  %2330 = vmatpush.msra.mxu0 %v2329
  %v2331 = vand.u32 %v2142, 4294901760
  %2332 = vmatmul.f32.gmra.mxu0 %v2331
  %v2333 = vpop.f32.mrf.mxu0
  %v2334 = vadd.f32 %v2307, %v2333
  %v2335 = vand.u32 %v2145, 4294901760
  %2336 = vmatmul.f32.gmra.mxu0 %v2335
  %v2337 = vpop.f32.mrf.mxu0
  %v2338 = vadd.f32 %v2311, %v2337
  %2339 = vdwg.mxu0
  %v2340 = vld [vmem:[%s8] sm:$0xff]
  %v2341 = vld [vmem:[%s8 + $0x8] sm:$0xff]
  %v2343 = vsel %vm2140, %v2340, 0
  %v2346 = vsel %vm2140, %v2341, 0
  %v2349 = vsel %vm2120, %v2117, 0
  %2351 = vmatpush.msra.mxu0 0.0
  %2352 = vmatpush.msra.mxu0 0.0
  %2353 = vmatpush.msra.mxu0 0.0
  %2354 = vmatpush.msra.mxu0 0.0
  %2355 = vmatpush.msra.mxu0 0.0
  %2356 = vmatpush.msra.mxu0 0.0
  %2357 = vmatpush.msra.mxu0 0.0
  %2358 = vmatpush.msra.mxu0 0.0
  %2359 = vmatpush.msra.mxu0 0.0
  %2360 = vmatpush.msra.mxu0 0.0
  %2361 = vmatpush.msra.mxu0 0.0
  %2362 = vmatpush.msra.mxu0 0.0
  %2363 = vmatpush.msra.mxu0 0.0
  %2364 = vmatpush.msra.mxu0 0.0
  %v2365 = vand.u32 %v2349, 4294901760
  %2366 = vmatpush.msra.mxu0 %v2365
  %v2367 = vand.u32 %v2125, 4294901760
  %2368 = vmatpush.msra.mxu0 %v2367
  %v2369 = vand.u32 %v2343, 4294901760
  %v2370 = vsub.f32 %v2343, %v2369
  %v2371 = vand.u32 %v2370, 4294901760
  %v2372 = vsub.f32 %v2370, %v2371
  %v2373 = vand.u32 %v2372, 4294901760
  %2374 = vmatmul.f32.gmra.mxu0 %v2373
  %v2375 = vpop.f32.mrf.mxu0
  %v2376 = vadd.f32 %v2133, %v2375
  %v2377 = vand.u32 %v2346, 4294901760
  %v2378 = vsub.f32 %v2346, %v2377
  %v2379 = vand.u32 %v2378, 4294901760
  %v2380 = vsub.f32 %v2378, %v2379
  %v2381 = vand.u32 %v2380, 4294901760
  %2382 = vmatmul.f32.gmra.mxu0 %v2381
  %v2383 = vpop.f32.mrf.mxu0
  %v2384 = vadd.f32 %v2138, %v2383
  %2385 = vdwg.mxu0
  %2386 = vmatpush.msra.mxu0 0.0
  %2387 = vmatpush.msra.mxu0 0.0
  %2388 = vmatpush.msra.mxu0 0.0
  %2389 = vmatpush.msra.mxu0 0.0
  %2390 = vmatpush.msra.mxu0 0.0
  %2391 = vmatpush.msra.mxu0 0.0
  %2392 = vmatpush.msra.mxu0 0.0
  %2393 = vmatpush.msra.mxu0 0.0
  %2394 = vmatpush.msra.mxu0 0.0
  %2395 = vmatpush.msra.mxu0 0.0
  %2396 = vmatpush.msra.mxu0 0.0
  %2397 = vmatpush.msra.mxu0 0.0
  %2398 = vmatpush.msra.mxu0 0.0
  %2399 = vmatpush.msra.mxu0 0.0
  %v2400 = vand.u32 %v2349, 4294901760
  %v2401 = vsub.f32 %v2349, %v2400
  %v2402 = vand.u32 %v2401, 4294901760
  %v2403 = vsub.f32 %v2401, %v2402
  %v2404 = vand.u32 %v2403, 4294901760
  %2405 = vmatpush.msra.mxu0 %v2404
  %v2406 = vand.u32 %v2125, 4294901760
  %v2407 = vsub.f32 %v2125, %v2406
  %v2408 = vand.u32 %v2407, 4294901760
  %v2409 = vsub.f32 %v2407, %v2408
  %v2410 = vand.u32 %v2409, 4294901760
  %2411 = vmatpush.msra.mxu0 %v2410
  %v2412 = vand.u32 %v2343, 4294901760
  %2413 = vmatmul.f32.gmra.mxu0 %v2412
  %v2414 = vpop.f32.mrf.mxu0
  %v2415 = vadd.f32 %v2376, %v2414
  %v2416 = vand.u32 %v2346, 4294901760
  %2417 = vmatmul.f32.gmra.mxu0 %v2416
  %v2418 = vpop.f32.mrf.mxu0
  %v2419 = vadd.f32 %v2384, %v2418
  %2420 = vdwg.mxu0
  %2421 = vmatpush.msra.mxu0 0.0
  %2422 = vmatpush.msra.mxu0 0.0
  %2423 = vmatpush.msra.mxu0 0.0
  %2424 = vmatpush.msra.mxu0 0.0
  %2425 = vmatpush.msra.mxu0 0.0
  %2426 = vmatpush.msra.mxu0 0.0
  %2427 = vmatpush.msra.mxu0 0.0
  %2428 = vmatpush.msra.mxu0 0.0
  %2429 = vmatpush.msra.mxu0 0.0
  %2430 = vmatpush.msra.mxu0 0.0
  %2431 = vmatpush.msra.mxu0 0.0
  %2432 = vmatpush.msra.mxu0 0.0
  %2433 = vmatpush.msra.mxu0 0.0
  %2434 = vmatpush.msra.mxu0 0.0
  %v2435 = vand.u32 %v2349, 4294901760
  %v2436 = vsub.f32 %v2349, %v2435
  %2437 = vmatpush.msra.mxu0 %v2436
  %v2438 = vand.u32 %v2125, 4294901760
  %v2439 = vsub.f32 %v2125, %v2438
  %2440 = vmatpush.msra.mxu0 %v2439
  %v2441 = vand.u32 %v2343, 4294901760
  %v2442 = vsub.f32 %v2343, %v2441
  %2443 = vmatmul.f32.gmra.mxu0 %v2442
  %v2444 = vpop.f32.mrf.mxu0
  %v2445 = vadd.f32 %v2415, %v2444
  %v2446 = vand.u32 %v2346, 4294901760
  %v2447 = vsub.f32 %v2346, %v2446
  %2448 = vmatmul.f32.gmra.mxu0 %v2447
  %v2449 = vpop.f32.mrf.mxu0
  %v2450 = vadd.f32 %v2419, %v2449
  %2451 = vdwg.mxu0
  %2452 = vmatpush.msra.mxu0 0.0
  %2453 = vmatpush.msra.mxu0 0.0
  %2454 = vmatpush.msra.mxu0 0.0
  %2455 = vmatpush.msra.mxu0 0.0
  %2456 = vmatpush.msra.mxu0 0.0
  %2457 = vmatpush.msra.mxu0 0.0
  %2458 = vmatpush.msra.mxu0 0.0
  %2459 = vmatpush.msra.mxu0 0.0
  %2460 = vmatpush.msra.mxu0 0.0
  %2461 = vmatpush.msra.mxu0 0.0
  %2462 = vmatpush.msra.mxu0 0.0
  %2463 = vmatpush.msra.mxu0 0.0
  %2464 = vmatpush.msra.mxu0 0.0
  %2465 = vmatpush.msra.mxu0 0.0
  %v2466 = vand.u32 %v2349, 4294901760
  %2467 = vmatpush.msra.mxu0 %v2466
  %v2468 = vand.u32 %v2125, 4294901760
  %2469 = vmatpush.msra.mxu0 %v2468
  %v2470 = vand.u32 %v2343, 4294901760
  %v2471 = vsub.f32 %v2343, %v2470
  %v2472 = vand.u32 %v2471, 4294901760
  %2473 = vmatmul.f32.gmra.mxu0 %v2472
  %v2474 = vpop.f32.mrf.mxu0
  %v2475 = vadd.f32 %v2445, %v2474
  %v2476 = vand.u32 %v2346, 4294901760
  %v2477 = vsub.f32 %v2346, %v2476
  %v2478 = vand.u32 %v2477, 4294901760
  %2479 = vmatmul.f32.gmra.mxu0 %v2478
  %v2480 = vpop.f32.mrf.mxu0
  %v2481 = vadd.f32 %v2450, %v2480
  %2482 = vdwg.mxu0
  %2483 = vmatpush.msra.mxu0 0.0
  %2484 = vmatpush.msra.mxu0 0.0
  %2485 = vmatpush.msra.mxu0 0.0
  %2486 = vmatpush.msra.mxu0 0.0
  %2487 = vmatpush.msra.mxu0 0.0
  %2488 = vmatpush.msra.mxu0 0.0
  %2489 = vmatpush.msra.mxu0 0.0
  %2490 = vmatpush.msra.mxu0 0.0
  %2491 = vmatpush.msra.mxu0 0.0
  %2492 = vmatpush.msra.mxu0 0.0
  %2493 = vmatpush.msra.mxu0 0.0
  %2494 = vmatpush.msra.mxu0 0.0
  %2495 = vmatpush.msra.mxu0 0.0
  %2496 = vmatpush.msra.mxu0 0.0
  %v2497 = vand.u32 %v2349, 4294901760
  %v2498 = vsub.f32 %v2349, %v2497
  %v2499 = vand.u32 %v2498, 4294901760
  %2500 = vmatpush.msra.mxu0 %v2499
  %v2501 = vand.u32 %v2125, 4294901760
  %v2502 = vsub.f32 %v2125, %v2501
  %v2503 = vand.u32 %v2502, 4294901760
  %2504 = vmatpush.msra.mxu0 %v2503
  %v2505 = vand.u32 %v2343, 4294901760
  %2506 = vmatmul.f32.gmra.mxu0 %v2505
  %v2507 = vpop.f32.mrf.mxu0
  %v2508 = vadd.f32 %v2475, %v2507
  %v2509 = vand.u32 %v2346, 4294901760
  %2510 = vmatmul.f32.gmra.mxu0 %v2509
  %v2511 = vpop.f32.mrf.mxu0
  %v2512 = vadd.f32 %v2481, %v2511
  %2513 = vdwg.mxu0
  %2514 = vmatpush.msra.mxu0 0.0
  %2515 = vmatpush.msra.mxu0 0.0
  %2516 = vmatpush.msra.mxu0 0.0
  %2517 = vmatpush.msra.mxu0 0.0
  %2518 = vmatpush.msra.mxu0 0.0
  %2519 = vmatpush.msra.mxu0 0.0
  %2520 = vmatpush.msra.mxu0 0.0
  %2521 = vmatpush.msra.mxu0 0.0
  %2522 = vmatpush.msra.mxu0 0.0
  %2523 = vmatpush.msra.mxu0 0.0
  %2524 = vmatpush.msra.mxu0 0.0
  %2525 = vmatpush.msra.mxu0 0.0
  %2526 = vmatpush.msra.mxu0 0.0
  %2527 = vmatpush.msra.mxu0 0.0
  %v2528 = vand.u32 %v2349, 4294901760
  %2529 = vmatpush.msra.mxu0 %v2528
  %v2530 = vand.u32 %v2125, 4294901760
  %2531 = vmatpush.msra.mxu0 %v2530
  %v2532 = vand.u32 %v2343, 4294901760
  %2533 = vmatmul.f32.gmra.mxu0 %v2532
  %v2534 = vpop.f32.mrf.mxu0
  %v2535 = vadd.f32 %v2508, %v2534
  %v2536 = vand.u32 %v2346, 4294901760
  %2537 = vmatmul.f32.gmra.mxu0 %v2536
  %v2538 = vpop.f32.mrf.mxu0
  %v2539 = vadd.f32 %v2512, %v2538
  %2540 = vdwg.mxu0
  %v2541 = vld [vmem:[%s3] sm:$0xff]
  %v2542 = vld [vmem:[%s3 + $0x8] sm:$0xff]
  %v2543 = vld [vmem:[%s3 + $0x10] sm:$0xff]
  %v2544 = vld [vmem:[%s3 + $0x18] sm:$0xff]
  %v2546 = vsel %vm41, %v2334, 0
  %v2549 = vsel %vm41, %v2338, 0
  %2551 = vmatpush.msra.mxu0 0.0
  %2552 = vmatpush.msra.mxu0 0.0
  %2553 = vmatpush.msra.mxu0 0.0
  %2554 = vmatpush.msra.mxu0 0.0
  %2555 = vmatpush.msra.mxu0 0.0
  %2556 = vmatpush.msra.mxu0 0.0
  %2557 = vmatpush.msra.mxu0 0.0
  %2558 = vmatpush.msra.mxu0 0.0
  %2559 = vmatpush.msra.mxu0 0.0
  %2560 = vmatpush.msra.mxu0 0.0
  %2561 = vmatpush.msra.mxu0 0.0
  %2562 = vmatpush.msra.mxu0 0.0
  %2563 = vmatpush.msra.mxu0 0.0
  %2564 = vmatpush.msra.mxu0 0.0
  %v2565 = vand.u32 %v2543, 4294901760
  %2566 = vmatpush.msra.mxu0 %v2565
  %v2567 = vand.u32 %v2541, 4294901760
  %2568 = vmatpush.msra.mxu0 %v2567
  %v2569 = vand.u32 %v2546, 4294901760
  %v2570 = vsub.f32 %v2546, %v2569
  %v2571 = vand.u32 %v2570, 4294901760
  %v2572 = vsub.f32 %v2570, %v2571
  %v2573 = vand.u32 %v2572, 4294901760
  %2574 = vmatmul.f32.gmra.mxu0 %v2573
  %v2575 = vpop.f32.mrf.mxu0
  %v2576 = vadd.f32 0.0, %v2575
  %v2577 = vand.u32 %v2549, 4294901760
  %v2578 = vsub.f32 %v2549, %v2577
  %v2579 = vand.u32 %v2578, 4294901760
  %v2580 = vsub.f32 %v2578, %v2579
  %v2581 = vand.u32 %v2580, 4294901760
  %2582 = vmatmul.f32.gmra.mxu0 %v2581
  %v2583 = vpop.f32.mrf.mxu0
  %v2584 = vadd.f32 0.0, %v2583
  %2585 = vdwg.mxu0
  %2586 = vmatpush.msra.mxu0 0.0
  %2587 = vmatpush.msra.mxu0 0.0
  %2588 = vmatpush.msra.mxu0 0.0
  %2589 = vmatpush.msra.mxu0 0.0
  %2590 = vmatpush.msra.mxu0 0.0
  %2591 = vmatpush.msra.mxu0 0.0
  %2592 = vmatpush.msra.mxu0 0.0
  %2593 = vmatpush.msra.mxu0 0.0
  %2594 = vmatpush.msra.mxu0 0.0
  %2595 = vmatpush.msra.mxu0 0.0
  %2596 = vmatpush.msra.mxu0 0.0
  %2597 = vmatpush.msra.mxu0 0.0
  %2598 = vmatpush.msra.mxu0 0.0
  %2599 = vmatpush.msra.mxu0 0.0
  %v2600 = vand.u32 %v2543, 4294901760
  %v2601 = vsub.f32 %v2543, %v2600
  %v2602 = vand.u32 %v2601, 4294901760
  %v2603 = vsub.f32 %v2601, %v2602
  %v2604 = vand.u32 %v2603, 4294901760
  %2605 = vmatpush.msra.mxu0 %v2604
  %v2606 = vand.u32 %v2541, 4294901760
  %v2607 = vsub.f32 %v2541, %v2606
  %v2608 = vand.u32 %v2607, 4294901760
  %v2609 = vsub.f32 %v2607, %v2608
  %v2610 = vand.u32 %v2609, 4294901760
  %2611 = vmatpush.msra.mxu0 %v2610
  %v2612 = vand.u32 %v2546, 4294901760
  %2613 = vmatmul.f32.gmra.mxu0 %v2612
  %v2614 = vpop.f32.mrf.mxu0
  %v2615 = vadd.f32 %v2576, %v2614
  %v2616 = vand.u32 %v2549, 4294901760
  %2617 = vmatmul.f32.gmra.mxu0 %v2616
  %v2618 = vpop.f32.mrf.mxu0
  %v2619 = vadd.f32 %v2584, %v2618
  %2620 = vdwg.mxu0
  %2621 = vmatpush.msra.mxu0 0.0
  %2622 = vmatpush.msra.mxu0 0.0
  %2623 = vmatpush.msra.mxu0 0.0
  %2624 = vmatpush.msra.mxu0 0.0
  %2625 = vmatpush.msra.mxu0 0.0
  %2626 = vmatpush.msra.mxu0 0.0
  %2627 = vmatpush.msra.mxu0 0.0
  %2628 = vmatpush.msra.mxu0 0.0
  %2629 = vmatpush.msra.mxu0 0.0
  %2630 = vmatpush.msra.mxu0 0.0
  %2631 = vmatpush.msra.mxu0 0.0
  %2632 = vmatpush.msra.mxu0 0.0
  %2633 = vmatpush.msra.mxu0 0.0
  %2634 = vmatpush.msra.mxu0 0.0
  %v2635 = vand.u32 %v2543, 4294901760
  %v2636 = vsub.f32 %v2543, %v2635
  %2637 = vmatpush.msra.mxu0 %v2636
  %v2638 = vand.u32 %v2541, 4294901760
  %v2639 = vsub.f32 %v2541, %v2638
  %2640 = vmatpush.msra.mxu0 %v2639
  %v2641 = vand.u32 %v2546, 4294901760
  %v2642 = vsub.f32 %v2546, %v2641
  %2643 = vmatmul.f32.gmra.mxu0 %v2642
  %v2644 = vpop.f32.mrf.mxu0
  %v2645 = vadd.f32 %v2615, %v2644
  %v2646 = vand.u32 %v2549, 4294901760
  %v2647 = vsub.f32 %v2549, %v2646
  %2648 = vmatmul.f32.gmra.mxu0 %v2647
  %v2649 = vpop.f32.mrf.mxu0
  %v2650 = vadd.f32 %v2619, %v2649
  %2651 = vdwg.mxu0
  %2652 = vmatpush.msra.mxu0 0.0
  %2653 = vmatpush.msra.mxu0 0.0
  %2654 = vmatpush.msra.mxu0 0.0
  %2655 = vmatpush.msra.mxu0 0.0
  %2656 = vmatpush.msra.mxu0 0.0
  %2657 = vmatpush.msra.mxu0 0.0
  %2658 = vmatpush.msra.mxu0 0.0
  %2659 = vmatpush.msra.mxu0 0.0
  %2660 = vmatpush.msra.mxu0 0.0
  %2661 = vmatpush.msra.mxu0 0.0
  %2662 = vmatpush.msra.mxu0 0.0
  %2663 = vmatpush.msra.mxu0 0.0
  %2664 = vmatpush.msra.mxu0 0.0
  %2665 = vmatpush.msra.mxu0 0.0
  %v2666 = vand.u32 %v2543, 4294901760
  %2667 = vmatpush.msra.mxu0 %v2666
  %v2668 = vand.u32 %v2541, 4294901760
  %2669 = vmatpush.msra.mxu0 %v2668
  %v2670 = vand.u32 %v2546, 4294901760
  %v2671 = vsub.f32 %v2546, %v2670
  %v2672 = vand.u32 %v2671, 4294901760
  %2673 = vmatmul.f32.gmra.mxu0 %v2672
  %v2674 = vpop.f32.mrf.mxu0
  %v2675 = vadd.f32 %v2645, %v2674
  %v2676 = vand.u32 %v2549, 4294901760
  %v2677 = vsub.f32 %v2549, %v2676
  %v2678 = vand.u32 %v2677, 4294901760
  %2679 = vmatmul.f32.gmra.mxu0 %v2678
  %v2680 = vpop.f32.mrf.mxu0
  %v2681 = vadd.f32 %v2650, %v2680
  %2682 = vdwg.mxu0
  %2683 = vmatpush.msra.mxu0 0.0
  %2684 = vmatpush.msra.mxu0 0.0
  %2685 = vmatpush.msra.mxu0 0.0
  %2686 = vmatpush.msra.mxu0 0.0
  %2687 = vmatpush.msra.mxu0 0.0
  %2688 = vmatpush.msra.mxu0 0.0
  %2689 = vmatpush.msra.mxu0 0.0
  %2690 = vmatpush.msra.mxu0 0.0
  %2691 = vmatpush.msra.mxu0 0.0
  %2692 = vmatpush.msra.mxu0 0.0
  %2693 = vmatpush.msra.mxu0 0.0
  %2694 = vmatpush.msra.mxu0 0.0
  %2695 = vmatpush.msra.mxu0 0.0
  %2696 = vmatpush.msra.mxu0 0.0
  %v2697 = vand.u32 %v2543, 4294901760
  %v2698 = vsub.f32 %v2543, %v2697
  %v2699 = vand.u32 %v2698, 4294901760
  %2700 = vmatpush.msra.mxu0 %v2699
  %v2701 = vand.u32 %v2541, 4294901760
  %v2702 = vsub.f32 %v2541, %v2701
  %v2703 = vand.u32 %v2702, 4294901760
  %2704 = vmatpush.msra.mxu0 %v2703
  %v2705 = vand.u32 %v2546, 4294901760
  %2706 = vmatmul.f32.gmra.mxu0 %v2705
  %v2707 = vpop.f32.mrf.mxu0
  %v2708 = vadd.f32 %v2675, %v2707
  %v2709 = vand.u32 %v2549, 4294901760
  %2710 = vmatmul.f32.gmra.mxu0 %v2709
  %v2711 = vpop.f32.mrf.mxu0
  %v2712 = vadd.f32 %v2681, %v2711
  %2713 = vdwg.mxu0
  %2714 = vmatpush.msra.mxu0 0.0
  %2715 = vmatpush.msra.mxu0 0.0
  %2716 = vmatpush.msra.mxu0 0.0
  %2717 = vmatpush.msra.mxu0 0.0
  %2718 = vmatpush.msra.mxu0 0.0
  %2719 = vmatpush.msra.mxu0 0.0
  %2720 = vmatpush.msra.mxu0 0.0
  %2721 = vmatpush.msra.mxu0 0.0
  %2722 = vmatpush.msra.mxu0 0.0
  %2723 = vmatpush.msra.mxu0 0.0
  %2724 = vmatpush.msra.mxu0 0.0
  %2725 = vmatpush.msra.mxu0 0.0
  %2726 = vmatpush.msra.mxu0 0.0
  %2727 = vmatpush.msra.mxu0 0.0
  %v2728 = vand.u32 %v2543, 4294901760
  %2729 = vmatpush.msra.mxu0 %v2728
  %v2730 = vand.u32 %v2541, 4294901760
  %2731 = vmatpush.msra.mxu0 %v2730
  %v2732 = vand.u32 %v2546, 4294901760
  %2733 = vmatmul.f32.gmra.mxu0 %v2732
  %v2734 = vpop.f32.mrf.mxu0
  %v2735 = vadd.f32 %v2708, %v2734
  %v2736 = vand.u32 %v2549, 4294901760
  %2737 = vmatmul.f32.gmra.mxu0 %v2736
  %v2738 = vpop.f32.mrf.mxu0
  %v2739 = vadd.f32 %v2712, %v2738
  %2740 = vdwg.mxu0
  %2741 = vmatpush.msra.mxu0 0.0
  %2742 = vmatpush.msra.mxu0 0.0
  %2743 = vmatpush.msra.mxu0 0.0
  %2744 = vmatpush.msra.mxu0 0.0
  %2745 = vmatpush.msra.mxu0 0.0
  %2746 = vmatpush.msra.mxu0 0.0
  %2747 = vmatpush.msra.mxu0 0.0
  %2748 = vmatpush.msra.mxu0 0.0
  %2749 = vmatpush.msra.mxu0 0.0
  %2750 = vmatpush.msra.mxu0 0.0
  %2751 = vmatpush.msra.mxu0 0.0
  %2752 = vmatpush.msra.mxu0 0.0
  %2753 = vmatpush.msra.mxu0 0.0
  %2754 = vmatpush.msra.mxu0 0.0
  %v2755 = vand.u32 %v2544, 4294901760
  %2756 = vmatpush.msra.mxu0 %v2755
  %v2757 = vand.u32 %v2542, 4294901760
  %2758 = vmatpush.msra.mxu0 %v2757
  %v2759 = vand.u32 %v2546, 4294901760
  %v2760 = vsub.f32 %v2546, %v2759
  %v2761 = vand.u32 %v2760, 4294901760
  %v2762 = vsub.f32 %v2760, %v2761
  %v2763 = vand.u32 %v2762, 4294901760
  %2764 = vmatmul.f32.gmra.mxu0 %v2763
  %v2765 = vpop.f32.mrf.mxu0
  %v2766 = vadd.f32 0.0, %v2765
  %v2767 = vand.u32 %v2549, 4294901760
  %v2768 = vsub.f32 %v2549, %v2767
  %v2769 = vand.u32 %v2768, 4294901760
  %v2770 = vsub.f32 %v2768, %v2769
  %v2771 = vand.u32 %v2770, 4294901760
  %2772 = vmatmul.f32.gmra.mxu0 %v2771
  %v2773 = vpop.f32.mrf.mxu0
  %v2774 = vadd.f32 0.0, %v2773
  %2775 = vdwg.mxu0
  %2776 = vmatpush.msra.mxu0 0.0
  %2777 = vmatpush.msra.mxu0 0.0
  %2778 = vmatpush.msra.mxu0 0.0
  %2779 = vmatpush.msra.mxu0 0.0
  %2780 = vmatpush.msra.mxu0 0.0
  %2781 = vmatpush.msra.mxu0 0.0
  %2782 = vmatpush.msra.mxu0 0.0
  %2783 = vmatpush.msra.mxu0 0.0
  %2784 = vmatpush.msra.mxu0 0.0
  %2785 = vmatpush.msra.mxu0 0.0
  %2786 = vmatpush.msra.mxu0 0.0
  %2787 = vmatpush.msra.mxu0 0.0
  %2788 = vmatpush.msra.mxu0 0.0
  %2789 = vmatpush.msra.mxu0 0.0
  %v2790 = vand.u32 %v2544, 4294901760
  %v2791 = vsub.f32 %v2544, %v2790
  %v2792 = vand.u32 %v2791, 4294901760
  %v2793 = vsub.f32 %v2791, %v2792
  %v2794 = vand.u32 %v2793, 4294901760
  %2795 = vmatpush.msra.mxu0 %v2794
  %v2796 = vand.u32 %v2542, 4294901760
  %v2797 = vsub.f32 %v2542, %v2796
  %v2798 = vand.u32 %v2797, 4294901760
  %v2799 = vsub.f32 %v2797, %v2798
  %v2800 = vand.u32 %v2799, 4294901760
  %2801 = vmatpush.msra.mxu0 %v2800
  %v2802 = vand.u32 %v2546, 4294901760
  %2803 = vmatmul.f32.gmra.mxu0 %v2802
  %v2804 = vpop.f32.mrf.mxu0
  %v2805 = vadd.f32 %v2766, %v2804
  %v2806 = vand.u32 %v2549, 4294901760
  %2807 = vmatmul.f32.gmra.mxu0 %v2806
  %v2808 = vpop.f32.mrf.mxu0
  %v2809 = vadd.f32 %v2774, %v2808
  %2810 = vdwg.mxu0
  %2811 = vmatpush.msra.mxu0 0.0
  %2812 = vmatpush.msra.mxu0 0.0
  %2813 = vmatpush.msra.mxu0 0.0
  %2814 = vmatpush.msra.mxu0 0.0
  %2815 = vmatpush.msra.mxu0 0.0
  %2816 = vmatpush.msra.mxu0 0.0
  %2817 = vmatpush.msra.mxu0 0.0
  %2818 = vmatpush.msra.mxu0 0.0
  %2819 = vmatpush.msra.mxu0 0.0
  %2820 = vmatpush.msra.mxu0 0.0
  %2821 = vmatpush.msra.mxu0 0.0
  %2822 = vmatpush.msra.mxu0 0.0
  %2823 = vmatpush.msra.mxu0 0.0
  %2824 = vmatpush.msra.mxu0 0.0
  %v2825 = vand.u32 %v2544, 4294901760
  %v2826 = vsub.f32 %v2544, %v2825
  %2827 = vmatpush.msra.mxu0 %v2826
  %v2828 = vand.u32 %v2542, 4294901760
  %v2829 = vsub.f32 %v2542, %v2828
  %2830 = vmatpush.msra.mxu0 %v2829
  %v2831 = vand.u32 %v2546, 4294901760
  %v2832 = vsub.f32 %v2546, %v2831
  %2833 = vmatmul.f32.gmra.mxu0 %v2832
  %v2834 = vpop.f32.mrf.mxu0
  %v2835 = vadd.f32 %v2805, %v2834
  %v2836 = vand.u32 %v2549, 4294901760
  %v2837 = vsub.f32 %v2549, %v2836
  %2838 = vmatmul.f32.gmra.mxu0 %v2837
  %v2839 = vpop.f32.mrf.mxu0
  %v2840 = vadd.f32 %v2809, %v2839
  %2841 = vdwg.mxu0
  %2842 = vmatpush.msra.mxu0 0.0
  %2843 = vmatpush.msra.mxu0 0.0
  %2844 = vmatpush.msra.mxu0 0.0
  %2845 = vmatpush.msra.mxu0 0.0
  %2846 = vmatpush.msra.mxu0 0.0
  %2847 = vmatpush.msra.mxu0 0.0
  %2848 = vmatpush.msra.mxu0 0.0
  %2849 = vmatpush.msra.mxu0 0.0
  %2850 = vmatpush.msra.mxu0 0.0
  %2851 = vmatpush.msra.mxu0 0.0
  %2852 = vmatpush.msra.mxu0 0.0
  %2853 = vmatpush.msra.mxu0 0.0
  %2854 = vmatpush.msra.mxu0 0.0
  %2855 = vmatpush.msra.mxu0 0.0
  %v2856 = vand.u32 %v2544, 4294901760
  %2857 = vmatpush.msra.mxu0 %v2856
  %v2858 = vand.u32 %v2542, 4294901760
  %2859 = vmatpush.msra.mxu0 %v2858
  %v2860 = vand.u32 %v2546, 4294901760
  %v2861 = vsub.f32 %v2546, %v2860
  %v2862 = vand.u32 %v2861, 4294901760
  %2863 = vmatmul.f32.gmra.mxu0 %v2862
  %v2864 = vpop.f32.mrf.mxu0
  %v2865 = vadd.f32 %v2835, %v2864
  %v2866 = vand.u32 %v2549, 4294901760
  %v2867 = vsub.f32 %v2549, %v2866
  %v2868 = vand.u32 %v2867, 4294901760
  %2869 = vmatmul.f32.gmra.mxu0 %v2868
  %v2870 = vpop.f32.mrf.mxu0
  %v2871 = vadd.f32 %v2840, %v2870
  %2872 = vdwg.mxu0
  %2873 = vmatpush.msra.mxu0 0.0
  %2874 = vmatpush.msra.mxu0 0.0
  %2875 = vmatpush.msra.mxu0 0.0
  %2876 = vmatpush.msra.mxu0 0.0
  %2877 = vmatpush.msra.mxu0 0.0
  %2878 = vmatpush.msra.mxu0 0.0
  %2879 = vmatpush.msra.mxu0 0.0
  %2880 = vmatpush.msra.mxu0 0.0
  %2881 = vmatpush.msra.mxu0 0.0
  %2882 = vmatpush.msra.mxu0 0.0
  %2883 = vmatpush.msra.mxu0 0.0
  %2884 = vmatpush.msra.mxu0 0.0
  %2885 = vmatpush.msra.mxu0 0.0
  %2886 = vmatpush.msra.mxu0 0.0
  %v2887 = vand.u32 %v2544, 4294901760
  %v2888 = vsub.f32 %v2544, %v2887
  %v2889 = vand.u32 %v2888, 4294901760
  %2890 = vmatpush.msra.mxu0 %v2889
  %v2891 = vand.u32 %v2542, 4294901760
  %v2892 = vsub.f32 %v2542, %v2891
  %v2893 = vand.u32 %v2892, 4294901760
  %2894 = vmatpush.msra.mxu0 %v2893
  %v2895 = vand.u32 %v2546, 4294901760
  %2896 = vmatmul.f32.gmra.mxu0 %v2895
  %v2897 = vpop.f32.mrf.mxu0
  %v2898 = vadd.f32 %v2865, %v2897
  %v2899 = vand.u32 %v2549, 4294901760
  %2900 = vmatmul.f32.gmra.mxu0 %v2899
  %v2901 = vpop.f32.mrf.mxu0
  %v2902 = vadd.f32 %v2871, %v2901
  %2903 = vdwg.mxu0
  %2904 = vmatpush.msra.mxu0 0.0
  %2905 = vmatpush.msra.mxu0 0.0
  %2906 = vmatpush.msra.mxu0 0.0
  %2907 = vmatpush.msra.mxu0 0.0
  %2908 = vmatpush.msra.mxu0 0.0
  %2909 = vmatpush.msra.mxu0 0.0
  %2910 = vmatpush.msra.mxu0 0.0
  %2911 = vmatpush.msra.mxu0 0.0
  %2912 = vmatpush.msra.mxu0 0.0
  %2913 = vmatpush.msra.mxu0 0.0
  %2914 = vmatpush.msra.mxu0 0.0
  %2915 = vmatpush.msra.mxu0 0.0
  %2916 = vmatpush.msra.mxu0 0.0
  %2917 = vmatpush.msra.mxu0 0.0
  %v2918 = vand.u32 %v2544, 4294901760
  %2919 = vmatpush.msra.mxu0 %v2918
  %v2920 = vand.u32 %v2542, 4294901760
  %2921 = vmatpush.msra.mxu0 %v2920
  %v2922 = vand.u32 %v2546, 4294901760
  %2923 = vmatmul.f32.gmra.mxu0 %v2922
  %v2924 = vpop.f32.mrf.mxu0
  %v2925 = vadd.f32 %v2898, %v2924
  %v2926 = vand.u32 %v2549, 4294901760
  %2927 = vmatmul.f32.gmra.mxu0 %v2926
  %v2928 = vpop.f32.mrf.mxu0
  %v2929 = vadd.f32 %v2902, %v2928
  %2930 = vdwg.mxu0
  %v2931 = vld [vmem:[%s4] sm:$0xff]
  %v2932 = vld [vmem:[%s4 + $0x8] sm:$0xff]
  %v2933 = vld [vmem:[%s4 + $0x10] sm:$0xff]
  %v2934 = vld [vmem:[%s4 + $0x18] sm:$0xff]
  %v2936 = vsel %vm41, %v2535, 0
  %v2939 = vsel %vm41, %v2539, 0
  %2941 = vmatpush.msra.mxu0 0.0
  %2942 = vmatpush.msra.mxu0 0.0
  %2943 = vmatpush.msra.mxu0 0.0
  %2944 = vmatpush.msra.mxu0 0.0
  %2945 = vmatpush.msra.mxu0 0.0
  %2946 = vmatpush.msra.mxu0 0.0
  %2947 = vmatpush.msra.mxu0 0.0
  %2948 = vmatpush.msra.mxu0 0.0
  %2949 = vmatpush.msra.mxu0 0.0
  %2950 = vmatpush.msra.mxu0 0.0
  %2951 = vmatpush.msra.mxu0 0.0
  %2952 = vmatpush.msra.mxu0 0.0
  %2953 = vmatpush.msra.mxu0 0.0
  %2954 = vmatpush.msra.mxu0 0.0
  %v2955 = vand.u32 %v2933, 4294901760
  %2956 = vmatpush.msra.mxu0 %v2955
  %v2957 = vand.u32 %v2931, 4294901760
  %2958 = vmatpush.msra.mxu0 %v2957
  %v2959 = vand.u32 %v2936, 4294901760
  %v2960 = vsub.f32 %v2936, %v2959
  %v2961 = vand.u32 %v2960, 4294901760
  %v2962 = vsub.f32 %v2960, %v2961
  %v2963 = vand.u32 %v2962, 4294901760
  %2964 = vmatmul.f32.gmra.mxu0 %v2963
  %v2965 = vpop.f32.mrf.mxu0
  %v2966 = vadd.f32 0.0, %v2965
  %v2967 = vand.u32 %v2939, 4294901760
  %v2968 = vsub.f32 %v2939, %v2967
  %v2969 = vand.u32 %v2968, 4294901760
  %v2970 = vsub.f32 %v2968, %v2969
  %v2971 = vand.u32 %v2970, 4294901760
  %2972 = vmatmul.f32.gmra.mxu0 %v2971
  %v2973 = vpop.f32.mrf.mxu0
  %v2974 = vadd.f32 0.0, %v2973
  %2975 = vdwg.mxu0
  %2976 = vmatpush.msra.mxu0 0.0
  %2977 = vmatpush.msra.mxu0 0.0
  %2978 = vmatpush.msra.mxu0 0.0
  %2979 = vmatpush.msra.mxu0 0.0
  %2980 = vmatpush.msra.mxu0 0.0
  %2981 = vmatpush.msra.mxu0 0.0
  %2982 = vmatpush.msra.mxu0 0.0
  %2983 = vmatpush.msra.mxu0 0.0
  %2984 = vmatpush.msra.mxu0 0.0
  %2985 = vmatpush.msra.mxu0 0.0
  %2986 = vmatpush.msra.mxu0 0.0
  %2987 = vmatpush.msra.mxu0 0.0
  %2988 = vmatpush.msra.mxu0 0.0
  %2989 = vmatpush.msra.mxu0 0.0
  %v2990 = vand.u32 %v2933, 4294901760
  %v2991 = vsub.f32 %v2933, %v2990
  %v2992 = vand.u32 %v2991, 4294901760
  %v2993 = vsub.f32 %v2991, %v2992
  %v2994 = vand.u32 %v2993, 4294901760
  %2995 = vmatpush.msra.mxu0 %v2994
  %v2996 = vand.u32 %v2931, 4294901760
  %v2997 = vsub.f32 %v2931, %v2996
  %v2998 = vand.u32 %v2997, 4294901760
  %v2999 = vsub.f32 %v2997, %v2998
  %v3000 = vand.u32 %v2999, 4294901760
  %3001 = vmatpush.msra.mxu0 %v3000
  %v3002 = vand.u32 %v2936, 4294901760
  %3003 = vmatmul.f32.gmra.mxu0 %v3002
  %v3004 = vpop.f32.mrf.mxu0
  %v3005 = vadd.f32 %v2966, %v3004
  %v3006 = vand.u32 %v2939, 4294901760
  %3007 = vmatmul.f32.gmra.mxu0 %v3006
  %v3008 = vpop.f32.mrf.mxu0
  %v3009 = vadd.f32 %v2974, %v3008
  %3010 = vdwg.mxu0
  %3011 = vmatpush.msra.mxu0 0.0
  %3012 = vmatpush.msra.mxu0 0.0
  %3013 = vmatpush.msra.mxu0 0.0
  %3014 = vmatpush.msra.mxu0 0.0
  %3015 = vmatpush.msra.mxu0 0.0
  %3016 = vmatpush.msra.mxu0 0.0
  %3017 = vmatpush.msra.mxu0 0.0
  %3018 = vmatpush.msra.mxu0 0.0
  %3019 = vmatpush.msra.mxu0 0.0
  %3020 = vmatpush.msra.mxu0 0.0
  %3021 = vmatpush.msra.mxu0 0.0
  %3022 = vmatpush.msra.mxu0 0.0
  %3023 = vmatpush.msra.mxu0 0.0
  %3024 = vmatpush.msra.mxu0 0.0
  %v3025 = vand.u32 %v2933, 4294901760
  %v3026 = vsub.f32 %v2933, %v3025
  %3027 = vmatpush.msra.mxu0 %v3026
  %v3028 = vand.u32 %v2931, 4294901760
  %v3029 = vsub.f32 %v2931, %v3028
  %3030 = vmatpush.msra.mxu0 %v3029
  %v3031 = vand.u32 %v2936, 4294901760
  %v3032 = vsub.f32 %v2936, %v3031
  %3033 = vmatmul.f32.gmra.mxu0 %v3032
  %v3034 = vpop.f32.mrf.mxu0
  %v3035 = vadd.f32 %v3005, %v3034
  %v3036 = vand.u32 %v2939, 4294901760
  %v3037 = vsub.f32 %v2939, %v3036
  %3038 = vmatmul.f32.gmra.mxu0 %v3037
  %v3039 = vpop.f32.mrf.mxu0
  %v3040 = vadd.f32 %v3009, %v3039
  %3041 = vdwg.mxu0
  %3042 = vmatpush.msra.mxu0 0.0
  %3043 = vmatpush.msra.mxu0 0.0
  %3044 = vmatpush.msra.mxu0 0.0
  %3045 = vmatpush.msra.mxu0 0.0
  %3046 = vmatpush.msra.mxu0 0.0
  %3047 = vmatpush.msra.mxu0 0.0
  %3048 = vmatpush.msra.mxu0 0.0
  %3049 = vmatpush.msra.mxu0 0.0
  %3050 = vmatpush.msra.mxu0 0.0
  %3051 = vmatpush.msra.mxu0 0.0
  %3052 = vmatpush.msra.mxu0 0.0
  %3053 = vmatpush.msra.mxu0 0.0
  %3054 = vmatpush.msra.mxu0 0.0
  %3055 = vmatpush.msra.mxu0 0.0
  %v3056 = vand.u32 %v2933, 4294901760
  %3057 = vmatpush.msra.mxu0 %v3056
  %v3058 = vand.u32 %v2931, 4294901760
  %3059 = vmatpush.msra.mxu0 %v3058
  %v3060 = vand.u32 %v2936, 4294901760
  %v3061 = vsub.f32 %v2936, %v3060
  %v3062 = vand.u32 %v3061, 4294901760
  %3063 = vmatmul.f32.gmra.mxu0 %v3062
  %v3064 = vpop.f32.mrf.mxu0
  %v3065 = vadd.f32 %v3035, %v3064
  %v3066 = vand.u32 %v2939, 4294901760
  %v3067 = vsub.f32 %v2939, %v3066
  %v3068 = vand.u32 %v3067, 4294901760
  %3069 = vmatmul.f32.gmra.mxu0 %v3068
  %v3070 = vpop.f32.mrf.mxu0
  %v3071 = vadd.f32 %v3040, %v3070
  %3072 = vdwg.mxu0
  %3073 = vmatpush.msra.mxu0 0.0
  %3074 = vmatpush.msra.mxu0 0.0
  %3075 = vmatpush.msra.mxu0 0.0
  %3076 = vmatpush.msra.mxu0 0.0
  %3077 = vmatpush.msra.mxu0 0.0
  %3078 = vmatpush.msra.mxu0 0.0
  %3079 = vmatpush.msra.mxu0 0.0
  %3080 = vmatpush.msra.mxu0 0.0
  %3081 = vmatpush.msra.mxu0 0.0
  %3082 = vmatpush.msra.mxu0 0.0
  %3083 = vmatpush.msra.mxu0 0.0
  %3084 = vmatpush.msra.mxu0 0.0
  %3085 = vmatpush.msra.mxu0 0.0
  %3086 = vmatpush.msra.mxu0 0.0
  %v3087 = vand.u32 %v2933, 4294901760
  %v3088 = vsub.f32 %v2933, %v3087
  %v3089 = vand.u32 %v3088, 4294901760
  %3090 = vmatpush.msra.mxu0 %v3089
  %v3091 = vand.u32 %v2931, 4294901760
  %v3092 = vsub.f32 %v2931, %v3091
  %v3093 = vand.u32 %v3092, 4294901760
  %3094 = vmatpush.msra.mxu0 %v3093
  %v3095 = vand.u32 %v2936, 4294901760
  %3096 = vmatmul.f32.gmra.mxu0 %v3095
  %v3097 = vpop.f32.mrf.mxu0
  %v3098 = vadd.f32 %v3065, %v3097
  %v3099 = vand.u32 %v2939, 4294901760
  %3100 = vmatmul.f32.gmra.mxu0 %v3099
  %v3101 = vpop.f32.mrf.mxu0
  %v3102 = vadd.f32 %v3071, %v3101
  %3103 = vdwg.mxu0
  %3104 = vmatpush.msra.mxu0 0.0
  %3105 = vmatpush.msra.mxu0 0.0
  %3106 = vmatpush.msra.mxu0 0.0
  %3107 = vmatpush.msra.mxu0 0.0
  %3108 = vmatpush.msra.mxu0 0.0
  %3109 = vmatpush.msra.mxu0 0.0
  %3110 = vmatpush.msra.mxu0 0.0
  %3111 = vmatpush.msra.mxu0 0.0
  %3112 = vmatpush.msra.mxu0 0.0
  %3113 = vmatpush.msra.mxu0 0.0
  %3114 = vmatpush.msra.mxu0 0.0
  %3115 = vmatpush.msra.mxu0 0.0
  %3116 = vmatpush.msra.mxu0 0.0
  %3117 = vmatpush.msra.mxu0 0.0
  %v3118 = vand.u32 %v2933, 4294901760
  %3119 = vmatpush.msra.mxu0 %v3118
  %v3120 = vand.u32 %v2931, 4294901760
  %3121 = vmatpush.msra.mxu0 %v3120
  %v3122 = vand.u32 %v2936, 4294901760
  %3123 = vmatmul.f32.gmra.mxu0 %v3122
  %v3124 = vpop.f32.mrf.mxu0
  %v3125 = vadd.f32 %v3098, %v3124
  %v3126 = vand.u32 %v2939, 4294901760
  %3127 = vmatmul.f32.gmra.mxu0 %v3126
  %v3128 = vpop.f32.mrf.mxu0
  %v3129 = vadd.f32 %v3102, %v3128
  %3130 = vdwg.mxu0
  %3131 = vmatpush.msra.mxu0 0.0
  %3132 = vmatpush.msra.mxu0 0.0
  %3133 = vmatpush.msra.mxu0 0.0
  %3134 = vmatpush.msra.mxu0 0.0
  %3135 = vmatpush.msra.mxu0 0.0
  %3136 = vmatpush.msra.mxu0 0.0
  %3137 = vmatpush.msra.mxu0 0.0
  %3138 = vmatpush.msra.mxu0 0.0
  %3139 = vmatpush.msra.mxu0 0.0
  %3140 = vmatpush.msra.mxu0 0.0
  %3141 = vmatpush.msra.mxu0 0.0
  %3142 = vmatpush.msra.mxu0 0.0
  %3143 = vmatpush.msra.mxu0 0.0
  %3144 = vmatpush.msra.mxu0 0.0
  %v3145 = vand.u32 %v2934, 4294901760
  %3146 = vmatpush.msra.mxu0 %v3145
  %v3147 = vand.u32 %v2932, 4294901760
  %3148 = vmatpush.msra.mxu0 %v3147
  %v3149 = vand.u32 %v2936, 4294901760
  %v3150 = vsub.f32 %v2936, %v3149
  %v3151 = vand.u32 %v3150, 4294901760
  %v3152 = vsub.f32 %v3150, %v3151
  %v3153 = vand.u32 %v3152, 4294901760
  %3154 = vmatmul.f32.gmra.mxu0 %v3153
  %v3155 = vpop.f32.mrf.mxu0
  %v3156 = vadd.f32 0.0, %v3155
  %v3157 = vand.u32 %v2939, 4294901760
  %v3158 = vsub.f32 %v2939, %v3157
  %v3159 = vand.u32 %v3158, 4294901760
  %v3160 = vsub.f32 %v3158, %v3159
  %v3161 = vand.u32 %v3160, 4294901760
  %3162 = vmatmul.f32.gmra.mxu0 %v3161
  %v3163 = vpop.f32.mrf.mxu0
  %v3164 = vadd.f32 0.0, %v3163
  %3165 = vdwg.mxu0
  %3166 = vmatpush.msra.mxu0 0.0
  %3167 = vmatpush.msra.mxu0 0.0
  %3168 = vmatpush.msra.mxu0 0.0
  %3169 = vmatpush.msra.mxu0 0.0
  %3170 = vmatpush.msra.mxu0 0.0
  %3171 = vmatpush.msra.mxu0 0.0
  %3172 = vmatpush.msra.mxu0 0.0
  %3173 = vmatpush.msra.mxu0 0.0
  %3174 = vmatpush.msra.mxu0 0.0
  %3175 = vmatpush.msra.mxu0 0.0
  %3176 = vmatpush.msra.mxu0 0.0
  %3177 = vmatpush.msra.mxu0 0.0
  %3178 = vmatpush.msra.mxu0 0.0
  %3179 = vmatpush.msra.mxu0 0.0
  %v3180 = vand.u32 %v2934, 4294901760
  %v3181 = vsub.f32 %v2934, %v3180
  %v3182 = vand.u32 %v3181, 4294901760
  %v3183 = vsub.f32 %v3181, %v3182
  %v3184 = vand.u32 %v3183, 4294901760
  %3185 = vmatpush.msra.mxu0 %v3184
  %v3186 = vand.u32 %v2932, 4294901760
  %v3187 = vsub.f32 %v2932, %v3186
  %v3188 = vand.u32 %v3187, 4294901760
  %v3189 = vsub.f32 %v3187, %v3188
  %v3190 = vand.u32 %v3189, 4294901760
  %3191 = vmatpush.msra.mxu0 %v3190
  %v3192 = vand.u32 %v2936, 4294901760
  %3193 = vmatmul.f32.gmra.mxu0 %v3192
  %v3194 = vpop.f32.mrf.mxu0
  %v3195 = vadd.f32 %v3156, %v3194
  %v3196 = vand.u32 %v2939, 4294901760
  %3197 = vmatmul.f32.gmra.mxu0 %v3196
  %v3198 = vpop.f32.mrf.mxu0
  %v3199 = vadd.f32 %v3164, %v3198
  %3200 = vdwg.mxu0
  %3201 = vmatpush.msra.mxu0 0.0
  %3202 = vmatpush.msra.mxu0 0.0
  %3203 = vmatpush.msra.mxu0 0.0
  %3204 = vmatpush.msra.mxu0 0.0
  %3205 = vmatpush.msra.mxu0 0.0
  %3206 = vmatpush.msra.mxu0 0.0
  %3207 = vmatpush.msra.mxu0 0.0
  %3208 = vmatpush.msra.mxu0 0.0
  %3209 = vmatpush.msra.mxu0 0.0
  %3210 = vmatpush.msra.mxu0 0.0
  %3211 = vmatpush.msra.mxu0 0.0
  %3212 = vmatpush.msra.mxu0 0.0
  %3213 = vmatpush.msra.mxu0 0.0
  %3214 = vmatpush.msra.mxu0 0.0
  %v3215 = vand.u32 %v2934, 4294901760
  %v3216 = vsub.f32 %v2934, %v3215
  %3217 = vmatpush.msra.mxu0 %v3216
  %v3218 = vand.u32 %v2932, 4294901760
  %v3219 = vsub.f32 %v2932, %v3218
  %3220 = vmatpush.msra.mxu0 %v3219
  %v3221 = vand.u32 %v2936, 4294901760
  %v3222 = vsub.f32 %v2936, %v3221
  %3223 = vmatmul.f32.gmra.mxu0 %v3222
  %v3224 = vpop.f32.mrf.mxu0
  %v3225 = vadd.f32 %v3195, %v3224
  %v3226 = vand.u32 %v2939, 4294901760
  %v3227 = vsub.f32 %v2939, %v3226
  %3228 = vmatmul.f32.gmra.mxu0 %v3227
  %v3229 = vpop.f32.mrf.mxu0
  %v3230 = vadd.f32 %v3199, %v3229
  %3231 = vdwg.mxu0
  %3232 = vmatpush.msra.mxu0 0.0
  %3233 = vmatpush.msra.mxu0 0.0
  %3234 = vmatpush.msra.mxu0 0.0
  %3235 = vmatpush.msra.mxu0 0.0
  %3236 = vmatpush.msra.mxu0 0.0
  %3237 = vmatpush.msra.mxu0 0.0
  %3238 = vmatpush.msra.mxu0 0.0
  %3239 = vmatpush.msra.mxu0 0.0
  %3240 = vmatpush.msra.mxu0 0.0
  %3241 = vmatpush.msra.mxu0 0.0
  %3242 = vmatpush.msra.mxu0 0.0
  %3243 = vmatpush.msra.mxu0 0.0
  %3244 = vmatpush.msra.mxu0 0.0
  %3245 = vmatpush.msra.mxu0 0.0
  %v3246 = vand.u32 %v2934, 4294901760
  %3247 = vmatpush.msra.mxu0 %v3246
  %v3248 = vand.u32 %v2932, 4294901760
  %3249 = vmatpush.msra.mxu0 %v3248
  %v3250 = vand.u32 %v2936, 4294901760
  %v3251 = vsub.f32 %v2936, %v3250
  %v3252 = vand.u32 %v3251, 4294901760
  %3253 = vmatmul.f32.gmra.mxu0 %v3252
  %v3254 = vpop.f32.mrf.mxu0
  %v3255 = vadd.f32 %v3225, %v3254
  %v3256 = vand.u32 %v2939, 4294901760
  %v3257 = vsub.f32 %v2939, %v3256
  %v3258 = vand.u32 %v3257, 4294901760
  %3259 = vmatmul.f32.gmra.mxu0 %v3258
  %v3260 = vpop.f32.mrf.mxu0
  %v3261 = vadd.f32 %v3230, %v3260
  %3262 = vdwg.mxu0
  %3263 = vmatpush.msra.mxu0 0.0
  %3264 = vmatpush.msra.mxu0 0.0
  %3265 = vmatpush.msra.mxu0 0.0
  %3266 = vmatpush.msra.mxu0 0.0
  %3267 = vmatpush.msra.mxu0 0.0
  %3268 = vmatpush.msra.mxu0 0.0
  %3269 = vmatpush.msra.mxu0 0.0
  %3270 = vmatpush.msra.mxu0 0.0
  %3271 = vmatpush.msra.mxu0 0.0
  %3272 = vmatpush.msra.mxu0 0.0
  %3273 = vmatpush.msra.mxu0 0.0
  %3274 = vmatpush.msra.mxu0 0.0
  %3275 = vmatpush.msra.mxu0 0.0
  %3276 = vmatpush.msra.mxu0 0.0
  %v3277 = vand.u32 %v2934, 4294901760
  %v3278 = vsub.f32 %v2934, %v3277
  %v3279 = vand.u32 %v3278, 4294901760
  %3280 = vmatpush.msra.mxu0 %v3279
  %v3281 = vand.u32 %v2932, 4294901760
  %v3282 = vsub.f32 %v2932, %v3281
  %v3283 = vand.u32 %v3282, 4294901760
  %3284 = vmatpush.msra.mxu0 %v3283
  %v3285 = vand.u32 %v2936, 4294901760
  %3286 = vmatmul.f32.gmra.mxu0 %v3285
  %v3287 = vpop.f32.mrf.mxu0
  %v3288 = vadd.f32 %v3255, %v3287
  %v3289 = vand.u32 %v2939, 4294901760
  %3290 = vmatmul.f32.gmra.mxu0 %v3289
  %v3291 = vpop.f32.mrf.mxu0
  %v3292 = vadd.f32 %v3261, %v3291
  %3293 = vdwg.mxu0
  %3294 = vmatpush.msra.mxu0 0.0
  %3295 = vmatpush.msra.mxu0 0.0
  %3296 = vmatpush.msra.mxu0 0.0
  %3297 = vmatpush.msra.mxu0 0.0
  %3298 = vmatpush.msra.mxu0 0.0
  %3299 = vmatpush.msra.mxu0 0.0
  %3300 = vmatpush.msra.mxu0 0.0
  %3301 = vmatpush.msra.mxu0 0.0
  %3302 = vmatpush.msra.mxu0 0.0
  %3303 = vmatpush.msra.mxu0 0.0
  %3304 = vmatpush.msra.mxu0 0.0
  %3305 = vmatpush.msra.mxu0 0.0
  %3306 = vmatpush.msra.mxu0 0.0
  %3307 = vmatpush.msra.mxu0 0.0
  %v3308 = vand.u32 %v2934, 4294901760
  %3309 = vmatpush.msra.mxu0 %v3308
  %v3310 = vand.u32 %v2932, 4294901760
  %3311 = vmatpush.msra.mxu0 %v3310
  %v3312 = vand.u32 %v2936, 4294901760
  %3313 = vmatmul.f32.gmra.mxu0 %v3312
  %v3314 = vpop.f32.mrf.mxu0
  %v3315 = vadd.f32 %v3288, %v3314
  %v3316 = vand.u32 %v2939, 4294901760
  %3317 = vmatmul.f32.gmra.mxu0 %v3316
  %v3318 = vpop.f32.mrf.mxu0
  %v3319 = vadd.f32 %v3292, %v3318
  %3320 = vdwg.mxu0
  %v3321 = vmul.f32 %v2735, %v3125
  %v3322 = vmul.f32 %v2925, %v3315
  %v3323 = vmul.f32 %v2739, %v3129
  %v3324 = vmul.f32 %v2929, %v3319
  %v3325 = vxor.u32 %v3321, 2147483648
  %v3326 = vxor.u32 %v3322, 2147483648
  %v3327 = vxor.u32 %v3323, 2147483648
  %v3328 = vxor.u32 %v3324, 2147483648
  %v3329 = vmul.f32 %v3325, 1.442695
  %v3330 = vpow.pop %v3329
  %v3331 = vmul.f32 %v3326, 1.442695
  %v3332 = vpow.pop %v3331
  %v3333 = vmul.f32 %v3327, 1.442695
  %v3334 = vpow.pop %v3333
  %v3335 = vmul.f32 %v3328, 1.442695
  %v3336 = vpow.pop %v3335
  %v3337 = vadd.f32 %v3330, 1.0
  %v3338 = vadd.f32 %v3332, 1.0
  %v3339 = vadd.f32 %v3334, 1.0
  %v3340 = vadd.f32 %v3336, 1.0
  %v3341 = vrcp.pop %v3337
  %v3342 = vmul.f32 %v3337, %v3341
  %v3343 = vsub.f32 1.0, %v3342
  %v3344 = vmul.f32 %v3341, %v3343
  %v3345 = vadd.f32 %v3341, %v3344
  %vm3346 = vweird.f32 %v3337
  %vm3347 = vweird.f32 %v3341
  %vm3348 = vmor %vm3346, %vm3347
  %v3349 = vsel %vm3348, %v3341, %v3345
  %v3350 = vand.u32 2147483647, %v3337
  %vm3351 = vcmp.eq.f32.partialorder %v3350, 8.507059e+37
  %v3352 = vand.u32 %v3337, 2147483648
  %v3353 = vor.u32 1.1754944e-38, %v3352
  %v3354 = vsel %vm3351, %v3353, %v3349
  %v3355 = vmul.f32 1.0, %v3354
  %v3356 = vrcp.pop %v3338
  %v3357 = vmul.f32 %v3338, %v3356
  %v3358 = vsub.f32 1.0, %v3357
  %v3359 = vmul.f32 %v3356, %v3358
  %v3360 = vadd.f32 %v3356, %v3359
  %vm3361 = vweird.f32 %v3338
  %vm3362 = vweird.f32 %v3356
  %vm3363 = vmor %vm3361, %vm3362
  %v3364 = vsel %vm3363, %v3356, %v3360
  %v3365 = vand.u32 2147483647, %v3338
  %vm3366 = vcmp.eq.f32.partialorder %v3365, 8.507059e+37
  %v3367 = vand.u32 %v3338, 2147483648
  %v3368 = vor.u32 1.1754944e-38, %v3367
  %v3369 = vsel %vm3366, %v3368, %v3364
  %v3370 = vmul.f32 1.0, %v3369
  %v3371 = vrcp.pop %v3339
  %v3372 = vmul.f32 %v3339, %v3371
  %v3373 = vsub.f32 1.0, %v3372
  %v3374 = vmul.f32 %v3371, %v3373
  %v3375 = vadd.f32 %v3371, %v3374
  %vm3376 = vweird.f32 %v3339
  %vm3377 = vweird.f32 %v3371
  %vm3378 = vmor %vm3376, %vm3377
  %v3379 = vsel %vm3378, %v3371, %v3375
  %v3380 = vand.u32 2147483647, %v3339
  %vm3381 = vcmp.eq.f32.partialorder %v3380, 8.507059e+37
  %v3382 = vand.u32 %v3339, 2147483648
  %v3383 = vor.u32 1.1754944e-38, %v3382
  %v3384 = vsel %vm3381, %v3383, %v3379
  %v3385 = vmul.f32 1.0, %v3384
  %v3386 = vrcp.pop %v3340
  %v3387 = vmul.f32 %v3340, %v3386
  %v3388 = vsub.f32 1.0, %v3387
  %v3389 = vmul.f32 %v3386, %v3388
  %v3390 = vadd.f32 %v3386, %v3389
  %vm3391 = vweird.f32 %v3340
  %vm3392 = vweird.f32 %v3386
  %vm3393 = vmor %vm3391, %vm3392
  %v3394 = vsel %vm3393, %v3386, %v3390
  %v3395 = vand.u32 2147483647, %v3340
  %vm3396 = vcmp.eq.f32.partialorder %v3395, 8.507059e+37
  %v3397 = vand.u32 %v3340, 2147483648
  %v3398 = vor.u32 1.1754944e-38, %v3397
  %v3399 = vsel %vm3396, %v3398, %v3394
  %v3400 = vmul.f32 1.0, %v3399
  %v3401 = vmul.f32 %v3355, %v35
  %v3402 = vmul.f32 %v3370, %v36
  %v3403 = vmul.f32 %v3385, %v37
  %v3404 = vmul.f32 %v3400, %v38
  %3405 = vst [vmem:[%s10] sm:$0xff] %v3401
  %3406 = vst [vmem:[%s10 + $0x8] sm:$0xff] %v3402
  %3407 = vst [vmem:[%s10 + $0x10] sm:$0xff] %v3403
  %3408 = vst [vmem:[%s10 + $0x18] sm:$0xff] %v3404
  // Predicated region
  $region42: #{sha_layer_pallas.1} parent=0 // pred_check
    _
  $region43: #{sha_layer_pallas.1} parent=0 // pred_check_branch
    %3410 = sbr.rel (0) target = $region45
  $region44: #{sha_layer_pallas.1} parent=0 // pred_region
    _
  $region45: #{sha_layer_pallas.1} parent=0 // pred_fallthru
    _
  // Predicated region
  $region46: #{sha_layer_pallas.1} parent=0 // pred_check
    _
  $region47: #{sha_layer_pallas.1} parent=0 // pred_check_branch
    %3412 = sbr.rel (0) target = $region49
  $region48: #{sha_layer_pallas.1} parent=0 // pred_region
    _
  $region49: #{sha_layer_pallas.1} parent=0 // pred_fallthru
    _

</llo_original>
